<compile_context>
chip_gen: v7x
topology: tpu7x:2x2x1
jax: 0.10.0
libtpu: 0.0.40
codegen_flags: <defaults>
</compile_context>

<pallas_src>
import jax
import jax.numpy as jnp
from jax.experimental import pallas as pl
from jax.experimental.pallas import tpu as pltpu

# ----------------------------- hyper-params ---------------------------------
DIM = 3            # input point dimension
C_DIM = 32         # latent conditioning dimension
HIDDEN = 128       # hidden size (sublane-aligned)
N_BLOCKS = 5       # number of ResnetBlockFC blocks
OUT_DIM = 4        # occupancy(1) + rgb(3)
TM_MAX = 2048      # max point-tile size (lane dim, multiple of 128)

_HIGH = jax.lax.Precision.HIGHEST


# ------------------------------- kernel -------------------------------------
def occupancy_kernel(p_ref, cadd_ref, wpT_ref, w0T_ref, b0T_ref,
                     w1T_ref, woT_ref, boT_ref, out_ref):
    """One (batch, point-tile) step.  Activations are (HIDDEN, TM):
    features on sublanes, points on lanes (lane-dense everywhere)."""
    p = p_ref[0]                    # (DIM, TM)            f32
    wpT = wpT_ref[...]              # (HIDDEN, DIM)        f32
    cadd = cadd_ref[0]              # (HIDDEN, N_BLOCKS+1) f32

    # net = fc_p(p) + fc_c[0](c): DIM broadcast FMAs on the VPU (K=3 would
    # waste an MXU pass).  fc_p bias and block-0 conditioning are pre-folded
    # into cadd[:, 0].
    net = cadd[:, 0:1] + wpT[:, 0:1] * p[0:1, :]
    for d in range(1, DIM):
        net = net + wpT[:, d:d + 1] * p[d:d + 1, :]       # (HIDDEN, TM) f32

    # 5 ResnetBlockFC blocks (static unroll).  MXU operands bf16, accumulate
    # f32, VPU math f32.  Per block exactly three full-tile elementwise
    # passes: relu+cast, bias+relu+cast, residual+next-conditioning.
    for n in range(N_BLOCKS):
        h0 = jnp.maximum(net, 0.0).astype(jnp.bfloat16)
        t = jnp.dot(w0T_ref[n], h0, preferred_element_type=jnp.float32)
        h1 = jnp.maximum(t + b0T_ref[:, n:n + 1], 0.0).astype(jnp.bfloat16)
        dx = jnp.dot(w1T_ref[n], h1, preferred_element_type=jnp.float32)
        # identity shortcut + fc_1 bias + next block's conditioning, fused:
        # cadd[:, n+1] = netc[n+1] + b1[n]   (cadd[:, N_BLOCKS] = b1[-1]).
        net = net + dx + cadd[:, n + 1:n + 2]

    # out = fc_out(relu(net)); row 0 -> raw occupancy, rows 1:4 -> sigmoid(rgb).
    h = jnp.maximum(net, 0.0).astype(jnp.bfloat16)
    out = jnp.dot(woT_ref[...], h,
                  preferred_element_type=jnp.float32) + boT_ref[...]   # (4, TM)
    row = jax.lax.broadcasted_iota(jnp.int32, out.shape, 0)
    out_ref[0] = jnp.where(row == 0, out, jax.nn.sigmoid(out)).astype(out_ref.dtype)


# --------------------------- one-time param prep ------------------------------
def prepare_params(params):
    """One-time layout conversion for the kernel (runs OUTSIDE the jitted
    forward): transpose every Linear to W^T for the features-on-sublanes
    dataflow and pre-cast the MXU weights to bf16."""
    bf = jnp.bfloat16
    return {
        'wpT': jnp.transpose(params['wp']),                   # (HIDDEN, DIM)        f32
        'bp':  params['bp'].reshape(HIDDEN),                  # (HIDDEN,)            f32
        'wc':  params['wc'],                                  # (NB, C_DIM, HIDDEN)  f32
        'bc':  params['bc'],                                  # (NB, HIDDEN)         f32
        'w0T': jnp.swapaxes(params['w0'], 1, 2).astype(bf),   # (NB, HIDDEN, HIDDEN) bf16
        'b0T': jnp.transpose(params['b0']),                   # (HIDDEN, NB)         f32
        'w1T': jnp.swapaxes(params['w1'], 1, 2).astype(bf),   # (NB, HIDDEN, HIDDEN) bf16
        'b1':  params['b1'],                                  # (NB, HIDDEN)         f32
        'woT': jnp.transpose(params['wo']).astype(bf),        # (OUT_DIM, HIDDEN)    bf16
        'boT': params['bo'].reshape(OUT_DIM, 1),              # (OUT_DIM, 1)         f32
    }


def _round_up(x, m):
    return ((x + m - 1) // m) * m


def _choose_tm(T, N):
    """Point-tile size (lane dim -> multiple of 128).  Big for large T (per-step
    overhead amortization), small for small T (pad waste), and >= 2 point tiles
    when N == 1 so both v7x TensorCores get a grid step (for T <= 128 the work
    is too small to split)."""
    tm = min(TM_MAX, _round_up(T, 128))
    if N == 1:
        tm = min(tm, _round_up(pl.cdiv(T, 2), 128))
    return max(128, tm)


# ------------------------------- wrapper -------------------------------------
@jax.jit
def occupancy_forward(p, c, kparams):
    """p: (N, T, DIM) f32, c: (N, 1, C_DIM) f32, kparams from prepare_params().

    Returns (occupancy, rgb): (N, T, 1) raw logits, (N, T, 3) sigmoided,
    matching Occupancy.forward(...)'s namedtuple fields (sdf/latent are None).
    """
    N, T, _ = p.shape
    TM = _choose_tm(T, N)
    Tp = _round_up(T, TM)

    # Points -> (N, DIM, Tp): points on lanes; pad tail (sliced off after).
    p_t = jnp.transpose(p, (0, 2, 1))
    if Tp != T:
        p_t = jnp.pad(p_t, ((0, 0), (0, 0), (0, Tp - T)))

    # Glue (cheap, per batch): conditioning projections fc_c[n](c) plus bias
    # folding:  cadd[:, 0]  = netc[0]  + fc_p.b
    #           cadd[:, n]  = netc[n]  + fc_1.b[n-1]   (1 <= n < NB)
    #           cadd[:, NB] =            fc_1.b[NB-1]
    netc = jnp.einsum('nc,bch->nbh', c[:, 0, :], kparams['wc'],
                      precision=_HIGH) + kparams['bc'][None]        # (N, NB, HIDDEN)
    shift_b = jnp.concatenate([kparams['bp'][None, :], kparams['b1']], axis=0)
    cadd = jnp.concatenate(
        [netc, jnp.zeros((N, 1, HIDDEN), netc.dtype)], axis=1) + shift_b[None]
    cadd_t = jnp.transpose(cadd, (0, 2, 1))                         # (N, HIDDEN, NB+1)

    zero2 = lambda b, t: (0, 0)
    zero3 = lambda b, t: (0, 0, 0)

    out = pl.pallas_call(
        occupancy_kernel,
        out_shape=jax.ShapeDtypeStruct((N, OUT_DIM, Tp), jnp.float32),
        grid_spec=pltpu.PrefetchScalarGridSpec(
            num_scalar_prefetch=0,
            grid=(N, Tp // TM),
            in_specs=[
                pl.BlockSpec((1, DIM, TM), lambda b, t: (b, 0, t)),             # p^T
                pl.BlockSpec((1, HIDDEN, N_BLOCKS + 1), lambda b, t: (b, 0, 0)),  # cadd^T
                pl.BlockSpec((HIDDEN, DIM), zero2),                              # fc_p.W^T   f32
                pl.BlockSpec((N_BLOCKS, HIDDEN, HIDDEN), zero3),                 # fc_0.W^T   bf16
                pl.BlockSpec((HIDDEN, N_BLOCKS), zero2),                         # fc_0.b^T   f32
                pl.BlockSpec((N_BLOCKS, HIDDEN, HIDDEN), zero3),                 # fc_1.W^T   bf16
                pl.BlockSpec((OUT_DIM, HIDDEN), zero2),                          # fc_out.W^T bf16
                pl.BlockSpec((OUT_DIM, 1), zero2),                               # fc_out.b
            ],
            out_specs=pl.BlockSpec((1, OUT_DIM, TM), lambda b, t: (b, 0, t)),    # lane-dense
        ),
        compiler_params=pltpu.CompilerParams(
            dimension_semantics=("parallel", "parallel")),
    )(p_t, cadd_t, kparams['wpT'], kparams['w0T'], kparams['b0T'],
      kparams['w1T'], kparams['woT'], kparams['boT'])

    out = jnp.transpose(out[:, :, :T], (0, 2, 1))                   # (N, T, OUT_DIM)
    occupancy = out[..., :1]
    rgb = out[..., 1:]
    return occupancy, rgb


# --------------------------- references (pure JAX) ----------------------------
def occupancy_reference(p, c, params):
    """Full-f32 reference (module semantics)."""
    net = jnp.dot(p, params['wp'], precision=_HIGH) + params['bp']
    for n in range(N_BLOCKS):
        net_c = jnp.dot(c, params['wc'][n], precision=_HIGH) + params['bc'][n]
        net = net + net_c
        h = jax.nn.relu(net)
        t = jnp.dot(h, params['w0'][n], precision=_HIGH) + params['b0'][n]
        dx = jnp.dot(jax.nn.relu(t), params['w1'][n], precision=_HIGH) + params['b1'][n]
        net = net + dx
    out = jnp.dot(jax.nn.relu(net), params['wo'], precision=_HIGH) + params['bo']
    return out[..., :1], jax.nn.sigmoid(out[..., 1:])


def occupancy_reference_bf16(p, c, params):
    """Reference emulating the kernel's numerics (bf16 dot operands, f32 accum)."""
    bf = jnp.bfloat16
    net = jnp.dot(p, params['wp'], precision=_HIGH) + params['bp']
    for n in range(N_BLOCKS):
        net_c = jnp.dot(c, params['wc'][n], precision=_HIGH) + params['bc'][n]
        net = net + net_c
        h0 = jax.nn.relu(net).astype(bf)
        t = jnp.dot(h0, params['w0'][n].astype(bf),
                    preferred_element_type=jnp.float32) + params['b0'][n]
        h1 = jax.nn.relu(t).astype(bf)
        dx = jnp.dot(h1, params['w1'][n].astype(bf),
                     preferred_element_type=jnp.float32) + params['b1'][n]
        net = net + dx
    out = jnp.dot(jax.nn.relu(net).astype(bf), params['wo'].astype(bf),
                  preferred_element_type=jnp.float32) + params['bo']
    return out[..., :1], jax.nn.sigmoid(out[..., 1:])


# ------------------------------- params --------------------------------------
def make_params(key):
    ks = jax.random.split(key, 10)
    def lin(k, fan_in, shape):
        return (jax.random.normal(k, shape, jnp.float32) / jnp.sqrt(fan_in)).astype(jnp.float32)
    # NOTE: ResnetBlockFC zero-inits fc_1.weight in __init__; we use small random
    # weights here so the kernel exercises a non-trivial compute path.
    return {
        'wp': lin(ks[0], DIM, (DIM, HIDDEN)),
        'bp': lin(ks[1], DIM, (1, HIDDEN)),
        'wc': lin(ks[2], C_DIM, (N_BLOCKS, C_DIM, HIDDEN)),
        'bc': lin(ks[3], C_DIM, (N_BLOCKS, HIDDEN)),
        'w0': lin(ks[4], HIDDEN, (N_BLOCKS, HIDDEN, HIDDEN)),
        'b0': lin(ks[5], HIDDEN, (N_BLOCKS, HIDDEN)),
        'w1': 0.1 * lin(ks[6], HIDDEN, (N_BLOCKS, HIDDEN, HIDDEN)),
        'b1': lin(ks[7], HIDDEN, (N_BLOCKS, HIDDEN)),
        'wo': lin(ks[8], HIDDEN, (HIDDEN, OUT_DIM)),
        'bo': lin(ks[9], HIDDEN, (1, OUT_DIM)),
    }


if __name__ == "__main__":
    key = jax.random.PRNGKey(0)
    kp, kc, kw = jax.random.split(key, 3)

    N, T = 2, 200          # T not a multiple of 128 -> exercises the pad/slice path
    p = jax.random.normal(kp, (N, T, DIM), jnp.float32)
    c = jax.random.normal(kc, (N, 1, C_DIM), jnp.float32)
    params = make_params(kw)
    kparams = prepare_params(params)      # one-time layout + bf16 cast, outside jit

    occ, rgb = occupancy_forward(p, c, kparams)
    occ = jax.block_until_ready(occ)
    rgb = jax.block_until_ready(rgb)

    assert occ.shape == (N, T, 1) and rgb.shape == (N, T, 3)

    # Tight check against a reference that matches the kernel's bf16 numerics.
    occ_bf, rgb_bf = occupancy_reference_bf16(p, c, params)
    assert jnp.allclose(occ, occ_bf, atol=2e-2, rtol=2e-2)
    assert jnp.allclose(rgb, rgb_bf, atol=2e-2, rtol=2e-2)

    # Loose semantic check against the full-f32 module reference.
    occ_f32, rgb_f32 = occupancy_reference(p, c, params)
    assert jnp.allclose(occ, occ_f32, atol=6e-2, rtol=6e-2)
    assert jnp.allclose(rgb, rgb_f32, atol=3e-2, rtol=3e-2)

    print("KERNEL_OK")
</pallas_src>

<mosaic_0001>
module attributes {stable_mosaic.version = 11 : i64} {
  func.func @occupancy_kernel(%arg0: i32, %arg1: i32, %arg2: memref<1x3x256xf32, #tpu.memory_space<vmem>>, %arg3: memref<1x128x6xf32, #tpu.memory_space<vmem>>, %arg4: memref<128x3xf32, #tpu.memory_space<vmem>>, %arg5: memref<5x128x128xbf16, #tpu.memory_space<vmem>>, %arg6: memref<128x5xf32, #tpu.memory_space<vmem>>, %arg7: memref<5x128x128xbf16, #tpu.memory_space<vmem>>, %arg8: memref<4x128xbf16, #tpu.memory_space<vmem>>, %arg9: memref<4x1xf32, #tpu.memory_space<vmem>>, %arg10: memref<1x4x256xf32, #tpu.memory_space<vmem>>) attributes {dimension_semantics = [#tpu.dimension_semantics<parallel>, #tpu.dimension_semantics<parallel>], iteration_bounds = array<i64: 2, 1>, scalar_prefetch = 0 : i64, scratch_operands = 0 : i64, tpu.core_type = #tpu.core_type<tc>, window_params = [{transform_indices = @transform_0, window_bounds = array<i64: 1, 3, 256>}, {transform_indices = @transform_1, window_bounds = array<i64: 1, 128, 6>}, {pipeline_mode = #tpu.pipeline_mode<synchronous>, transform_indices = @transform_2, window_bounds = array<i64: 128, 3>}, {pipeline_mode = #tpu.pipeline_mode<synchronous>, transform_indices = @transform_3, window_bounds = array<i64: 5, 128, 128>}, {pipeline_mode = #tpu.pipeline_mode<synchronous>, transform_indices = @transform_4, window_bounds = array<i64: 128, 5>}, {pipeline_mode = #tpu.pipeline_mode<synchronous>, transform_indices = @transform_5, window_bounds = array<i64: 5, 128, 128>}, {pipeline_mode = #tpu.pipeline_mode<synchronous>, transform_indices = @transform_6, window_bounds = array<i64: 4, 128>}, {pipeline_mode = #tpu.pipeline_mode<synchronous>, transform_indices = @transform_7, window_bounds = array<i64: 4, 1>}, {transform_indices = @transform_8, window_bounds = array<i64: 1, 4, 256>}]} {
    %c0 = arith.constant 0 : index
    %c0_0 = arith.constant 0 : index
    %c0_1 = arith.constant 0 : index
    %0 = vector.load %arg2[%c0, %c0_0, %c0_1] : memref<1x3x256xf32, #tpu.memory_space<vmem>>, vector<1x3x256xf32>
    %1 = vector.shape_cast %0 : vector<1x3x256xf32> to vector<3x256xf32>
    %c0_2 = arith.constant 0 : index
    %c0_3 = arith.constant 0 : index
    %2 = vector.load %arg4[%c0_2, %c0_3] : memref<128x3xf32, #tpu.memory_space<vmem>>, vector<128x3xf32>
    %c0_4 = arith.constant 0 : index
    %c0_5 = arith.constant 0 : index
    %c0_6 = arith.constant 0 : index
    %3 = vector.load %arg3[%c0_4, %c0_5, %c0_6] : memref<1x128x6xf32, #tpu.memory_space<vmem>>, vector<1x128x6xf32>
    %4 = vector.shape_cast %3 : vector<1x128x6xf32> to vector<128x6xf32>
    %5 = vector.extract_strided_slice %4 {offsets = [0, 0], sizes = [128, 1], strides = [1, 1]} : vector<128x6xf32> to vector<128x1xf32>
    %6 = vector.extract_strided_slice %2 {offsets = [0, 0], sizes = [128, 1], strides = [1, 1]} : vector<128x3xf32> to vector<128x1xf32>
    %7 = vector.extract_strided_slice %1 {offsets = [0, 0], sizes = [1, 256], strides = [1, 1]} : vector<3x256xf32> to vector<1x256xf32>
    %8 = vector.broadcast %6 : vector<128x1xf32> to vector<128x256xf32>
    %9 = vector.broadcast %7 : vector<1x256xf32> to vector<128x256xf32>
    %10 = arith.mulf %8, %9 : vector<128x256xf32>
    %11 = vector.broadcast %5 : vector<128x1xf32> to vector<128x256xf32>
    %12 = arith.addf %11, %10 : vector<128x256xf32>
    %13 = vector.extract_strided_slice %2 {offsets = [0, 1], sizes = [128, 1], strides = [1, 1]} : vector<128x3xf32> to vector<128x1xf32>
    %14 = vector.extract_strided_slice %1 {offsets = [1, 0], sizes = [1, 256], strides = [1, 1]} : vector<3x256xf32> to vector<1x256xf32>
    %15 = vector.broadcast %13 : vector<128x1xf32> to vector<128x256xf32>
    %16 = vector.broadcast %14 : vector<1x256xf32> to vector<128x256xf32>
    %17 = arith.mulf %15, %16 : vector<128x256xf32>
    %18 = arith.addf %12, %17 : vector<128x256xf32>
    %19 = vector.extract_strided_slice %2 {offsets = [0, 2], sizes = [128, 1], strides = [1, 1]} : vector<128x3xf32> to vector<128x1xf32>
    %20 = vector.extract_strided_slice %1 {offsets = [2, 0], sizes = [1, 256], strides = [1, 1]} : vector<3x256xf32> to vector<1x256xf32>
    %21 = vector.broadcast %19 : vector<128x1xf32> to vector<128x256xf32>
    %22 = vector.broadcast %20 : vector<1x256xf32> to vector<128x256xf32>
    %23 = arith.mulf %21, %22 : vector<128x256xf32>
    %24 = arith.addf %18, %23 : vector<128x256xf32>
    %cst = arith.constant 0.000000e+00 : f32
    %25 = vector.broadcast %cst : f32 to vector<128x256xf32>
    %26 = arith.maximumf %24, %25 : vector<128x256xf32>
    %27 = arith.truncf %26 : vector<128x256xf32> to vector<128x256xbf16>
    %c0_7 = arith.constant 0 : index
    %c0_8 = arith.constant 0 : index
    %c0_9 = arith.constant 0 : index
    %28 = vector.load %arg5[%c0_7, %c0_8, %c0_9] : memref<5x128x128xbf16, #tpu.memory_space<vmem>>, vector<1x128x128xbf16>
    %29 = vector.shape_cast %28 : vector<1x128x128xbf16> to vector<128x128xbf16>
    %cst_10 = arith.constant dense<0.000000e+00> : vector<128x256xf32>
    %30 = tpu.matmul %29, %27, %cst_10 {dimension_numbers = #tpu.dot_dimension_numbers<[1], [0], [0], [1], [0, 0, 1, 1], [], []>} : vector<128x128xbf16>, vector<128x256xbf16>, vector<128x256xf32> -> vector<128x256xf32>
    %c0_11 = arith.constant 0 : index
    %c0_12 = arith.constant 0 : index
    %31 = vector.load %arg6[%c0_11, %c0_12] : memref<128x5xf32, #tpu.memory_space<vmem>>, vector<128x1xf32>
    %32 = vector.broadcast %31 : vector<128x1xf32> to vector<128x256xf32>
    %33 = arith.addf %30, %32 : vector<128x256xf32>
    %cst_13 = arith.constant 0.000000e+00 : f32
    %34 = vector.broadcast %cst_13 : f32 to vector<128x256xf32>
    %35 = arith.maximumf %33, %34 : vector<128x256xf32>
    %36 = arith.truncf %35 : vector<128x256xf32> to vector<128x256xbf16>
    %c0_14 = arith.constant 0 : index
    %c0_15 = arith.constant 0 : index
    %c0_16 = arith.constant 0 : index
    %37 = vector.load %arg7[%c0_14, %c0_15, %c0_16] : memref<5x128x128xbf16, #tpu.memory_space<vmem>>, vector<1x128x128xbf16>
    %38 = vector.shape_cast %37 : vector<1x128x128xbf16> to vector<128x128xbf16>
    %cst_17 = arith.constant dense<0.000000e+00> : vector<128x256xf32>
    %39 = tpu.matmul %38, %36, %cst_17 {dimension_numbers = #tpu.dot_dimension_numbers<[1], [0], [0], [1], [0, 0, 1, 1], [], []>} : vector<128x128xbf16>, vector<128x256xbf16>, vector<128x256xf32> -> vector<128x256xf32>
    %40 = arith.addf %24, %39 : vector<128x256xf32>
    %41 = vector.extract_strided_slice %4 {offsets = [0, 1], sizes = [128, 1], strides = [1, 1]} : vector<128x6xf32> to vector<128x1xf32>
    %42 = vector.broadcast %41 : vector<128x1xf32> to vector<128x256xf32>
    %43 = arith.addf %40, %42 : vector<128x256xf32>
    %cst_18 = arith.constant 0.000000e+00 : f32
    %44 = vector.broadcast %cst_18 : f32 to vector<128x256xf32>
    %45 = arith.maximumf %43, %44 : vector<128x256xf32>
    %46 = arith.truncf %45 : vector<128x256xf32> to vector<128x256xbf16>
    %c1 = arith.constant 1 : index
    %c0_19 = arith.constant 0 : index
    %c0_20 = arith.constant 0 : index
    %47 = vector.load %arg5[%c1, %c0_19, %c0_20] : memref<5x128x128xbf16, #tpu.memory_space<vmem>>, vector<1x128x128xbf16>
    %48 = vector.shape_cast %47 : vector<1x128x128xbf16> to vector<128x128xbf16>
    %cst_21 = arith.constant dense<0.000000e+00> : vector<128x256xf32>
    %49 = tpu.matmul %48, %46, %cst_21 {dimension_numbers = #tpu.dot_dimension_numbers<[1], [0], [0], [1], [0, 0, 1, 1], [], []>} : vector<128x128xbf16>, vector<128x256xbf16>, vector<128x256xf32> -> vector<128x256xf32>
    %c0_22 = arith.constant 0 : index
    %c1_23 = arith.constant 1 : index
    %50 = vector.load %arg6[%c0_22, %c1_23] : memref<128x5xf32, #tpu.memory_space<vmem>>, vector<128x1xf32>
    %51 = vector.broadcast %50 : vector<128x1xf32> to vector<128x256xf32>
    %52 = arith.addf %49, %51 : vector<128x256xf32>
    %cst_24 = arith.constant 0.000000e+00 : f32
    %53 = vector.broadcast %cst_24 : f32 to vector<128x256xf32>
    %54 = arith.maximumf %52, %53 : vector<128x256xf32>
    %55 = arith.truncf %54 : vector<128x256xf32> to vector<128x256xbf16>
    %c1_25 = arith.constant 1 : index
    %c0_26 = arith.constant 0 : index
    %c0_27 = arith.constant 0 : index
    %56 = vector.load %arg7[%c1_25, %c0_26, %c0_27] : memref<5x128x128xbf16, #tpu.memory_space<vmem>>, vector<1x128x128xbf16>
    %57 = vector.shape_cast %56 : vector<1x128x128xbf16> to vector<128x128xbf16>
    %cst_28 = arith.constant dense<0.000000e+00> : vector<128x256xf32>
    %58 = tpu.matmul %57, %55, %cst_28 {dimension_numbers = #tpu.dot_dimension_numbers<[1], [0], [0], [1], [0, 0, 1, 1], [], []>} : vector<128x128xbf16>, vector<128x256xbf16>, vector<128x256xf32> -> vector<128x256xf32>
    %59 = arith.addf %43, %58 : vector<128x256xf32>
    %60 = vector.extract_strided_slice %4 {offsets = [0, 2], sizes = [128, 1], strides = [1, 1]} : vector<128x6xf32> to vector<128x1xf32>
    %61 = vector.broadcast %60 : vector<128x1xf32> to vector<128x256xf32>
    %62 = arith.addf %59, %61 : vector<128x256xf32>
    %cst_29 = arith.constant 0.000000e+00 : f32
    %63 = vector.broadcast %cst_29 : f32 to vector<128x256xf32>
    %64 = arith.maximumf %62, %63 : vector<128x256xf32>
    %65 = arith.truncf %64 : vector<128x256xf32> to vector<128x256xbf16>
    %c2 = arith.constant 2 : index
    %c0_30 = arith.constant 0 : index
    %c0_31 = arith.constant 0 : index
    %66 = vector.load %arg5[%c2, %c0_30, %c0_31] : memref<5x128x128xbf16, #tpu.memory_space<vmem>>, vector<1x128x128xbf16>
    %67 = vector.shape_cast %66 : vector<1x128x128xbf16> to vector<128x128xbf16>
    %cst_32 = arith.constant dense<0.000000e+00> : vector<128x256xf32>
    %68 = tpu.matmul %67, %65, %cst_32 {dimension_numbers = #tpu.dot_dimension_numbers<[1], [0], [0], [1], [0, 0, 1, 1], [], []>} : vector<128x128xbf16>, vector<128x256xbf16>, vector<128x256xf32> -> vector<128x256xf32>
    %c0_33 = arith.constant 0 : index
    %c2_34 = arith.constant 2 : index
    %69 = vector.load %arg6[%c0_33, %c2_34] : memref<128x5xf32, #tpu.memory_space<vmem>>, vector<128x1xf32>
    %70 = vector.broadcast %69 : vector<128x1xf32> to vector<128x256xf32>
    %71 = arith.addf %68, %70 : vector<128x256xf32>
    %cst_35 = arith.constant 0.000000e+00 : f32
    %72 = vector.broadcast %cst_35 : f32 to vector<128x256xf32>
    %73 = arith.maximumf %71, %72 : vector<128x256xf32>
    %74 = arith.truncf %73 : vector<128x256xf32> to vector<128x256xbf16>
    %c2_36 = arith.constant 2 : index
    %c0_37 = arith.constant 0 : index
    %c0_38 = arith.constant 0 : index
    %75 = vector.load %arg7[%c2_36, %c0_37, %c0_38] : memref<5x128x128xbf16, #tpu.memory_space<vmem>>, vector<1x128x128xbf16>
    %76 = vector.shape_cast %75 : vector<1x128x128xbf16> to vector<128x128xbf16>
    %cst_39 = arith.constant dense<0.000000e+00> : vector<128x256xf32>
    %77 = tpu.matmul %76, %74, %cst_39 {dimension_numbers = #tpu.dot_dimension_numbers<[1], [0], [0], [1], [0, 0, 1, 1], [], []>} : vector<128x128xbf16>, vector<128x256xbf16>, vector<128x256xf32> -> vector<128x256xf32>
    %78 = arith.addf %62, %77 : vector<128x256xf32>
    %79 = vector.extract_strided_slice %4 {offsets = [0, 3], sizes = [128, 1], strides = [1, 1]} : vector<128x6xf32> to vector<128x1xf32>
    %80 = vector.broadcast %79 : vector<128x1xf32> to vector<128x256xf32>
    %81 = arith.addf %78, %80 : vector<128x256xf32>
    %cst_40 = arith.constant 0.000000e+00 : f32
    %82 = vector.broadcast %cst_40 : f32 to vector<128x256xf32>
    %83 = arith.maximumf %81, %82 : vector<128x256xf32>
    %84 = arith.truncf %83 : vector<128x256xf32> to vector<128x256xbf16>
    %c3 = arith.constant 3 : index
    %c0_41 = arith.constant 0 : index
    %c0_42 = arith.constant 0 : index
    %85 = vector.load %arg5[%c3, %c0_41, %c0_42] : memref<5x128x128xbf16, #tpu.memory_space<vmem>>, vector<1x128x128xbf16>
    %86 = vector.shape_cast %85 : vector<1x128x128xbf16> to vector<128x128xbf16>
    %cst_43 = arith.constant dense<0.000000e+00> : vector<128x256xf32>
    %87 = tpu.matmul %86, %84, %cst_43 {dimension_numbers = #tpu.dot_dimension_numbers<[1], [0], [0], [1], [0, 0, 1, 1], [], []>} : vector<128x128xbf16>, vector<128x256xbf16>, vector<128x256xf32> -> vector<128x256xf32>
    %c0_44 = arith.constant 0 : index
    %c3_45 = arith.constant 3 : index
    %88 = vector.load %arg6[%c0_44, %c3_45] : memref<128x5xf32, #tpu.memory_space<vmem>>, vector<128x1xf32>
    %89 = vector.broadcast %88 : vector<128x1xf32> to vector<128x256xf32>
    %90 = arith.addf %87, %89 : vector<128x256xf32>
    %cst_46 = arith.constant 0.000000e+00 : f32
    %91 = vector.broadcast %cst_46 : f32 to vector<128x256xf32>
    %92 = arith.maximumf %90, %91 : vector<128x256xf32>
    %93 = arith.truncf %92 : vector<128x256xf32> to vector<128x256xbf16>
    %c3_47 = arith.constant 3 : index
    %c0_48 = arith.constant 0 : index
    %c0_49 = arith.constant 0 : index
    %94 = vector.load %arg7[%c3_47, %c0_48, %c0_49] : memref<5x128x128xbf16, #tpu.memory_space<vmem>>, vector<1x128x128xbf16>
    %95 = vector.shape_cast %94 : vector<1x128x128xbf16> to vector<128x128xbf16>
    %cst_50 = arith.constant dense<0.000000e+00> : vector<128x256xf32>
    %96 = tpu.matmul %95, %93, %cst_50 {dimension_numbers = #tpu.dot_dimension_numbers<[1], [0], [0], [1], [0, 0, 1, 1], [], []>} : vector<128x128xbf16>, vector<128x256xbf16>, vector<128x256xf32> -> vector<128x256xf32>
    %97 = arith.addf %81, %96 : vector<128x256xf32>
    %98 = vector.extract_strided_slice %4 {offsets = [0, 4], sizes = [128, 1], strides = [1, 1]} : vector<128x6xf32> to vector<128x1xf32>
    %99 = vector.broadcast %98 : vector<128x1xf32> to vector<128x256xf32>
    %100 = arith.addf %97, %99 : vector<128x256xf32>
    %cst_51 = arith.constant 0.000000e+00 : f32
    %101 = vector.broadcast %cst_51 : f32 to vector<128x256xf32>
    %102 = arith.maximumf %100, %101 : vector<128x256xf32>
    %103 = arith.truncf %102 : vector<128x256xf32> to vector<128x256xbf16>
    %c4 = arith.constant 4 : index
    %c0_52 = arith.constant 0 : index
    %c0_53 = arith.constant 0 : index
    %104 = vector.load %arg5[%c4, %c0_52, %c0_53] : memref<5x128x128xbf16, #tpu.memory_space<vmem>>, vector<1x128x128xbf16>
    %105 = vector.shape_cast %104 : vector<1x128x128xbf16> to vector<128x128xbf16>
    %cst_54 = arith.constant dense<0.000000e+00> : vector<128x256xf32>
    %106 = tpu.matmul %105, %103, %cst_54 {dimension_numbers = #tpu.dot_dimension_numbers<[1], [0], [0], [1], [0, 0, 1, 1], [], []>} : vector<128x128xbf16>, vector<128x256xbf16>, vector<128x256xf32> -> vector<128x256xf32>
    %c0_55 = arith.constant 0 : index
    %c4_56 = arith.constant 4 : index
    %107 = vector.load %arg6[%c0_55, %c4_56] : memref<128x5xf32, #tpu.memory_space<vmem>>, vector<128x1xf32>
    %108 = vector.broadcast %107 : vector<128x1xf32> to vector<128x256xf32>
    %109 = arith.addf %106, %108 : vector<128x256xf32>
    %cst_57 = arith.constant 0.000000e+00 : f32
    %110 = vector.broadcast %cst_57 : f32 to vector<128x256xf32>
    %111 = arith.maximumf %109, %110 : vector<128x256xf32>
    %112 = arith.truncf %111 : vector<128x256xf32> to vector<128x256xbf16>
    %c4_58 = arith.constant 4 : index
    %c0_59 = arith.constant 0 : index
    %c0_60 = arith.constant 0 : index
    %113 = vector.load %arg7[%c4_58, %c0_59, %c0_60] : memref<5x128x128xbf16, #tpu.memory_space<vmem>>, vector<1x128x128xbf16>
    %114 = vector.shape_cast %113 : vector<1x128x128xbf16> to vector<128x128xbf16>
    %cst_61 = arith.constant dense<0.000000e+00> : vector<128x256xf32>
    %115 = tpu.matmul %114, %112, %cst_61 {dimension_numbers = #tpu.dot_dimension_numbers<[1], [0], [0], [1], [0, 0, 1, 1], [], []>} : vector<128x128xbf16>, vector<128x256xbf16>, vector<128x256xf32> -> vector<128x256xf32>
    %116 = arith.addf %100, %115 : vector<128x256xf32>
    %117 = vector.extract_strided_slice %4 {offsets = [0, 5], sizes = [128, 1], strides = [1, 1]} : vector<128x6xf32> to vector<128x1xf32>
    %118 = vector.broadcast %117 : vector<128x1xf32> to vector<128x256xf32>
    %119 = arith.addf %116, %118 : vector<128x256xf32>
    %cst_62 = arith.constant 0.000000e+00 : f32
    %120 = vector.broadcast %cst_62 : f32 to vector<128x256xf32>
    %121 = arith.maximumf %119, %120 : vector<128x256xf32>
    %122 = arith.truncf %121 : vector<128x256xf32> to vector<128x256xbf16>
    %c0_63 = arith.constant 0 : index
    %c0_64 = arith.constant 0 : index
    %123 = vector.load %arg8[%c0_63, %c0_64] : memref<4x128xbf16, #tpu.memory_space<vmem>>, vector<4x128xbf16>
    %cst_65 = arith.constant dense<0.000000e+00> : vector<4x256xf32>
    %124 = tpu.matmul %123, %122, %cst_65 {dimension_numbers = #tpu.dot_dimension_numbers<[1], [0], [0], [1], [0, 0, 1, 1], [], []>} : vector<4x128xbf16>, vector<128x256xbf16>, vector<4x256xf32> -> vector<4x256xf32>
    %c0_66 = arith.constant 0 : index
    %c0_67 = arith.constant 0 : index
    %125 = vector.load %arg9[%c0_66, %c0_67] : memref<4x1xf32, #tpu.memory_space<vmem>>, vector<4x1xf32>
    %126 = vector.broadcast %125 : vector<4x1xf32> to vector<4x256xf32>
    %127 = arith.addf %124, %126 : vector<4x256xf32>
    %128 = tpu.iota {dimensions = array<i32: 0>} : vector<4x256xi32>
    %c0_i32 = arith.constant 0 : i32
    %129 = vector.broadcast %c0_i32 : i32 to vector<4x256xi32>
    %130 = arith.cmpi eq, %128, %129 : vector<4x256xi32>
    %131 = arith.negf %127 : vector<4x256xf32>
    %132 = math.exp %131 : vector<4x256xf32>
    %cst_68 = arith.constant 1.000000e+00 : f32
    %133 = vector.broadcast %cst_68 : f32 to vector<4x256xf32>
    %134 = arith.addf %133, %132 : vector<4x256xf32>
    %135 = arith.divf %133, %134 : vector<4x256xf32>
    %136 = arith.select %130, %127, %135 : vector<4x256xi1>, vector<4x256xf32>
    %c0_69 = arith.constant 0 : index
    %c0_70 = arith.constant 0 : index
    %c0_71 = arith.constant 0 : index
    %137 = vector.load %arg10[%c0_69, %c0_70, %c0_71] : memref<1x4x256xf32, #tpu.memory_space<vmem>>, vector<1x4x256xf32>
    %138 = vector.shape_cast %137 : vector<1x4x256xf32> to vector<4x256xf32>
    %139 = vector.shape_cast %136 : vector<4x256xf32> to vector<1x4x256xf32>
    tpu.vector_store %arg10[%c0_69, %c0_70, %c0_71], %139 {strides = array<i32>} : memref<1x4x256xf32, #tpu.memory_space<vmem>>, vector<1x4x256xf32>,
    return
  }
  func.func @transform_0(%arg0: i32, %arg1: i32) -> (i32, i32, i32) {
    %c0_i32 = arith.constant 0 : i32
    %c0_i32_0 = arith.constant 0 : i32
    return %arg0, %c0_i32, %arg1 : i32, i32, i32
  }
  func.func @transform_1(%arg0: i32, %arg1: i32) -> (i32, i32, i32) {
    %c0_i32 = arith.constant 0 : i32
    %c0_i32_0 = arith.constant 0 : i32
    %c0_i32_1 = arith.constant 0 : i32
    return %arg0, %c0_i32, %c0_i32_0 : i32, i32, i32
  }
  func.func @transform_2(%arg0: i32, %arg1: i32) -> (i32, i32) {
    %c0_i32 = arith.constant 0 : i32
    %c0_i32_0 = arith.constant 0 : i32
    %c0_i32_1 = arith.constant 0 : i32
    return %c0_i32, %c0_i32_0 : i32, i32
  }
  func.func @transform_3(%arg0: i32, %arg1: i32) -> (i32, i32, i32) {
    %c0_i32 = arith.constant 0 : i32
    %c0_i32_0 = arith.constant 0 : i32
    %c0_i32_1 = arith.constant 0 : i32
    %c0_i32_2 = arith.constant 0 : i32
    return %c0_i32, %c0_i32_0, %c0_i32_1 : i32, i32, i32
  }
  func.func @transform_4(%arg0: i32, %arg1: i32) -> (i32, i32) {
    %c0_i32 = arith.constant 0 : i32
    %c0_i32_0 = arith.constant 0 : i32
    %c0_i32_1 = arith.constant 0 : i32
    return %c0_i32, %c0_i32_0 : i32, i32
  }
  func.func @transform_5(%arg0: i32, %arg1: i32) -> (i32, i32, i32) {
    %c0_i32 = arith.constant 0 : i32
    %c0_i32_0 = arith.constant 0 : i32
    %c0_i32_1 = arith.constant 0 : i32
    %c0_i32_2 = arith.constant 0 : i32
    return %c0_i32, %c0_i32_0, %c0_i32_1 : i32, i32, i32
  }
  func.func @transform_6(%arg0: i32, %arg1: i32) -> (i32, i32) {
    %c0_i32 = arith.constant 0 : i32
    %c0_i32_0 = arith.constant 0 : i32
    %c0_i32_1 = arith.constant 0 : i32
    return %c0_i32, %c0_i32_0 : i32, i32
  }
  func.func @transform_7(%arg0: i32, %arg1: i32) -> (i32, i32) {
    %c0_i32 = arith.constant 0 : i32
    %c0_i32_0 = arith.constant 0 : i32
    %c0_i32_1 = arith.constant 0 : i32
    return %c0_i32, %c0_i32_0 : i32, i32
  }
  func.func @transform_8(%arg0: i32, %arg1: i32) -> (i32, i32, i32) {
    %c0_i32 = arith.constant 0 : i32
    %c0_i32_0 = arith.constant 0 : i32
    return %arg0, %c0_i32, %arg1 : i32, i32, i32
  }
}

</mosaic_0001>

<llo_original>
// kernel: occupancy_forward.1
$region0: #{occupancy_forward.1}
  #allocation0 [shape = 'u32[]', space=smem, size = 0x4, offset = 0x4, fixed_abs, tag = 'smem constant byte address 0x4 - core index']
  #allocation1 [shape = 'u32[144,128]{1,0:T(1,128)}', space=vmem, size = 0x12000, scoped, tag = 'internal scratch']
  %s0 = inlined_call_operand.vmem [shape: f32[2,3,256], index: 0, kind: input, shape index: {}]
  %s1 = inlined_call_operand.vmem [shape: f32[2,128,6], index: 1, kind: input, shape index: {}]
  %s2 = inlined_call_operand.vmem [shape: f32[128,3], index: 2, kind: input, shape index: {}]
  %s3 = inlined_call_operand.vmem [shape: bf16[5,128,128], index: 3, kind: input, shape index: {}]
  %s4 = inlined_call_operand.vmem [shape: f32[128,5], index: 4, kind: input, shape index: {}]
  %s5 = inlined_call_operand.vmem [shape: bf16[5,128,128], index: 5, kind: input, shape index: {}]
  %s6 = inlined_call_operand.vmem [shape: bf16[4,128], index: 6, kind: input, shape index: {}]
  %s7 = inlined_call_operand.vmem [shape: f32[4,1], index: 7, kind: input, shape index: {}]
  %s8 = inlined_call_operand.vmem [shape: f32[2,4,256], index: 8, kind: output, shape index: {}]
  %s9 = sld [smem:[#allocation0]]
  $region65: #{occupancy_forward.1} parent=0
    _
  %s11 = ssub.s32 1, %s9
  %s12 = scalar_select 0, %s11, %s9
  loop: start=0, step=1, limit=4
  $region2: #{occupancy_forward.1} parent=0 // loop_pre_header
    _
  $region3: #{occupancy_forward.1} parent=0 // loop_header
    %s14 = sphi 0, %s18
    %p15 = scmp.ge.s32.totalorder %s14, 4
    %s21 = sphi 0, %s33
    %s22 = sphi 0, %s29
    %s23 = sphi 0, %s21
    %s24 = sphi 0, %s22
    %s25 = sphi 0, %s23
    %s26 = sphi 0, %s24
    %s38 = sphi 0, %s40
    %s41 = sphi 0, %s38
    %s42 = sphi 0, %s41
    %s58 = sphi 0, %s42
    %s64 = sphi 0, %s66
    %s67 = sphi 0, %s64
    %s68 = sphi 0, %s67
    %s84 = sphi 0, %s68
    %s88 = sphi 0, %s88
    %s90 = sphi 0, %s88
    %s91 = sphi 0, %s90
    %s105 = sphi 0, %s91
    %s109 = sphi 0, %s109
    %s111 = sphi 0, %s109
    %s112 = sphi 0, %s111
    %s126 = sphi 0, %s112
    %s130 = sphi 0, %s130
    %s132 = sphi 0, %s130
    %s133 = sphi 0, %s132
    %s147 = sphi 0, %s133
    %s151 = sphi 0, %s151
    %s153 = sphi 0, %s151
    %s154 = sphi 0, %s153
    %s168 = sphi 0, %s154
    %s172 = sphi 0, %s172
    %s174 = sphi 0, %s172
    %s175 = sphi 0, %s174
    %s189 = sphi 0, %s175
    %s193 = sphi 0, %s193
    %s195 = sphi 0, %s193
    %s196 = sphi 0, %s195
    %s210 = sphi 0, %s196
    %s218 = sphi 0, %s220
    %s221 = sphi 0, %s218
    %s222 = sphi 0, %s221
    %s238 = sphi 0, %s222
  $region4: #{occupancy_forward.1} parent=0 // loop_header_branch
    %17 = sbr.rel (%p15) target = $region8
  $region5: #{occupancy_forward.1} parent=0 // loop_body
    %s19 = ssub.s32 %s14, 1
    %s20 = ssub.s32 %s14, 2
    %s27 = sadd.s32 1, %s22
    %p28 = scmp.ge.s32.totalorder %s27, 1
    %s29 = scalar_select %p28, 0, %s27
    %s30 = sadd.s32 1, %s21
    %s31 = scalar_select %p28, %s30, %s21
    %p32 = scmp.ge.s32.totalorder %s31, 2
    %s33 = scalar_select %p32, 0, %s31
    %s34 = ssub.s32 %s21, %s33
    %s35 = ssub.s32 %s22, %s29
    %s36 = sor.u32 %s34, %s35
    %p37 = scmp.eq.s32.totalorder %s36, 0
    %s39 = sadd.s32 %s38, 1
    %s40 = scalar_select %p37, %s38, %s39
    %p43 = pneg %p37
    %p44 = scmp.eq.s32.totalorder %s14, 1
    %p45 = por %p43, %p44
    %p46 = scmp.ne.s32.totalorder %s38, %s41
    %p47 = scmp.eq.s32.totalorder %s14, 0
    %p48 = por %p46, %p47
    %p49 = scmp.ne.s32.totalorder %s38, %s41
    %p50 = scmp.eq.s32.totalorder %s19, 1
    %p51 = por %p49, %p50
    %p52 = scmp.ne.s32.totalorder %s41, %s42
    %p53 = scmp.eq.s32.totalorder %s19, 0
    %p54 = por %p52, %p53
    %p55 = scmp.ne.s32.totalorder %s41, %s42
    %p56 = scmp.eq.s32.totalorder %s20, 1
    %p57 = por %p55, %p56
    %p59 = scmp.ne.s32.totalorder %s42, %s58
    %p60 = scmp.eq.s32.totalorder %s20, 0
    %p61 = por %p59, %p60
    %s62 = ssub.s32 %s21, %s33
    %p63 = scmp.eq.s32.totalorder %s62, 0
    %s65 = sadd.s32 %s64, 1
    %s66 = scalar_select %p63, %s64, %s65
    %p69 = pneg %p63
    %p70 = scmp.eq.s32.totalorder %s14, 1
    %p71 = por %p69, %p70
    %p72 = scmp.ne.s32.totalorder %s64, %s67
    %p73 = scmp.eq.s32.totalorder %s14, 0
    %p74 = por %p72, %p73
    %p75 = scmp.ne.s32.totalorder %s64, %s67
    %p76 = scmp.eq.s32.totalorder %s19, 1
    %p77 = por %p75, %p76
    %p78 = scmp.ne.s32.totalorder %s67, %s68
    %p79 = scmp.eq.s32.totalorder %s19, 0
    %p80 = por %p78, %p79
    %p81 = scmp.ne.s32.totalorder %s67, %s68
    %p82 = scmp.eq.s32.totalorder %s20, 1
    %p83 = por %p81, %p82
    %p85 = scmp.ne.s32.totalorder %s68, %s84
    %p86 = scmp.eq.s32.totalorder %s20, 0
    %p87 = por %p85, %p86
    %s89 = sadd.s32 %s88, 1
    %p92 = scmp.eq.s32.totalorder %s14, 1
    %p93 = scmp.ne.s32.totalorder %s88, %s90
    %p94 = scmp.eq.s32.totalorder %s14, 0
    %p95 = por %p93, %p94
    %p96 = scmp.ne.s32.totalorder %s88, %s90
    %p97 = scmp.eq.s32.totalorder %s19, 1
    %p98 = por %p96, %p97
    %p99 = scmp.ne.s32.totalorder %s90, %s91
    %p100 = scmp.eq.s32.totalorder %s19, 0
    %p101 = por %p99, %p100
    %p102 = scmp.ne.s32.totalorder %s90, %s91
    %p103 = scmp.eq.s32.totalorder %s20, 1
    %p104 = por %p102, %p103
    %p106 = scmp.ne.s32.totalorder %s91, %s105
    %p107 = scmp.eq.s32.totalorder %s20, 0
    %p108 = por %p106, %p107
    %s110 = sadd.s32 %s109, 1
    %p113 = scmp.eq.s32.totalorder %s14, 1
    %p114 = scmp.ne.s32.totalorder %s109, %s111
    %p115 = scmp.eq.s32.totalorder %s14, 0
    %p116 = por %p114, %p115
    %p117 = scmp.ne.s32.totalorder %s109, %s111
    %p118 = scmp.eq.s32.totalorder %s19, 1
    %p119 = por %p117, %p118
    %p120 = scmp.ne.s32.totalorder %s111, %s112
    %p121 = scmp.eq.s32.totalorder %s19, 0
    %p122 = por %p120, %p121
    %p123 = scmp.ne.s32.totalorder %s111, %s112
    %p124 = scmp.eq.s32.totalorder %s20, 1
    %p125 = por %p123, %p124
    %p127 = scmp.ne.s32.totalorder %s112, %s126
    %p128 = scmp.eq.s32.totalorder %s20, 0
    %p129 = por %p127, %p128
    %s131 = sadd.s32 %s130, 1
    %p134 = scmp.eq.s32.totalorder %s14, 1
    %p135 = scmp.ne.s32.totalorder %s130, %s132
    %p136 = scmp.eq.s32.totalorder %s14, 0
    %p137 = por %p135, %p136
    %p138 = scmp.ne.s32.totalorder %s130, %s132
    %p139 = scmp.eq.s32.totalorder %s19, 1
    %p140 = por %p138, %p139
    %p141 = scmp.ne.s32.totalorder %s132, %s133
    %p142 = scmp.eq.s32.totalorder %s19, 0
    %p143 = por %p141, %p142
    %p144 = scmp.ne.s32.totalorder %s132, %s133
    %p145 = scmp.eq.s32.totalorder %s20, 1
    %p146 = por %p144, %p145
    %p148 = scmp.ne.s32.totalorder %s133, %s147
    %p149 = scmp.eq.s32.totalorder %s20, 0
    %p150 = por %p148, %p149
    %s152 = sadd.s32 %s151, 1
    %p155 = scmp.eq.s32.totalorder %s14, 1
    %p156 = scmp.ne.s32.totalorder %s151, %s153
    %p157 = scmp.eq.s32.totalorder %s14, 0
    %p158 = por %p156, %p157
    %p159 = scmp.ne.s32.totalorder %s151, %s153
    %p160 = scmp.eq.s32.totalorder %s19, 1
    %p161 = por %p159, %p160
    %p162 = scmp.ne.s32.totalorder %s153, %s154
    %p163 = scmp.eq.s32.totalorder %s19, 0
    %p164 = por %p162, %p163
    %p165 = scmp.ne.s32.totalorder %s153, %s154
    %p166 = scmp.eq.s32.totalorder %s20, 1
    %p167 = por %p165, %p166
    %p169 = scmp.ne.s32.totalorder %s154, %s168
    %p170 = scmp.eq.s32.totalorder %s20, 0
    %p171 = por %p169, %p170
    %s173 = sadd.s32 %s172, 1
    %p176 = scmp.eq.s32.totalorder %s14, 1
    %p177 = scmp.ne.s32.totalorder %s172, %s174
    %p178 = scmp.eq.s32.totalorder %s14, 0
    %p179 = por %p177, %p178
    %p180 = scmp.ne.s32.totalorder %s172, %s174
    %p181 = scmp.eq.s32.totalorder %s19, 1
    %p182 = por %p180, %p181
    %p183 = scmp.ne.s32.totalorder %s174, %s175
    %p184 = scmp.eq.s32.totalorder %s19, 0
    %p185 = por %p183, %p184
    %p186 = scmp.ne.s32.totalorder %s174, %s175
    %p187 = scmp.eq.s32.totalorder %s20, 1
    %p188 = por %p186, %p187
    %p190 = scmp.ne.s32.totalorder %s175, %s189
    %p191 = scmp.eq.s32.totalorder %s20, 0
    %p192 = por %p190, %p191
    %s194 = sadd.s32 %s193, 1
    %p197 = scmp.eq.s32.totalorder %s14, 1
    %p198 = scmp.ne.s32.totalorder %s193, %s195
    %p199 = scmp.eq.s32.totalorder %s14, 0
    %p200 = por %p198, %p199
    %p201 = scmp.ne.s32.totalorder %s193, %s195
    %p202 = scmp.eq.s32.totalorder %s19, 1
    %p203 = por %p201, %p202
    %p204 = scmp.ne.s32.totalorder %s195, %s196
    %p205 = scmp.eq.s32.totalorder %s19, 0
    %p206 = por %p204, %p205
    %p207 = scmp.ne.s32.totalorder %s195, %s196
    %p208 = scmp.eq.s32.totalorder %s20, 1
    %p209 = por %p207, %p208
    %p211 = scmp.ne.s32.totalorder %s196, %s210
    %p212 = scmp.eq.s32.totalorder %s20, 0
    %p213 = por %p211, %p212
    %s214 = ssub.s32 %s21, %s33
    %s215 = ssub.s32 %s22, %s29
    %s216 = sor.u32 %s214, %s215
    %p217 = scmp.eq.s32.totalorder %s216, 0
    %s219 = sadd.s32 %s218, 1
    %s220 = scalar_select %p217, %s218, %s219
    %p223 = pneg %p217
    %p224 = scmp.eq.s32.totalorder %s14, 1
    %p225 = por %p223, %p224
    %p226 = scmp.ne.s32.totalorder %s218, %s221
    %p227 = scmp.eq.s32.totalorder %s14, 0
    %p228 = por %p226, %p227
    %p229 = scmp.ne.s32.totalorder %s218, %s221
    %p230 = scmp.eq.s32.totalorder %s19, 1
    %p231 = por %p229, %p230
    %p232 = scmp.ne.s32.totalorder %s221, %s222
    %p233 = scmp.eq.s32.totalorder %s19, 0
    %p234 = por %p232, %p233
    %p235 = scmp.ne.s32.totalorder %s221, %s222
    %p236 = scmp.eq.s32.totalorder %s20, 1
    %p237 = por %p235, %p236
    %p239 = scmp.ne.s32.totalorder %s222, %s238
    %p240 = scmp.eq.s32.totalorder %s20, 0
    %p241 = por %p239, %p240
    %p242 = scmp.le.s32.totalorder 1, %s14
    %p243 = scmp.lt.s32.totalorder %s14, 3
    %p244 = pnand %p242, %p243
    %p245 = pneg %p244
    // Predicated region
    $region9: #{occupancy_forward.1} parent=5 // pred_check
      _
    $region10: #{occupancy_forward.1} parent=5 // pred_check_branch
      %247 = sbr.rel (%p244) target = $region12
    $region11: #{occupancy_forward.1} parent=5 // pred_region
      %s248 = ssub.s32 %s14, 1
      // Predicated region
      $region13: #{occupancy_forward.1} parent=11 // pred_check
        %p249 = pneg %p101
      $region14: #{occupancy_forward.1} parent=11 // pred_check_branch
        %251 = sbr.rel (%p249) target = $region16
      $region15: #{occupancy_forward.1} parent=11 // pred_region
        _
      $region16: #{occupancy_forward.1} parent=11 // pred_fallthru
        _
      // Predicated region
      $region17: #{occupancy_forward.1} parent=11 // pred_check
        %p252 = pneg %p122
      $region18: #{occupancy_forward.1} parent=11 // pred_check_branch
        %254 = sbr.rel (%p252) target = $region20
      $region19: #{occupancy_forward.1} parent=11 // pred_region
        _
      $region20: #{occupancy_forward.1} parent=11 // pred_fallthru
        _
      // Predicated region
      $region21: #{occupancy_forward.1} parent=11 // pred_check
        %p255 = pneg %p143
      $region22: #{occupancy_forward.1} parent=11 // pred_check_branch
        %257 = sbr.rel (%p255) target = $region24
      $region23: #{occupancy_forward.1} parent=11 // pred_region
        _
      $region24: #{occupancy_forward.1} parent=11 // pred_fallthru
        _
      // Predicated region
      $region25: #{occupancy_forward.1} parent=11 // pred_check
        %p258 = pneg %p164
      $region26: #{occupancy_forward.1} parent=11 // pred_check_branch
        %260 = sbr.rel (%p258) target = $region28
      $region27: #{occupancy_forward.1} parent=11 // pred_region
        _
      $region28: #{occupancy_forward.1} parent=11 // pred_fallthru
        _
      // Predicated region
      $region29: #{occupancy_forward.1} parent=11 // pred_check
        %p261 = pneg %p185
      $region30: #{occupancy_forward.1} parent=11 // pred_check_branch
        %263 = sbr.rel (%p261) target = $region32
      $region31: #{occupancy_forward.1} parent=11 // pred_region
        _
      $region32: #{occupancy_forward.1} parent=11 // pred_fallthru
        _
      // Predicated region
      $region33: #{occupancy_forward.1} parent=11 // pred_check
        %p264 = pneg %p206
      $region34: #{occupancy_forward.1} parent=11 // pred_check_branch
        %266 = sbr.rel (%p264) target = $region36
      $region35: #{occupancy_forward.1} parent=11 // pred_region
        _
      $region36: #{occupancy_forward.1} parent=11 // pred_fallthru
        _
    $region12: #{occupancy_forward.1} parent=5 // pred_fallthru
      _
    %p267 = scmp.lt.s32.totalorder %s14, 2
    // Predicated region
    $region37: #{occupancy_forward.1} parent=5 // pred_check
      %p268 = pneg %p267
    $region38: #{occupancy_forward.1} parent=5 // pred_check_branch
      %270 = sbr.rel (%p268) target = $region40
    $region39: #{occupancy_forward.1} parent=5 // pred_region
      // Predicated region
      $region41: #{occupancy_forward.1} parent=39 // pred_check
        %p271 = pneg %p48
      $region42: #{occupancy_forward.1} parent=39 // pred_check_branch
        %273 = sbr.rel (%p271) target = $region44
      $region43: #{occupancy_forward.1} parent=39 // pred_region
        %s274 = smul.u32 2, %s22
        %p275 = scmp.lt.s32.totalorder %s21, 1
        %s276 = scalar_select %p275, %s21, 1
        %p277 = scmp.lt.s32.totalorder %s274, 1
        %s278 = scalar_select %p277, %s274, 1
        %s279 = smul.addr %s276, 2
        %s280 = sadd.s32 %s278, %s279
        %s281 = smul.addr %s280, 4
        %s282 = scalar_lea.vmem %s0, %s281
        %s283 = smul.u32 2, %s22
      $region44: #{occupancy_forward.1} parent=39 // pred_fallthru
        _
      // Predicated region
      $region45: #{occupancy_forward.1} parent=39 // pred_check
        %p284 = pneg %p74
      $region46: #{occupancy_forward.1} parent=39 // pred_check_branch
        %286 = sbr.rel (%p284) target = $region48
      $region47: #{occupancy_forward.1} parent=39 // pred_region
        %p287 = scmp.lt.s32.totalorder %s21, 1
        %s288 = scalar_select %p287, %s21, 1
        %s289 = smul.addr %s288, 16
        %s290 = smul.addr %s289, 8
        %s291 = scalar_lea.vmem %s1, %s290
      $region48: #{occupancy_forward.1} parent=39 // pred_fallthru
        _
    $region40: #{occupancy_forward.1} parent=5 // pred_fallthru
      _
    %p292 = scmp.le.s32.totalorder 1, %s14
    %p293 = scmp.lt.s32.totalorder %s14, 3
    %p294 = pnand %p292, %p293
    %p295 = pneg %p294
    // Predicated region
    $region49: #{occupancy_forward.1} parent=5 // pred_check
      _
    $region50: #{occupancy_forward.1} parent=5 // pred_check_branch
      %297 = sbr.rel (%p294) target = $region52
    $region51: #{occupancy_forward.1} parent=5 // pred_region
      %s298 = ssub.s32 %s14, 1
      %s299 = smul.u32 2, %s24
      %p300 = scmp.lt.s32.totalorder %s23, 1
      %s301 = scalar_select %p300, %s23, 1
      %p302 = scmp.lt.s32.totalorder %s299, 1
      %s303 = scalar_select %p302, %s299, 1
      %s304 = smul.addr %s301, 2
      %s305 = sadd.s32 %s303, %s304
      %s306 = smul.addr %s305, 4
      %s307 = scalar_lea.vmem %s0, %s306
      %p308 = pneg %p54
      %p309 = pneg %p51
      %p310 = scmp.lt.s32.totalorder %s23, 1
      %s311 = scalar_select %p310, %s23, 1
      %s312 = smul.addr %s311, 16
      %s313 = smul.addr %s312, 8
      %s314 = scalar_lea.vmem %s1, %s313
      %p315 = pneg %p80
      %p316 = pneg %p77
      %p317 = pneg %p101
      %p318 = pneg %p98
      %p319 = pneg %p122
      %p320 = pneg %p119
      %p321 = pneg %p143
      %p322 = pneg %p140
      %p323 = pneg %p164
      %p324 = pneg %p161
      %p325 = pneg %p185
      %p326 = pneg %p182
      %p327 = pneg %p206
      %p328 = pneg %p203
      %p329 = pneg %p234
      %p330 = pneg %p231
      %s331 = smul.u32 2, %s24
      %p332 = scmp.lt.s32.totalorder %s23, 1
      %s333 = scalar_select %p332, %s23, 1
      %p334 = scmp.lt.s32.totalorder %s331, 1
      %s335 = scalar_select %p334, %s331, 1
      %s336 = smul.addr %s333, 2
      %s337 = sadd.s32 %s335, %s336
      %s338 = smul.addr %s337, 4
      %s339 = scalar_lea.vmem %s8, %s338
      %s340 = smul.u32 2, %s24
      %p341 = scmp.lt.s32.totalorder %s23, 1
      %s342 = scalar_select %p341, %s23, 1
      %p343 = scmp.lt.s32.totalorder %s340, 1
      %s344 = scalar_select %p343, %s340, 1
      %s345 = smul.addr %s342, 2
      %s346 = sadd.s32 %s344, %s345
      %s347 = smul.addr %s346, 4
      %s348 = scalar_lea.vmem %s0, %s347
      %s349 = smul.u32 2, %s24
      %p350 = scmp.lt.s32.totalorder %s23, 1
      %s351 = scalar_select %p350, %s23, 1
      %s352 = smul.addr %s351, 16
      %s353 = smul.addr %s352, 8
      %s354 = scalar_lea.vmem %s1, %s353
      %s355 = smul.u32 2, %s24
      %p356 = scmp.lt.s32.totalorder %s23, 1
      %s357 = scalar_select %p356, %s23, 1
      %p358 = scmp.lt.s32.totalorder %s355, 1
      %s359 = scalar_select %p358, %s355, 1
      %s360 = smul.addr %s357, 2
      %s361 = sadd.s32 %s359, %s360
      %s362 = smul.addr %s361, 4
      %s363 = scalar_lea.vmem %s8, %s362
      %s364 = smul.u32 2, %s24
      %v366 = vld [vmem:[%s348] sm:$0x77]
      %v367 = vld [vmem:[%s2] sm:$0xff]
      %v368 = vld [vmem:[%s2 + $0x8] sm:$0xff]
      %v369 = vld [vmem:[%s2 + $0x10] sm:$0xff]
      %v370 = vld [vmem:[%s2 + $0x18] sm:$0xff]
      %v371 = vld [vmem:[%s2 + $0x20] sm:$0xff]
      %v372 = vld [vmem:[%s2 + $0x28] sm:$0xff]
      %v373 = vld [vmem:[%s2 + $0x30] sm:$0xff]
      %v374 = vld [vmem:[%s2 + $0x38] sm:$0xff]
      %v375 = vld [vmem:[%s2 + $0x40] sm:$0xff]
      %v376 = vld [vmem:[%s2 + $0x48] sm:$0xff]
      %v377 = vld [vmem:[%s2 + $0x50] sm:$0xff]
      %v378 = vld [vmem:[%s2 + $0x58] sm:$0xff]
      %v379 = vld [vmem:[%s2 + $0x60] sm:$0xff]
      %v380 = vld [vmem:[%s2 + $0x68] sm:$0xff]
      %v381 = vld [vmem:[%s2 + $0x70] sm:$0xff]
      %v382 = vld [vmem:[%s2 + $0x78] sm:$0xff]
      %v383 = vld [vmem:[%s354] sm:$0xff]
      %v384 = vld [vmem:[%s354 + $0x8] sm:$0xff]
      %v385 = vld [vmem:[%s354 + $0x10] sm:$0xff]
      %v386 = vld [vmem:[%s354 + $0x18] sm:$0xff]
      %v387 = vld [vmem:[%s354 + $0x20] sm:$0xff]
      %v388 = vld [vmem:[%s354 + $0x28] sm:$0xff]
      %v389 = vld [vmem:[%s354 + $0x30] sm:$0xff]
      %v390 = vld [vmem:[%s354 + $0x38] sm:$0xff]
      %v391 = vld [vmem:[%s354 + $0x40] sm:$0xff]
      %v392 = vld [vmem:[%s354 + $0x48] sm:$0xff]
      %v393 = vld [vmem:[%s354 + $0x50] sm:$0xff]
      %v394 = vld [vmem:[%s354 + $0x58] sm:$0xff]
      %v395 = vld [vmem:[%s354 + $0x60] sm:$0xff]
      %v396 = vld [vmem:[%s354 + $0x68] sm:$0xff]
      %v397 = vld [vmem:[%s354 + $0x70] sm:$0xff]
      %v398 = vld [vmem:[%s354 + $0x78] sm:$0xff]
      %400 = vset.pattern.permute.xlu0 0
      %401 = vperm.xlu0 %400, %v367
      %v402 = vpop.permute.xlu0 %401
      %405 = vset.pattern.permute.xlu0 0
      %406 = vperm.xlu0 %405, %v368
      %v407 = vpop.permute.xlu0 %406
      %410 = vset.pattern.permute.xlu0 0
      %411 = vperm.xlu0 %410, %v369
      %v412 = vpop.permute.xlu0 %411
      %415 = vset.pattern.permute.xlu0 0
      %416 = vperm.xlu0 %415, %v370
      %v417 = vpop.permute.xlu0 %416
      %420 = vset.pattern.permute.xlu0 0
      %421 = vperm.xlu0 %420, %v371
      %v422 = vpop.permute.xlu0 %421
      %425 = vset.pattern.permute.xlu0 0
      %426 = vperm.xlu0 %425, %v372
      %v427 = vpop.permute.xlu0 %426
      %430 = vset.pattern.permute.xlu0 0
      %431 = vperm.xlu0 %430, %v373
      %v432 = vpop.permute.xlu0 %431
      %435 = vset.pattern.permute.xlu0 0
      %436 = vperm.xlu0 %435, %v374
      %v437 = vpop.permute.xlu0 %436
      %440 = vset.pattern.permute.xlu0 0
      %441 = vperm.xlu0 %440, %v375
      %v442 = vpop.permute.xlu0 %441
      %445 = vset.pattern.permute.xlu0 0
      %446 = vperm.xlu0 %445, %v376
      %v447 = vpop.permute.xlu0 %446
      %450 = vset.pattern.permute.xlu0 0
      %451 = vperm.xlu0 %450, %v377
      %v452 = vpop.permute.xlu0 %451
      %455 = vset.pattern.permute.xlu0 0
      %456 = vperm.xlu0 %455, %v378
      %v457 = vpop.permute.xlu0 %456
      %460 = vset.pattern.permute.xlu0 0
      %461 = vperm.xlu0 %460, %v379
      %v462 = vpop.permute.xlu0 %461
      %465 = vset.pattern.permute.xlu0 0
      %466 = vperm.xlu0 %465, %v380
      %v467 = vpop.permute.xlu0 %466
      %470 = vset.pattern.permute.xlu0 0
      %471 = vperm.xlu0 %470, %v381
      %v472 = vpop.permute.xlu0 %471
      %475 = vset.pattern.permute.xlu0 0
      %476 = vperm.xlu0 %475, %v382
      %v477 = vpop.permute.xlu0 %476
      %v480 = vlaneseq
      %v481 = vshrl.u32 %v480, 7
      %v482 = vsub.s32 0, %v481
      %v483 = vrot.slane %v366, %v482
      %v484 = vlaneseq
      %v485 = vshrl.u32 %v484, 7
      %v486 = vsub.s32 4, %v485
      %v487 = vrot.slane %v366, %v486
      %v490 = vlaneseq
      %v491 = vshrl.u32 %v490, 7
      %v492 = vsub.s32 0, %v491
      %v493 = vrot.slane %v483, %v492
      %v494 = vlaneseq
      %v495 = vshrl.u32 %v494, 7
      %v496 = vsub.s32 0, %v495
      %v497 = vrot.slane %v487, %v496
      %v498 = vmul.f32 %v402, %v493
      %v499 = vmul.f32 %v402, %v497
      %v500 = vmul.f32 %v407, %v493
      %v501 = vmul.f32 %v407, %v497
      %v502 = vmul.f32 %v412, %v493
      %v503 = vmul.f32 %v412, %v497
      %v504 = vmul.f32 %v417, %v493
      %v505 = vmul.f32 %v417, %v497
      %v506 = vmul.f32 %v422, %v493
      %v507 = vmul.f32 %v422, %v497
      %v508 = vmul.f32 %v427, %v493
      %v509 = vmul.f32 %v427, %v497
      %v510 = vmul.f32 %v432, %v493
      %v511 = vmul.f32 %v432, %v497
      %v512 = vmul.f32 %v437, %v493
      %v513 = vmul.f32 %v437, %v497
      %v514 = vmul.f32 %v442, %v493
      %v515 = vmul.f32 %v442, %v497
      %v516 = vmul.f32 %v447, %v493
      %v517 = vmul.f32 %v447, %v497
      %v518 = vmul.f32 %v452, %v493
      %v519 = vmul.f32 %v452, %v497
      %v520 = vmul.f32 %v457, %v493
      %v521 = vmul.f32 %v457, %v497
      %v522 = vmul.f32 %v462, %v493
      %v523 = vmul.f32 %v462, %v497
      %v524 = vmul.f32 %v467, %v493
      %v525 = vmul.f32 %v467, %v497
      %v526 = vmul.f32 %v472, %v493
      %v527 = vmul.f32 %v472, %v497
      %v528 = vmul.f32 %v477, %v493
      %v529 = vmul.f32 %v477, %v497
      %531 = vset.pattern.permute.xlu0 0
      %532 = vperm.xlu0 %531, %v383
      %v533 = vpop.permute.xlu0 %532
      %536 = vset.pattern.permute.xlu0 0
      %537 = vperm.xlu0 %536, %v384
      %v538 = vpop.permute.xlu0 %537
      %541 = vset.pattern.permute.xlu0 0
      %542 = vperm.xlu0 %541, %v385
      %v543 = vpop.permute.xlu0 %542
      %546 = vset.pattern.permute.xlu0 0
      %547 = vperm.xlu0 %546, %v386
      %v548 = vpop.permute.xlu0 %547
      %551 = vset.pattern.permute.xlu0 0
      %552 = vperm.xlu0 %551, %v387
      %v553 = vpop.permute.xlu0 %552
      %556 = vset.pattern.permute.xlu0 0
      %557 = vperm.xlu0 %556, %v388
      %v558 = vpop.permute.xlu0 %557
      %561 = vset.pattern.permute.xlu0 0
      %562 = vperm.xlu0 %561, %v389
      %v563 = vpop.permute.xlu0 %562
      %566 = vset.pattern.permute.xlu0 0
      %567 = vperm.xlu0 %566, %v390
      %v568 = vpop.permute.xlu0 %567
      %571 = vset.pattern.permute.xlu0 0
      %572 = vperm.xlu0 %571, %v391
      %v573 = vpop.permute.xlu0 %572
      %576 = vset.pattern.permute.xlu0 0
      %577 = vperm.xlu0 %576, %v392
      %v578 = vpop.permute.xlu0 %577
      %581 = vset.pattern.permute.xlu0 0
      %582 = vperm.xlu0 %581, %v393
      %v583 = vpop.permute.xlu0 %582
      %586 = vset.pattern.permute.xlu0 0
      %587 = vperm.xlu0 %586, %v394
      %v588 = vpop.permute.xlu0 %587
      %591 = vset.pattern.permute.xlu0 0
      %592 = vperm.xlu0 %591, %v395
      %v593 = vpop.permute.xlu0 %592
      %596 = vset.pattern.permute.xlu0 0
      %597 = vperm.xlu0 %596, %v396
      %v598 = vpop.permute.xlu0 %597
      %601 = vset.pattern.permute.xlu0 0
      %602 = vperm.xlu0 %601, %v397
      %v603 = vpop.permute.xlu0 %602
      %606 = vset.pattern.permute.xlu0 0
      %607 = vperm.xlu0 %606, %v398
      %v608 = vpop.permute.xlu0 %607
      %v610 = vadd.f32 %v533, %v498
      %v611 = vadd.f32 %v533, %v499
      %v612 = vadd.f32 %v538, %v500
      %v613 = vadd.f32 %v538, %v501
      %v614 = vadd.f32 %v543, %v502
      %v615 = vadd.f32 %v543, %v503
      %v616 = vadd.f32 %v548, %v504
      %v617 = vadd.f32 %v548, %v505
      %v618 = vadd.f32 %v553, %v506
      %v619 = vadd.f32 %v553, %v507
      %v620 = vadd.f32 %v558, %v508
      %v621 = vadd.f32 %v558, %v509
      %v622 = vadd.f32 %v563, %v510
      %v623 = vadd.f32 %v563, %v511
      %v624 = vadd.f32 %v568, %v512
      %v625 = vadd.f32 %v568, %v513
      %v626 = vadd.f32 %v573, %v514
      %v627 = vadd.f32 %v573, %v515
      %v628 = vadd.f32 %v578, %v516
      %v629 = vadd.f32 %v578, %v517
      %v630 = vadd.f32 %v583, %v518
      %v631 = vadd.f32 %v583, %v519
      %v632 = vadd.f32 %v588, %v520
      %v633 = vadd.f32 %v588, %v521
      %v634 = vadd.f32 %v593, %v522
      %v635 = vadd.f32 %v593, %v523
      %v636 = vadd.f32 %v598, %v524
      %v637 = vadd.f32 %v598, %v525
      %v638 = vadd.f32 %v603, %v526
      %v639 = vadd.f32 %v603, %v527
      %v640 = vadd.f32 %v608, %v528
      %v641 = vadd.f32 %v608, %v529
      %642 = vset.pattern.permute.xlu0 1
      %643 = vperm.xlu0 %642, %v367
      %v644 = vpop.permute.xlu0 %643
      %646 = vset.pattern.permute.xlu0 1
      %647 = vperm.xlu0 %646, %v368
      %v648 = vpop.permute.xlu0 %647
      %650 = vset.pattern.permute.xlu0 1
      %651 = vperm.xlu0 %650, %v369
      %v652 = vpop.permute.xlu0 %651
      %654 = vset.pattern.permute.xlu0 1
      %655 = vperm.xlu0 %654, %v370
      %v656 = vpop.permute.xlu0 %655
      %658 = vset.pattern.permute.xlu0 1
      %659 = vperm.xlu0 %658, %v371
      %v660 = vpop.permute.xlu0 %659
      %662 = vset.pattern.permute.xlu0 1
      %663 = vperm.xlu0 %662, %v372
      %v664 = vpop.permute.xlu0 %663
      %666 = vset.pattern.permute.xlu0 1
      %667 = vperm.xlu0 %666, %v373
      %v668 = vpop.permute.xlu0 %667
      %670 = vset.pattern.permute.xlu0 1
      %671 = vperm.xlu0 %670, %v374
      %v672 = vpop.permute.xlu0 %671
      %674 = vset.pattern.permute.xlu0 1
      %675 = vperm.xlu0 %674, %v375
      %v676 = vpop.permute.xlu0 %675
      %678 = vset.pattern.permute.xlu0 1
      %679 = vperm.xlu0 %678, %v376
      %v680 = vpop.permute.xlu0 %679
      %682 = vset.pattern.permute.xlu0 1
      %683 = vperm.xlu0 %682, %v377
      %v684 = vpop.permute.xlu0 %683
      %686 = vset.pattern.permute.xlu0 1
      %687 = vperm.xlu0 %686, %v378
      %v688 = vpop.permute.xlu0 %687
      %690 = vset.pattern.permute.xlu0 1
      %691 = vperm.xlu0 %690, %v379
      %v692 = vpop.permute.xlu0 %691
      %694 = vset.pattern.permute.xlu0 1
      %695 = vperm.xlu0 %694, %v380
      %v696 = vpop.permute.xlu0 %695
      %698 = vset.pattern.permute.xlu0 1
      %699 = vperm.xlu0 %698, %v381
      %v700 = vpop.permute.xlu0 %699
      %702 = vset.pattern.permute.xlu0 1
      %703 = vperm.xlu0 %702, %v382
      %v704 = vpop.permute.xlu0 %703
      %v706 = vlaneseq
      %v707 = vshrl.u32 %v706, 7
      %v708 = vsub.s32 1, %v707
      %v709 = vrot.slane %v366, %v708
      %v710 = vlaneseq
      %v711 = vshrl.u32 %v710, 7
      %v712 = vsub.s32 5, %v711
      %v713 = vrot.slane %v366, %v712
      %v716 = vlaneseq
      %v717 = vshrl.u32 %v716, 7
      %v718 = vsub.s32 1, %v717
      %v719 = vrot.slane %v709, %v718
      %v720 = vlaneseq
      %v721 = vshrl.u32 %v720, 7
      %v722 = vsub.s32 1, %v721
      %v723 = vrot.slane %v713, %v722
      %v724 = vmul.f32 %v644, %v719
      %v725 = vmul.f32 %v644, %v723
      %v726 = vmul.f32 %v648, %v719
      %v727 = vmul.f32 %v648, %v723
      %v728 = vmul.f32 %v652, %v719
      %v729 = vmul.f32 %v652, %v723
      %v730 = vmul.f32 %v656, %v719
      %v731 = vmul.f32 %v656, %v723
      %v732 = vmul.f32 %v660, %v719
      %v733 = vmul.f32 %v660, %v723
      %v734 = vmul.f32 %v664, %v719
      %v735 = vmul.f32 %v664, %v723
      %v736 = vmul.f32 %v668, %v719
      %v737 = vmul.f32 %v668, %v723
      %v738 = vmul.f32 %v672, %v719
      %v739 = vmul.f32 %v672, %v723
      %v740 = vmul.f32 %v676, %v719
      %v741 = vmul.f32 %v676, %v723
      %v742 = vmul.f32 %v680, %v719
      %v743 = vmul.f32 %v680, %v723
      %v744 = vmul.f32 %v684, %v719
      %v745 = vmul.f32 %v684, %v723
      %v746 = vmul.f32 %v688, %v719
      %v747 = vmul.f32 %v688, %v723
      %v748 = vmul.f32 %v692, %v719
      %v749 = vmul.f32 %v692, %v723
      %v750 = vmul.f32 %v696, %v719
      %v751 = vmul.f32 %v696, %v723
      %v752 = vmul.f32 %v700, %v719
      %v753 = vmul.f32 %v700, %v723
      %v754 = vmul.f32 %v704, %v719
      %v755 = vmul.f32 %v704, %v723
      %v756 = vadd.f32 %v610, %v724
      %v757 = vadd.f32 %v611, %v725
      %v758 = vadd.f32 %v612, %v726
      %v759 = vadd.f32 %v613, %v727
      %v760 = vadd.f32 %v614, %v728
      %v761 = vadd.f32 %v615, %v729
      %v762 = vadd.f32 %v616, %v730
      %v763 = vadd.f32 %v617, %v731
      %v764 = vadd.f32 %v618, %v732
      %v765 = vadd.f32 %v619, %v733
      %v766 = vadd.f32 %v620, %v734
      %v767 = vadd.f32 %v621, %v735
      %v768 = vadd.f32 %v622, %v736
      %v769 = vadd.f32 %v623, %v737
      %v770 = vadd.f32 %v624, %v738
      %v771 = vadd.f32 %v625, %v739
      %v772 = vadd.f32 %v626, %v740
      %v773 = vadd.f32 %v627, %v741
      %v774 = vadd.f32 %v628, %v742
      %v775 = vadd.f32 %v629, %v743
      %v776 = vadd.f32 %v630, %v744
      %v777 = vadd.f32 %v631, %v745
      %v778 = vadd.f32 %v632, %v746
      %v779 = vadd.f32 %v633, %v747
      %v780 = vadd.f32 %v634, %v748
      %v781 = vadd.f32 %v635, %v749
      %v782 = vadd.f32 %v636, %v750
      %v783 = vadd.f32 %v637, %v751
      %v784 = vadd.f32 %v638, %v752
      %v785 = vadd.f32 %v639, %v753
      %v786 = vadd.f32 %v640, %v754
      %v787 = vadd.f32 %v641, %v755
      %788 = vset.pattern.permute.xlu0 2
      %789 = vperm.xlu0 %788, %v367
      %v790 = vpop.permute.xlu0 %789
      %792 = vset.pattern.permute.xlu0 2
      %793 = vperm.xlu0 %792, %v368
      %v794 = vpop.permute.xlu0 %793
      %796 = vset.pattern.permute.xlu0 2
      %797 = vperm.xlu0 %796, %v369
      %v798 = vpop.permute.xlu0 %797
      %800 = vset.pattern.permute.xlu0 2
      %801 = vperm.xlu0 %800, %v370
      %v802 = vpop.permute.xlu0 %801
      %804 = vset.pattern.permute.xlu0 2
      %805 = vperm.xlu0 %804, %v371
      %v806 = vpop.permute.xlu0 %805
      %808 = vset.pattern.permute.xlu0 2
      %809 = vperm.xlu0 %808, %v372
      %v810 = vpop.permute.xlu0 %809
      %812 = vset.pattern.permute.xlu0 2
      %813 = vperm.xlu0 %812, %v373
      %v814 = vpop.permute.xlu0 %813
      %816 = vset.pattern.permute.xlu0 2
      %817 = vperm.xlu0 %816, %v374
      %v818 = vpop.permute.xlu0 %817
      %820 = vset.pattern.permute.xlu0 2
      %821 = vperm.xlu0 %820, %v375
      %v822 = vpop.permute.xlu0 %821
      %824 = vset.pattern.permute.xlu0 2
      %825 = vperm.xlu0 %824, %v376
      %v826 = vpop.permute.xlu0 %825
      %828 = vset.pattern.permute.xlu0 2
      %829 = vperm.xlu0 %828, %v377
      %v830 = vpop.permute.xlu0 %829
      %832 = vset.pattern.permute.xlu0 2
      %833 = vperm.xlu0 %832, %v378
      %v834 = vpop.permute.xlu0 %833
      %836 = vset.pattern.permute.xlu0 2
      %837 = vperm.xlu0 %836, %v379
      %v838 = vpop.permute.xlu0 %837
      %840 = vset.pattern.permute.xlu0 2
      %841 = vperm.xlu0 %840, %v380
      %v842 = vpop.permute.xlu0 %841
      %844 = vset.pattern.permute.xlu0 2
      %845 = vperm.xlu0 %844, %v381
      %v846 = vpop.permute.xlu0 %845
      %848 = vset.pattern.permute.xlu0 2
      %849 = vperm.xlu0 %848, %v382
      %v850 = vpop.permute.xlu0 %849
      %v852 = vlaneseq
      %v853 = vshrl.u32 %v852, 7
      %v854 = vsub.s32 2, %v853
      %v855 = vrot.slane %v366, %v854
      %v856 = vlaneseq
      %v857 = vshrl.u32 %v856, 7
      %v858 = vsub.s32 6, %v857
      %v859 = vrot.slane %v366, %v858
      %v862 = vlaneseq
      %v863 = vshrl.u32 %v862, 7
      %v864 = vsub.s32 2, %v863
      %v865 = vrot.slane %v855, %v864
      %v866 = vlaneseq
      %v867 = vshrl.u32 %v866, 7
      %v868 = vsub.s32 2, %v867
      %v869 = vrot.slane %v859, %v868
      %v870 = vmul.f32 %v790, %v865
      %v871 = vmul.f32 %v790, %v869
      %v872 = vmul.f32 %v794, %v865
      %v873 = vmul.f32 %v794, %v869
      %v874 = vmul.f32 %v798, %v865
      %v875 = vmul.f32 %v798, %v869
      %v876 = vmul.f32 %v802, %v865
      %v877 = vmul.f32 %v802, %v869
      %v878 = vmul.f32 %v806, %v865
      %v879 = vmul.f32 %v806, %v869
      %v880 = vmul.f32 %v810, %v865
      %v881 = vmul.f32 %v810, %v869
      %v882 = vmul.f32 %v814, %v865
      %v883 = vmul.f32 %v814, %v869
      %v884 = vmul.f32 %v818, %v865
      %v885 = vmul.f32 %v818, %v869
      %v886 = vmul.f32 %v822, %v865
      %v887 = vmul.f32 %v822, %v869
      %v888 = vmul.f32 %v826, %v865
      %v889 = vmul.f32 %v826, %v869
      %v890 = vmul.f32 %v830, %v865
      %v891 = vmul.f32 %v830, %v869
      %v892 = vmul.f32 %v834, %v865
      %v893 = vmul.f32 %v834, %v869
      %v894 = vmul.f32 %v838, %v865
      %v895 = vmul.f32 %v838, %v869
      %v896 = vmul.f32 %v842, %v865
      %v897 = vmul.f32 %v842, %v869
      %v898 = vmul.f32 %v846, %v865
      %v899 = vmul.f32 %v846, %v869
      %v900 = vmul.f32 %v850, %v865
      %v901 = vmul.f32 %v850, %v869
      %v902 = vadd.f32 %v756, %v870
      %v903 = vadd.f32 %v757, %v871
      %v904 = vadd.f32 %v758, %v872
      %v905 = vadd.f32 %v759, %v873
      %v906 = vadd.f32 %v760, %v874
      %v907 = vadd.f32 %v761, %v875
      %v908 = vadd.f32 %v762, %v876
      %v909 = vadd.f32 %v763, %v877
      %v910 = vadd.f32 %v764, %v878
      %v911 = vadd.f32 %v765, %v879
      %v912 = vadd.f32 %v766, %v880
      %v913 = vadd.f32 %v767, %v881
      %v914 = vadd.f32 %v768, %v882
      %v915 = vadd.f32 %v769, %v883
      %v916 = vadd.f32 %v770, %v884
      %v917 = vadd.f32 %v771, %v885
      %v918 = vadd.f32 %v772, %v886
      %v919 = vadd.f32 %v773, %v887
      %v920 = vadd.f32 %v774, %v888
      %v921 = vadd.f32 %v775, %v889
      %v922 = vadd.f32 %v776, %v890
      %v923 = vadd.f32 %v777, %v891
      %v924 = vadd.f32 %v778, %v892
      %v925 = vadd.f32 %v779, %v893
      %v926 = vadd.f32 %v780, %v894
      %v927 = vadd.f32 %v781, %v895
      %v928 = vadd.f32 %v782, %v896
      %v929 = vadd.f32 %v783, %v897
      %v930 = vadd.f32 %v784, %v898
      %v931 = vadd.f32 %v785, %v899
      %v932 = vadd.f32 %v786, %v900
      %v933 = vadd.f32 %v787, %v901
      %v934 = vmax.f32 %v902, 0.0
      %v935 = vmax.f32 %v903, 0.0
      %v936 = vmax.f32 %v904, 0.0
      %v937 = vmax.f32 %v905, 0.0
      %v938 = vmax.f32 %v906, 0.0
      %v939 = vmax.f32 %v907, 0.0
      %v940 = vmax.f32 %v908, 0.0
      %v941 = vmax.f32 %v909, 0.0
      %v942 = vmax.f32 %v910, 0.0
      %v943 = vmax.f32 %v911, 0.0
      %v944 = vmax.f32 %v912, 0.0
      %v945 = vmax.f32 %v913, 0.0
      %v946 = vmax.f32 %v914, 0.0
      %v947 = vmax.f32 %v915, 0.0
      %v948 = vmax.f32 %v916, 0.0
      %v949 = vmax.f32 %v917, 0.0
      %v950 = vmax.f32 %v918, 0.0
      %v951 = vmax.f32 %v919, 0.0
      %v952 = vmax.f32 %v920, 0.0
      %v953 = vmax.f32 %v921, 0.0
      %v954 = vmax.f32 %v922, 0.0
      %v955 = vmax.f32 %v923, 0.0
      %v956 = vmax.f32 %v924, 0.0
      %v957 = vmax.f32 %v925, 0.0
      %v958 = vmax.f32 %v926, 0.0
      %v959 = vmax.f32 %v927, 0.0
      %v960 = vmax.f32 %v928, 0.0
      %v961 = vmax.f32 %v929, 0.0
      %v962 = vmax.f32 %v930, 0.0
      %v963 = vmax.f32 %v931, 0.0
      %v964 = vmax.f32 %v932, 0.0
      %v965 = vmax.f32 %v933, 0.0
      %v966 = vpack.c.bf16 %v936, %v934
      %v967 = vpack.c.bf16 %v937, %v935
      %v968 = vpack.c.bf16 %v940, %v938
      %v969 = vpack.c.bf16 %v941, %v939
      %v970 = vpack.c.bf16 %v944, %v942
      %v971 = vpack.c.bf16 %v945, %v943
      %v972 = vpack.c.bf16 %v948, %v946
      %v973 = vpack.c.bf16 %v949, %v947
      %v974 = vpack.c.bf16 %v952, %v950
      %v975 = vpack.c.bf16 %v953, %v951
      %v976 = vpack.c.bf16 %v956, %v954
      %v977 = vpack.c.bf16 %v957, %v955
      %v978 = vpack.c.bf16 %v960, %v958
      %v979 = vpack.c.bf16 %v961, %v959
      %v980 = vpack.c.bf16 %v964, %v962
      %v981 = vpack.c.bf16 %v965, %v963
      %v982 = vld [vmem:[%s3] sm:$0xf]
      %v983 = vld [vmem:[%s3 + $0x4] sm:$0xf]
      %v984 = vld [vmem:[%s3 + $0x8] sm:$0xf]
      %v985 = vld [vmem:[%s3 + $0xc] sm:$0xf]
      %v986 = vld [vmem:[%s3 + $0x10] sm:$0xf]
      %v987 = vld [vmem:[%s3 + $0x14] sm:$0xf]
      %v988 = vld [vmem:[%s3 + $0x18] sm:$0xf]
      %v989 = vld [vmem:[%s3 + $0x1c] sm:$0xf]
      %v990 = vld [vmem:[%s3 + $0x20] sm:$0xf]
      %v991 = vld [vmem:[%s3 + $0x24] sm:$0xf]
      %v992 = vld [vmem:[%s3 + $0x28] sm:$0xf]
      %v993 = vld [vmem:[%s3 + $0x2c] sm:$0xf]
      %v994 = vld [vmem:[%s3 + $0x30] sm:$0xf]
      %v995 = vld [vmem:[%s3 + $0x34] sm:$0xf]
      %v996 = vld [vmem:[%s3 + $0x38] sm:$0xf]
      %v997 = vld [vmem:[%s3 + $0x3c] sm:$0xf]
      %v998 = vld [vmem:[%s4] sm:$0xff]
      %v999 = vld [vmem:[%s4 + $0x8] sm:$0xff]
      %v1000 = vld [vmem:[%s4 + $0x10] sm:$0xff]
      %v1001 = vld [vmem:[%s4 + $0x18] sm:$0xff]
      %v1002 = vld [vmem:[%s4 + $0x20] sm:$0xff]
      %v1003 = vld [vmem:[%s4 + $0x28] sm:$0xff]
      %v1004 = vld [vmem:[%s4 + $0x30] sm:$0xff]
      %v1005 = vld [vmem:[%s4 + $0x38] sm:$0xff]
      %v1006 = vld [vmem:[%s4 + $0x40] sm:$0xff]
      %v1007 = vld [vmem:[%s4 + $0x48] sm:$0xff]
      %v1008 = vld [vmem:[%s4 + $0x50] sm:$0xff]
      %v1009 = vld [vmem:[%s4 + $0x58] sm:$0xff]
      %v1010 = vld [vmem:[%s4 + $0x60] sm:$0xff]
      %v1011 = vld [vmem:[%s4 + $0x68] sm:$0xff]
      %v1012 = vld [vmem:[%s4 + $0x70] sm:$0xff]
      %v1013 = vld [vmem:[%s4 + $0x78] sm:$0xff]
      %1015 = vset.pattern.permute.xlu0 0
      %1016 = vperm.xlu0 %1015, %v998
      %v1017 = vpop.permute.xlu0 %1016
      %1020 = vset.pattern.permute.xlu0 0
      %1021 = vperm.xlu0 %1020, %v999
      %v1022 = vpop.permute.xlu0 %1021
      %1025 = vset.pattern.permute.xlu0 0
      %1026 = vperm.xlu0 %1025, %v1000
      %v1027 = vpop.permute.xlu0 %1026
      %1030 = vset.pattern.permute.xlu0 0
      %1031 = vperm.xlu0 %1030, %v1001
      %v1032 = vpop.permute.xlu0 %1031
      %1035 = vset.pattern.permute.xlu0 0
      %1036 = vperm.xlu0 %1035, %v1002
      %v1037 = vpop.permute.xlu0 %1036
      %1040 = vset.pattern.permute.xlu0 0
      %1041 = vperm.xlu0 %1040, %v1003
      %v1042 = vpop.permute.xlu0 %1041
      %1045 = vset.pattern.permute.xlu0 0
      %1046 = vperm.xlu0 %1045, %v1004
      %v1047 = vpop.permute.xlu0 %1046
      %1050 = vset.pattern.permute.xlu0 0
      %1051 = vperm.xlu0 %1050, %v1005
      %v1052 = vpop.permute.xlu0 %1051
      %1055 = vset.pattern.permute.xlu0 0
      %1056 = vperm.xlu0 %1055, %v1006
      %v1057 = vpop.permute.xlu0 %1056
      %1060 = vset.pattern.permute.xlu0 0
      %1061 = vperm.xlu0 %1060, %v1007
      %v1062 = vpop.permute.xlu0 %1061
      %1065 = vset.pattern.permute.xlu0 0
      %1066 = vperm.xlu0 %1065, %v1008
      %v1067 = vpop.permute.xlu0 %1066
      %1070 = vset.pattern.permute.xlu0 0
      %1071 = vperm.xlu0 %1070, %v1009
      %v1072 = vpop.permute.xlu0 %1071
      %1075 = vset.pattern.permute.xlu0 0
      %1076 = vperm.xlu0 %1075, %v1010
      %v1077 = vpop.permute.xlu0 %1076
      %1080 = vset.pattern.permute.xlu0 0
      %1081 = vperm.xlu0 %1080, %v1011
      %v1082 = vpop.permute.xlu0 %1081
      %1085 = vset.pattern.permute.xlu0 0
      %1086 = vperm.xlu0 %1085, %v1012
      %v1087 = vpop.permute.xlu0 %1086
      %1090 = vset.pattern.permute.xlu0 0
      %1091 = vperm.xlu0 %1090, %v1013
      %v1092 = vpop.permute.xlu0 %1091
      %v1110 = vunpack.c.l.b16 %v982
      %v1111 = vunpack.c.l.b16 %v983
      %v1112 = vunpack.c.l.b16 %v984
      %v1113 = vunpack.c.l.b16 %v985
      %v1114 = vunpack.c.l.b16 %v986
      %v1115 = vunpack.c.l.b16 %v987
      %v1116 = vunpack.c.l.b16 %v988
      %v1117 = vunpack.c.l.b16 %v989
      %v1118 = vunpack.c.l.b16 %v990
      %v1119 = vunpack.c.l.b16 %v991
      %v1120 = vunpack.c.l.b16 %v992
      %v1121 = vunpack.c.l.b16 %v993
      %v1122 = vunpack.c.l.b16 %v994
      %v1123 = vunpack.c.l.b16 %v995
      %v1124 = vunpack.c.l.b16 %v996
      %v1125 = vunpack.c.l.b16 %v997
      %v1126 = vpack.c.b16 %v1111, %v1110
      %v1127 = vpack.c.b16 %v1113, %v1112
      %v1128 = vpack.c.b16 %v1115, %v1114
      %v1129 = vpack.c.b16 %v1117, %v1116
      %v1130 = vpack.c.b16 %v1119, %v1118
      %v1131 = vpack.c.b16 %v1121, %v1120
      %v1132 = vpack.c.b16 %v1123, %v1122
      %v1133 = vpack.c.b16 %v1125, %v1124
      %1142 = vmatprep.subr.bf16.mxu0 %v967
      %1143 = vmatpush1.bf16.msra.mxu0 %v966
      %1144 = vmatprep.subr.bf16.mxu0 %v969
      %1145 = vmatpush1.bf16.msra.mxu0 %v968
      %1146 = vmatprep.subr.bf16.mxu0 %v971
      %1147 = vmatpush1.bf16.msra.mxu0 %v970
      %1148 = vmatprep.subr.bf16.mxu0 %v973
      %1149 = vmatpush1.bf16.msra.mxu0 %v972
      %1150 = vmatprep.subr.bf16.mxu0 %v975
      %1151 = vmatpush1.bf16.msra.mxu0 %v974
      %1152 = vmatprep.subr.bf16.mxu0 %v977
      %1153 = vmatpush1.bf16.msra.mxu0 %v976
      %1154 = vmatprep.subr.bf16.mxu0 %v979
      %1155 = vmatpush1.bf16.msra.mxu0 %v978
      %1156 = vmatprep.subr.bf16.mxu0 %v981
      %1157 = vmatpush1.bf16.msra.mxu0 %v980
      %1158 = vmatprep.subr.bf16.mxu0 0
      %1159 = vmatpush1.bf16.msra.mxu0 0
      %1160 = vmatprep.subr.bf16.mxu0 0
      %1161 = vmatpush1.bf16.msra.mxu0 0
      %1162 = vmatprep.subr.bf16.mxu0 0
      %1163 = vmatpush1.bf16.msra.mxu0 0
      %1164 = vmatprep.subr.bf16.mxu0 0
      %1165 = vmatpush1.bf16.msra.mxu0 0
      %1166 = vmatprep.subr.bf16.mxu0 0
      %1167 = vmatpush1.bf16.msra.mxu0 0
      %1168 = vmatprep.subr.bf16.mxu0 0
      %1169 = vmatpush1.bf16.msra.mxu0 0
      %1170 = vmatprep.subr.bf16.mxu0 0
      %1171 = vmatpush1.bf16.msra.mxu0 0
      %1172 = vmatprep.subr.bf16.mxu0 0
      %1173 = vmatpush1.bf16.msra.mxu0 0
      %1174 = vmatprep.mubr.bf16.mxu0 0
      %1175 = vmatmul.mubr.bf16.gmra.mrb[0].mxu0 %v1126
      %v1176 = vpop.f32.mrb[0].mxu0
      %v1177 = vadd.f32 %v1017, %v1176
      %v1178 = vpop.f32.mrb[0].mxu0
      %v1179 = vadd.f32 %v1017, %v1178
      %v1180 = vpop.f32.mrb[0].mxu0
      %v1181 = vadd.f32 %v1022, %v1180
      %v1182 = vpop.f32.mrb[0].mxu0
      %v1183 = vadd.f32 %v1022, %v1182
      %1184 = vmatprep.mubr.bf16.mxu0 0
      %1185 = vmatmul.mubr.bf16.gmra.mrb[0].mxu0 %v1127
      %v1186 = vpop.f32.mrb[0].mxu0
      %v1187 = vadd.f32 %v1027, %v1186
      %v1188 = vpop.f32.mrb[0].mxu0
      %v1189 = vadd.f32 %v1027, %v1188
      %v1190 = vpop.f32.mrb[0].mxu0
      %v1191 = vadd.f32 %v1032, %v1190
      %v1192 = vpop.f32.mrb[0].mxu0
      %v1193 = vadd.f32 %v1032, %v1192
      %1194 = vmatprep.mubr.bf16.mxu0 0
      %1195 = vmatmul.mubr.bf16.gmra.mrb[0].mxu0 %v1128
      %v1196 = vpop.f32.mrb[0].mxu0
      %v1197 = vadd.f32 %v1037, %v1196
      %v1198 = vpop.f32.mrb[0].mxu0
      %v1199 = vadd.f32 %v1037, %v1198
      %v1200 = vpop.f32.mrb[0].mxu0
      %v1201 = vadd.f32 %v1042, %v1200
      %v1202 = vpop.f32.mrb[0].mxu0
      %v1203 = vadd.f32 %v1042, %v1202
      %1204 = vmatprep.mubr.bf16.mxu0 0
      %1205 = vmatmul.mubr.bf16.gmra.mrb[0].mxu0 %v1129
      %v1206 = vpop.f32.mrb[0].mxu0
      %v1207 = vadd.f32 %v1047, %v1206
      %v1208 = vpop.f32.mrb[0].mxu0
      %v1209 = vadd.f32 %v1047, %v1208
      %v1210 = vpop.f32.mrb[0].mxu0
      %v1211 = vadd.f32 %v1052, %v1210
      %v1212 = vpop.f32.mrb[0].mxu0
      %v1213 = vadd.f32 %v1052, %v1212
      %1214 = vmatprep.mubr.bf16.mxu0 0
      %1215 = vmatmul.mubr.bf16.gmra.mrb[0].mxu0 %v1130
      %v1216 = vpop.f32.mrb[0].mxu0
      %v1217 = vadd.f32 %v1057, %v1216
      %v1218 = vpop.f32.mrb[0].mxu0
      %v1219 = vadd.f32 %v1057, %v1218
      %v1220 = vpop.f32.mrb[0].mxu0
      %v1221 = vadd.f32 %v1062, %v1220
      %v1222 = vpop.f32.mrb[0].mxu0
      %v1223 = vadd.f32 %v1062, %v1222
      %1224 = vmatprep.mubr.bf16.mxu0 0
      %1225 = vmatmul.mubr.bf16.gmra.mrb[0].mxu0 %v1131
      %v1226 = vpop.f32.mrb[0].mxu0
      %v1227 = vadd.f32 %v1067, %v1226
      %v1228 = vpop.f32.mrb[0].mxu0
      %v1229 = vadd.f32 %v1067, %v1228
      %v1230 = vpop.f32.mrb[0].mxu0
      %v1231 = vadd.f32 %v1072, %v1230
      %v1232 = vpop.f32.mrb[0].mxu0
      %v1233 = vadd.f32 %v1072, %v1232
      %1234 = vmatprep.mubr.bf16.mxu0 0
      %1235 = vmatmul.mubr.bf16.gmra.mrb[0].mxu0 %v1132
      %v1236 = vpop.f32.mrb[0].mxu0
      %v1237 = vadd.f32 %v1077, %v1236
      %v1238 = vpop.f32.mrb[0].mxu0
      %v1239 = vadd.f32 %v1077, %v1238
      %v1240 = vpop.f32.mrb[0].mxu0
      %v1241 = vadd.f32 %v1082, %v1240
      %v1242 = vpop.f32.mrb[0].mxu0
      %v1243 = vadd.f32 %v1082, %v1242
      %1244 = vmatprep.mubr.bf16.mxu0 0
      %1245 = vmatmul.mubr.bf16.gmra.mrb[0].mxu0 %v1133
      %v1246 = vpop.f32.mrb[0].mxu0
      %v1247 = vadd.f32 %v1087, %v1246
      %v1248 = vpop.f32.mrb[0].mxu0
      %v1249 = vadd.f32 %v1087, %v1248
      %v1250 = vpop.f32.mrb[0].mxu0
      %v1251 = vadd.f32 %v1092, %v1250
      %v1252 = vpop.f32.mrb[0].mxu0
      %v1253 = vadd.f32 %v1092, %v1252
      %1254 = vdwg.mxu0
      %v1255 = vmax.f32 %v1177, 0.0
      %v1256 = vmax.f32 %v1179, 0.0
      %v1257 = vmax.f32 %v1181, 0.0
      %v1258 = vmax.f32 %v1183, 0.0
      %v1259 = vmax.f32 %v1187, 0.0
      %v1260 = vmax.f32 %v1189, 0.0
      %v1261 = vmax.f32 %v1191, 0.0
      %v1262 = vmax.f32 %v1193, 0.0
      %v1263 = vmax.f32 %v1197, 0.0
      %v1264 = vmax.f32 %v1199, 0.0
      %v1265 = vmax.f32 %v1201, 0.0
      %v1266 = vmax.f32 %v1203, 0.0
      %v1267 = vmax.f32 %v1207, 0.0
      %v1268 = vmax.f32 %v1209, 0.0
      %v1269 = vmax.f32 %v1211, 0.0
      %v1270 = vmax.f32 %v1213, 0.0
      %v1271 = vmax.f32 %v1217, 0.0
      %v1272 = vmax.f32 %v1219, 0.0
      %v1273 = vmax.f32 %v1221, 0.0
      %v1274 = vmax.f32 %v1223, 0.0
      %v1275 = vmax.f32 %v1227, 0.0
      %v1276 = vmax.f32 %v1229, 0.0
      %v1277 = vmax.f32 %v1231, 0.0
      %v1278 = vmax.f32 %v1233, 0.0
      %v1279 = vmax.f32 %v1237, 0.0
      %v1280 = vmax.f32 %v1239, 0.0
      %v1281 = vmax.f32 %v1241, 0.0
      %v1282 = vmax.f32 %v1243, 0.0
      %v1283 = vmax.f32 %v1247, 0.0
      %v1284 = vmax.f32 %v1249, 0.0
      %v1285 = vmax.f32 %v1251, 0.0
      %v1286 = vmax.f32 %v1253, 0.0
      %v1287 = vpack.c.bf16 %v1257, %v1255
      %v1288 = vpack.c.bf16 %v1258, %v1256
      %v1289 = vpack.c.bf16 %v1261, %v1259
      %v1290 = vpack.c.bf16 %v1262, %v1260
      %v1291 = vpack.c.bf16 %v1265, %v1263
      %v1292 = vpack.c.bf16 %v1266, %v1264
      %v1293 = vpack.c.bf16 %v1269, %v1267
      %v1294 = vpack.c.bf16 %v1270, %v1268
      %v1295 = vpack.c.bf16 %v1273, %v1271
      %v1296 = vpack.c.bf16 %v1274, %v1272
      %v1297 = vpack.c.bf16 %v1277, %v1275
      %v1298 = vpack.c.bf16 %v1278, %v1276
      %v1299 = vpack.c.bf16 %v1281, %v1279
      %v1300 = vpack.c.bf16 %v1282, %v1280
      %v1301 = vpack.c.bf16 %v1285, %v1283
      %v1302 = vpack.c.bf16 %v1286, %v1284
      %v1303 = vld [vmem:[%s5] sm:$0xf]
      %v1304 = vld [vmem:[%s5 + $0x4] sm:$0xf]
      %v1305 = vld [vmem:[%s5 + $0x8] sm:$0xf]
      %v1306 = vld [vmem:[%s5 + $0xc] sm:$0xf]
      %v1307 = vld [vmem:[%s5 + $0x10] sm:$0xf]
      %v1308 = vld [vmem:[%s5 + $0x14] sm:$0xf]
      %v1309 = vld [vmem:[%s5 + $0x18] sm:$0xf]
      %v1310 = vld [vmem:[%s5 + $0x1c] sm:$0xf]
      %v1311 = vld [vmem:[%s5 + $0x20] sm:$0xf]
      %v1312 = vld [vmem:[%s5 + $0x24] sm:$0xf]
      %v1313 = vld [vmem:[%s5 + $0x28] sm:$0xf]
      %v1314 = vld [vmem:[%s5 + $0x2c] sm:$0xf]
      %v1315 = vld [vmem:[%s5 + $0x30] sm:$0xf]
      %v1316 = vld [vmem:[%s5 + $0x34] sm:$0xf]
      %v1317 = vld [vmem:[%s5 + $0x38] sm:$0xf]
      %v1318 = vld [vmem:[%s5 + $0x3c] sm:$0xf]
      %v1335 = vunpack.c.l.b16 %v1303
      %v1336 = vunpack.c.l.b16 %v1304
      %v1337 = vunpack.c.l.b16 %v1305
      %v1338 = vunpack.c.l.b16 %v1306
      %v1339 = vunpack.c.l.b16 %v1307
      %v1340 = vunpack.c.l.b16 %v1308
      %v1341 = vunpack.c.l.b16 %v1309
      %v1342 = vunpack.c.l.b16 %v1310
      %v1343 = vunpack.c.l.b16 %v1311
      %v1344 = vunpack.c.l.b16 %v1312
      %v1345 = vunpack.c.l.b16 %v1313
      %v1346 = vunpack.c.l.b16 %v1314
      %v1347 = vunpack.c.l.b16 %v1315
      %v1348 = vunpack.c.l.b16 %v1316
      %v1349 = vunpack.c.l.b16 %v1317
      %v1350 = vunpack.c.l.b16 %v1318
      %v1351 = vpack.c.b16 %v1336, %v1335
      %v1352 = vpack.c.b16 %v1338, %v1337
      %v1353 = vpack.c.b16 %v1340, %v1339
      %v1354 = vpack.c.b16 %v1342, %v1341
      %v1355 = vpack.c.b16 %v1344, %v1343
      %v1356 = vpack.c.b16 %v1346, %v1345
      %v1357 = vpack.c.b16 %v1348, %v1347
      %v1358 = vpack.c.b16 %v1350, %v1349
      %1367 = vmatprep.subr.bf16.mxu0 %v1288
      %1368 = vmatpush1.bf16.msra.mxu0 %v1287
      %1369 = vmatprep.subr.bf16.mxu0 %v1290
      %1370 = vmatpush1.bf16.msra.mxu0 %v1289
      %1371 = vmatprep.subr.bf16.mxu0 %v1292
      %1372 = vmatpush1.bf16.msra.mxu0 %v1291
      %1373 = vmatprep.subr.bf16.mxu0 %v1294
      %1374 = vmatpush1.bf16.msra.mxu0 %v1293
      %1375 = vmatprep.subr.bf16.mxu0 %v1296
      %1376 = vmatpush1.bf16.msra.mxu0 %v1295
      %1377 = vmatprep.subr.bf16.mxu0 %v1298
      %1378 = vmatpush1.bf16.msra.mxu0 %v1297
      %1379 = vmatprep.subr.bf16.mxu0 %v1300
      %1380 = vmatpush1.bf16.msra.mxu0 %v1299
      %1381 = vmatprep.subr.bf16.mxu0 %v1302
      %1382 = vmatpush1.bf16.msra.mxu0 %v1301
      %1383 = vmatprep.subr.bf16.mxu0 0
      %1384 = vmatpush1.bf16.msra.mxu0 0
      %1385 = vmatprep.subr.bf16.mxu0 0
      %1386 = vmatpush1.bf16.msra.mxu0 0
      %1387 = vmatprep.subr.bf16.mxu0 0
      %1388 = vmatpush1.bf16.msra.mxu0 0
      %1389 = vmatprep.subr.bf16.mxu0 0
      %1390 = vmatpush1.bf16.msra.mxu0 0
      %1391 = vmatprep.subr.bf16.mxu0 0
      %1392 = vmatpush1.bf16.msra.mxu0 0
      %1393 = vmatprep.subr.bf16.mxu0 0
      %1394 = vmatpush1.bf16.msra.mxu0 0
      %1395 = vmatprep.subr.bf16.mxu0 0
      %1396 = vmatpush1.bf16.msra.mxu0 0
      %1397 = vmatprep.subr.bf16.mxu0 0
      %1398 = vmatpush1.bf16.msra.mxu0 0
      %1399 = vmatprep.mubr.bf16.mxu0 0
      %1400 = vmatmul.mubr.bf16.gmra.mrb[0].mxu0 %v1351
      %v1401 = vpop.f32.mrb[0].mxu0
      %v1402 = vadd.f32 0.0, %v1401
      %v1403 = vpop.f32.mrb[0].mxu0
      %v1404 = vadd.f32 0.0, %v1403
      %v1405 = vpop.f32.mrb[0].mxu0
      %v1406 = vadd.f32 0.0, %v1405
      %v1407 = vpop.f32.mrb[0].mxu0
      %v1408 = vadd.f32 0.0, %v1407
      %1409 = vmatprep.mubr.bf16.mxu0 0
      %1410 = vmatmul.mubr.bf16.gmra.mrb[0].mxu0 %v1352
      %v1411 = vpop.f32.mrb[0].mxu0
      %v1412 = vadd.f32 0.0, %v1411
      %v1413 = vpop.f32.mrb[0].mxu0
      %v1414 = vadd.f32 0.0, %v1413
      %v1415 = vpop.f32.mrb[0].mxu0
      %v1416 = vadd.f32 0.0, %v1415
      %v1417 = vpop.f32.mrb[0].mxu0
      %v1418 = vadd.f32 0.0, %v1417
      %1419 = vmatprep.mubr.bf16.mxu0 0
      %1420 = vmatmul.mubr.bf16.gmra.mrb[0].mxu0 %v1353
      %v1421 = vpop.f32.mrb[0].mxu0
      %v1422 = vadd.f32 0.0, %v1421
      %v1423 = vpop.f32.mrb[0].mxu0
      %v1424 = vadd.f32 0.0, %v1423
      %v1425 = vpop.f32.mrb[0].mxu0
      %v1426 = vadd.f32 0.0, %v1425
      %v1427 = vpop.f32.mrb[0].mxu0
      %v1428 = vadd.f32 0.0, %v1427
      %1429 = vmatprep.mubr.bf16.mxu0 0
      %1430 = vmatmul.mubr.bf16.gmra.mrb[0].mxu0 %v1354
      %v1431 = vpop.f32.mrb[0].mxu0
      %v1432 = vadd.f32 0.0, %v1431
      %v1433 = vpop.f32.mrb[0].mxu0
      %v1434 = vadd.f32 0.0, %v1433
      %v1435 = vpop.f32.mrb[0].mxu0
      %v1436 = vadd.f32 0.0, %v1435
      %v1437 = vpop.f32.mrb[0].mxu0
      %v1438 = vadd.f32 0.0, %v1437
      %1439 = vmatprep.mubr.bf16.mxu0 0
      %1440 = vmatmul.mubr.bf16.gmra.mrb[0].mxu0 %v1355
      %v1441 = vpop.f32.mrb[0].mxu0
      %v1442 = vadd.f32 0.0, %v1441
      %v1443 = vpop.f32.mrb[0].mxu0
      %v1444 = vadd.f32 0.0, %v1443
      %v1445 = vpop.f32.mrb[0].mxu0
      %v1446 = vadd.f32 0.0, %v1445
      %v1447 = vpop.f32.mrb[0].mxu0
      %v1448 = vadd.f32 0.0, %v1447
      %1449 = vmatprep.mubr.bf16.mxu0 0
      %1450 = vmatmul.mubr.bf16.gmra.mrb[0].mxu0 %v1356
      %v1451 = vpop.f32.mrb[0].mxu0
      %v1452 = vadd.f32 0.0, %v1451
      %v1453 = vpop.f32.mrb[0].mxu0
      %v1454 = vadd.f32 0.0, %v1453
      %v1455 = vpop.f32.mrb[0].mxu0
      %v1456 = vadd.f32 0.0, %v1455
      %v1457 = vpop.f32.mrb[0].mxu0
      %v1458 = vadd.f32 0.0, %v1457
      %1459 = vmatprep.mubr.bf16.mxu0 0
      %1460 = vmatmul.mubr.bf16.gmra.mrb[0].mxu0 %v1357
      %v1461 = vpop.f32.mrb[0].mxu0
      %v1462 = vadd.f32 0.0, %v1461
      %v1463 = vpop.f32.mrb[0].mxu0
      %v1464 = vadd.f32 0.0, %v1463
      %v1465 = vpop.f32.mrb[0].mxu0
      %v1466 = vadd.f32 0.0, %v1465
      %v1467 = vpop.f32.mrb[0].mxu0
      %v1468 = vadd.f32 0.0, %v1467
      %1469 = vmatprep.mubr.bf16.mxu0 0
      %1470 = vmatmul.mubr.bf16.gmra.mrb[0].mxu0 %v1358
      %v1471 = vpop.f32.mrb[0].mxu0
      %v1472 = vadd.f32 0.0, %v1471
      %v1473 = vpop.f32.mrb[0].mxu0
      %v1474 = vadd.f32 0.0, %v1473
      %v1475 = vpop.f32.mrb[0].mxu0
      %v1476 = vadd.f32 0.0, %v1475
      %v1477 = vpop.f32.mrb[0].mxu0
      %v1478 = vadd.f32 0.0, %v1477
      %1479 = vdwg.mxu0
      %v1480 = vadd.f32 %v902, %v1402
      %v1481 = vadd.f32 %v903, %v1404
      %v1482 = vadd.f32 %v904, %v1406
      %v1483 = vadd.f32 %v905, %v1408
      %v1484 = vadd.f32 %v906, %v1412
      %v1485 = vadd.f32 %v907, %v1414
      %v1486 = vadd.f32 %v908, %v1416
      %v1487 = vadd.f32 %v909, %v1418
      %v1488 = vadd.f32 %v910, %v1422
      %v1489 = vadd.f32 %v911, %v1424
      %v1490 = vadd.f32 %v912, %v1426
      %v1491 = vadd.f32 %v913, %v1428
      %v1492 = vadd.f32 %v914, %v1432
      %v1493 = vadd.f32 %v915, %v1434
      %v1494 = vadd.f32 %v916, %v1436
      %v1495 = vadd.f32 %v917, %v1438
      %v1496 = vadd.f32 %v918, %v1442
      %v1497 = vadd.f32 %v919, %v1444
      %v1498 = vadd.f32 %v920, %v1446
      %v1499 = vadd.f32 %v921, %v1448
      %v1500 = vadd.f32 %v922, %v1452
      %v1501 = vadd.f32 %v923, %v1454
      %v1502 = vadd.f32 %v924, %v1456
      %v1503 = vadd.f32 %v925, %v1458
      %v1504 = vadd.f32 %v926, %v1462
      %v1505 = vadd.f32 %v927, %v1464
      %v1506 = vadd.f32 %v928, %v1466
      %v1507 = vadd.f32 %v929, %v1468
      %v1508 = vadd.f32 %v930, %v1472
      %v1509 = vadd.f32 %v931, %v1474
      %v1510 = vadd.f32 %v932, %v1476
      %v1511 = vadd.f32 %v933, %v1478
      %1512 = vset.pattern.permute.xlu0 1
      %1513 = vperm.xlu0 %1512, %v383
      %v1514 = vpop.permute.xlu0 %1513
      %1516 = vset.pattern.permute.xlu0 1
      %1517 = vperm.xlu0 %1516, %v384
      %v1518 = vpop.permute.xlu0 %1517
      %1520 = vset.pattern.permute.xlu0 1
      %1521 = vperm.xlu0 %1520, %v385
      %v1522 = vpop.permute.xlu0 %1521
      %1524 = vset.pattern.permute.xlu0 1
      %1525 = vperm.xlu0 %1524, %v386
      %v1526 = vpop.permute.xlu0 %1525
      %1528 = vset.pattern.permute.xlu0 1
      %1529 = vperm.xlu0 %1528, %v387
      %v1530 = vpop.permute.xlu0 %1529
      %1532 = vset.pattern.permute.xlu0 1
      %1533 = vperm.xlu0 %1532, %v388
      %v1534 = vpop.permute.xlu0 %1533
      %1536 = vset.pattern.permute.xlu0 1
      %1537 = vperm.xlu0 %1536, %v389
      %v1538 = vpop.permute.xlu0 %1537
      %1540 = vset.pattern.permute.xlu0 1
      %1541 = vperm.xlu0 %1540, %v390
      %v1542 = vpop.permute.xlu0 %1541
      %1544 = vset.pattern.permute.xlu0 1
      %1545 = vperm.xlu0 %1544, %v391
      %v1546 = vpop.permute.xlu0 %1545
      %1548 = vset.pattern.permute.xlu0 1
      %1549 = vperm.xlu0 %1548, %v392
      %v1550 = vpop.permute.xlu0 %1549
      %1552 = vset.pattern.permute.xlu0 1
      %1553 = vperm.xlu0 %1552, %v393
      %v1554 = vpop.permute.xlu0 %1553
      %1556 = vset.pattern.permute.xlu0 1
      %1557 = vperm.xlu0 %1556, %v394
      %v1558 = vpop.permute.xlu0 %1557
      %1560 = vset.pattern.permute.xlu0 1
      %1561 = vperm.xlu0 %1560, %v395
      %v1562 = vpop.permute.xlu0 %1561
      %1564 = vset.pattern.permute.xlu0 1
      %1565 = vperm.xlu0 %1564, %v396
      %v1566 = vpop.permute.xlu0 %1565
      %1568 = vset.pattern.permute.xlu0 1
      %1569 = vperm.xlu0 %1568, %v397
      %v1570 = vpop.permute.xlu0 %1569
      %1572 = vset.pattern.permute.xlu0 1
      %1573 = vperm.xlu0 %1572, %v398
      %v1574 = vpop.permute.xlu0 %1573
      %v1576 = vadd.f32 %v1480, %v1514
      %v1577 = vadd.f32 %v1481, %v1514
      %v1578 = vadd.f32 %v1482, %v1518
      %v1579 = vadd.f32 %v1483, %v1518
      %v1580 = vadd.f32 %v1484, %v1522
      %v1581 = vadd.f32 %v1485, %v1522
      %v1582 = vadd.f32 %v1486, %v1526
      %v1583 = vadd.f32 %v1487, %v1526
      %v1584 = vadd.f32 %v1488, %v1530
      %v1585 = vadd.f32 %v1489, %v1530
      %v1586 = vadd.f32 %v1490, %v1534
      %v1587 = vadd.f32 %v1491, %v1534
      %v1588 = vadd.f32 %v1492, %v1538
      %v1589 = vadd.f32 %v1493, %v1538
      %v1590 = vadd.f32 %v1494, %v1542
      %v1591 = vadd.f32 %v1495, %v1542
      %v1592 = vadd.f32 %v1496, %v1546
      %v1593 = vadd.f32 %v1497, %v1546
      %v1594 = vadd.f32 %v1498, %v1550
      %v1595 = vadd.f32 %v1499, %v1550
      %v1596 = vadd.f32 %v1500, %v1554
      %v1597 = vadd.f32 %v1501, %v1554
      %v1598 = vadd.f32 %v1502, %v1558
      %v1599 = vadd.f32 %v1503, %v1558
      %v1600 = vadd.f32 %v1504, %v1562
      %v1601 = vadd.f32 %v1505, %v1562
      %v1602 = vadd.f32 %v1506, %v1566
      %v1603 = vadd.f32 %v1507, %v1566
      %v1604 = vadd.f32 %v1508, %v1570
      %v1605 = vadd.f32 %v1509, %v1570
      %v1606 = vadd.f32 %v1510, %v1574
      %v1607 = vadd.f32 %v1511, %v1574
      %v1608 = vmax.f32 %v1576, 0.0
      %v1609 = vmax.f32 %v1577, 0.0
      %v1610 = vmax.f32 %v1578, 0.0
      %v1611 = vmax.f32 %v1579, 0.0
      %v1612 = vmax.f32 %v1580, 0.0
      %v1613 = vmax.f32 %v1581, 0.0
      %v1614 = vmax.f32 %v1582, 0.0
      %v1615 = vmax.f32 %v1583, 0.0
      %v1616 = vmax.f32 %v1584, 0.0
      %v1617 = vmax.f32 %v1585, 0.0
      %v1618 = vmax.f32 %v1586, 0.0
      %v1619 = vmax.f32 %v1587, 0.0
      %v1620 = vmax.f32 %v1588, 0.0
      %v1621 = vmax.f32 %v1589, 0.0
      %v1622 = vmax.f32 %v1590, 0.0
      %v1623 = vmax.f32 %v1591, 0.0
      %v1624 = vmax.f32 %v1592, 0.0
      %v1625 = vmax.f32 %v1593, 0.0
      %v1626 = vmax.f32 %v1594, 0.0
      %v1627 = vmax.f32 %v1595, 0.0
      %v1628 = vmax.f32 %v1596, 0.0
      %v1629 = vmax.f32 %v1597, 0.0
      %v1630 = vmax.f32 %v1598, 0.0
      %v1631 = vmax.f32 %v1599, 0.0
      %v1632 = vmax.f32 %v1600, 0.0
      %v1633 = vmax.f32 %v1601, 0.0
      %v1634 = vmax.f32 %v1602, 0.0
      %v1635 = vmax.f32 %v1603, 0.0
      %v1636 = vmax.f32 %v1604, 0.0
      %v1637 = vmax.f32 %v1605, 0.0
      %v1638 = vmax.f32 %v1606, 0.0
      %v1639 = vmax.f32 %v1607, 0.0
      %v1640 = vpack.c.bf16 %v1610, %v1608
      %v1641 = vpack.c.bf16 %v1611, %v1609
      %v1642 = vpack.c.bf16 %v1614, %v1612
      %v1643 = vpack.c.bf16 %v1615, %v1613
      %v1644 = vpack.c.bf16 %v1618, %v1616
      %v1645 = vpack.c.bf16 %v1619, %v1617
      %v1646 = vpack.c.bf16 %v1622, %v1620
      %v1647 = vpack.c.bf16 %v1623, %v1621
      %v1648 = vpack.c.bf16 %v1626, %v1624
      %v1649 = vpack.c.bf16 %v1627, %v1625
      %v1650 = vpack.c.bf16 %v1630, %v1628
      %v1651 = vpack.c.bf16 %v1631, %v1629
      %v1652 = vpack.c.bf16 %v1634, %v1632
      %v1653 = vpack.c.bf16 %v1635, %v1633
      %v1654 = vpack.c.bf16 %v1638, %v1636
      %v1655 = vpack.c.bf16 %v1639, %v1637
      %s1656 = scalar_lea.vmem %s3, 64
      %v1657 = vld [vmem:[%s1656] sm:$0xf]
      %v1658 = vld [vmem:[%s1656 + $0x4] sm:$0xf]
      %v1659 = vld [vmem:[%s1656 + $0x8] sm:$0xf]
      %v1660 = vld [vmem:[%s1656 + $0xc] sm:$0xf]
      %v1661 = vld [vmem:[%s1656 + $0x10] sm:$0xf]
      %v1662 = vld [vmem:[%s1656 + $0x14] sm:$0xf]
      %v1663 = vld [vmem:[%s1656 + $0x18] sm:$0xf]
      %v1664 = vld [vmem:[%s1656 + $0x1c] sm:$0xf]
      %v1665 = vld [vmem:[%s1656 + $0x20] sm:$0xf]
      %v1666 = vld [vmem:[%s1656 + $0x24] sm:$0xf]
      %v1667 = vld [vmem:[%s1656 + $0x28] sm:$0xf]
      %v1668 = vld [vmem:[%s1656 + $0x2c] sm:$0xf]
      %v1669 = vld [vmem:[%s1656 + $0x30] sm:$0xf]
      %v1670 = vld [vmem:[%s1656 + $0x34] sm:$0xf]
      %v1671 = vld [vmem:[%s1656 + $0x38] sm:$0xf]
      %v1672 = vld [vmem:[%s1656 + $0x3c] sm:$0xf]
      %1673 = vset.pattern.permute.xlu0 1
      %1674 = vperm.xlu0 %1673, %v998
      %v1675 = vpop.permute.xlu0 %1674
      %1677 = vset.pattern.permute.xlu0 1
      %1678 = vperm.xlu0 %1677, %v999
      %v1679 = vpop.permute.xlu0 %1678
      %1681 = vset.pattern.permute.xlu0 1
      %1682 = vperm.xlu0 %1681, %v1000
      %v1683 = vpop.permute.xlu0 %1682
      %1685 = vset.pattern.permute.xlu0 1
      %1686 = vperm.xlu0 %1685, %v1001
      %v1687 = vpop.permute.xlu0 %1686
      %1689 = vset.pattern.permute.xlu0 1
      %1690 = vperm.xlu0 %1689, %v1002
      %v1691 = vpop.permute.xlu0 %1690
      %1693 = vset.pattern.permute.xlu0 1
      %1694 = vperm.xlu0 %1693, %v1003
      %v1695 = vpop.permute.xlu0 %1694
      %1697 = vset.pattern.permute.xlu0 1
      %1698 = vperm.xlu0 %1697, %v1004
      %v1699 = vpop.permute.xlu0 %1698
      %1701 = vset.pattern.permute.xlu0 1
      %1702 = vperm.xlu0 %1701, %v1005
      %v1703 = vpop.permute.xlu0 %1702
      %1705 = vset.pattern.permute.xlu0 1
      %1706 = vperm.xlu0 %1705, %v1006
      %v1707 = vpop.permute.xlu0 %1706
      %1709 = vset.pattern.permute.xlu0 1
      %1710 = vperm.xlu0 %1709, %v1007
      %v1711 = vpop.permute.xlu0 %1710
      %1713 = vset.pattern.permute.xlu0 1
      %1714 = vperm.xlu0 %1713, %v1008
      %v1715 = vpop.permute.xlu0 %1714
      %1717 = vset.pattern.permute.xlu0 1
      %1718 = vperm.xlu0 %1717, %v1009
      %v1719 = vpop.permute.xlu0 %1718
      %1721 = vset.pattern.permute.xlu0 1
      %1722 = vperm.xlu0 %1721, %v1010
      %v1723 = vpop.permute.xlu0 %1722
      %1725 = vset.pattern.permute.xlu0 1
      %1726 = vperm.xlu0 %1725, %v1011
      %v1727 = vpop.permute.xlu0 %1726
      %1729 = vset.pattern.permute.xlu0 1
      %1730 = vperm.xlu0 %1729, %v1012
      %v1731 = vpop.permute.xlu0 %1730
      %1733 = vset.pattern.permute.xlu0 1
      %1734 = vperm.xlu0 %1733, %v1013
      %v1735 = vpop.permute.xlu0 %1734
      %v1753 = vunpack.c.l.b16 %v1657
      %v1754 = vunpack.c.l.b16 %v1658
      %v1755 = vunpack.c.l.b16 %v1659
      %v1756 = vunpack.c.l.b16 %v1660
      %v1757 = vunpack.c.l.b16 %v1661
      %v1758 = vunpack.c.l.b16 %v1662
      %v1759 = vunpack.c.l.b16 %v1663
      %v1760 = vunpack.c.l.b16 %v1664
      %v1761 = vunpack.c.l.b16 %v1665
      %v1762 = vunpack.c.l.b16 %v1666
      %v1763 = vunpack.c.l.b16 %v1667
      %v1764 = vunpack.c.l.b16 %v1668
      %v1765 = vunpack.c.l.b16 %v1669
      %v1766 = vunpack.c.l.b16 %v1670
      %v1767 = vunpack.c.l.b16 %v1671
      %v1768 = vunpack.c.l.b16 %v1672
      %v1769 = vpack.c.b16 %v1754, %v1753
      %v1770 = vpack.c.b16 %v1756, %v1755
      %v1771 = vpack.c.b16 %v1758, %v1757
      %v1772 = vpack.c.b16 %v1760, %v1759
      %v1773 = vpack.c.b16 %v1762, %v1761
      %v1774 = vpack.c.b16 %v1764, %v1763
      %v1775 = vpack.c.b16 %v1766, %v1765
      %v1776 = vpack.c.b16 %v1768, %v1767
      %1785 = vmatprep.subr.bf16.mxu0 %v1641
      %1786 = vmatpush1.bf16.msra.mxu0 %v1640
      %1787 = vmatprep.subr.bf16.mxu0 %v1643
      %1788 = vmatpush1.bf16.msra.mxu0 %v1642
      %1789 = vmatprep.subr.bf16.mxu0 %v1645
      %1790 = vmatpush1.bf16.msra.mxu0 %v1644
      %1791 = vmatprep.subr.bf16.mxu0 %v1647
      %1792 = vmatpush1.bf16.msra.mxu0 %v1646
      %1793 = vmatprep.subr.bf16.mxu0 %v1649
      %1794 = vmatpush1.bf16.msra.mxu0 %v1648
      %1795 = vmatprep.subr.bf16.mxu0 %v1651
      %1796 = vmatpush1.bf16.msra.mxu0 %v1650
      %1797 = vmatprep.subr.bf16.mxu0 %v1653
      %1798 = vmatpush1.bf16.msra.mxu0 %v1652
      %1799 = vmatprep.subr.bf16.mxu0 %v1655
      %1800 = vmatpush1.bf16.msra.mxu0 %v1654
      %1801 = vmatprep.subr.bf16.mxu0 0
      %1802 = vmatpush1.bf16.msra.mxu0 0
      %1803 = vmatprep.subr.bf16.mxu0 0
      %1804 = vmatpush1.bf16.msra.mxu0 0
      %1805 = vmatprep.subr.bf16.mxu0 0
      %1806 = vmatpush1.bf16.msra.mxu0 0
      %1807 = vmatprep.subr.bf16.mxu0 0
      %1808 = vmatpush1.bf16.msra.mxu0 0
      %1809 = vmatprep.subr.bf16.mxu0 0
      %1810 = vmatpush1.bf16.msra.mxu0 0
      %1811 = vmatprep.subr.bf16.mxu0 0
      %1812 = vmatpush1.bf16.msra.mxu0 0
      %1813 = vmatprep.subr.bf16.mxu0 0
      %1814 = vmatpush1.bf16.msra.mxu0 0
      %1815 = vmatprep.subr.bf16.mxu0 0
      %1816 = vmatpush1.bf16.msra.mxu0 0
      %1817 = vmatprep.mubr.bf16.mxu0 0
      %1818 = vmatmul.mubr.bf16.gmra.mrb[0].mxu0 %v1769
      %v1819 = vpop.f32.mrb[0].mxu0
      %v1820 = vadd.f32 %v1675, %v1819
      %v1821 = vpop.f32.mrb[0].mxu0
      %v1822 = vadd.f32 %v1675, %v1821
      %v1823 = vpop.f32.mrb[0].mxu0
      %v1824 = vadd.f32 %v1679, %v1823
      %v1825 = vpop.f32.mrb[0].mxu0
      %v1826 = vadd.f32 %v1679, %v1825
      %1827 = vmatprep.mubr.bf16.mxu0 0
      %1828 = vmatmul.mubr.bf16.gmra.mrb[0].mxu0 %v1770
      %v1829 = vpop.f32.mrb[0].mxu0
      %v1830 = vadd.f32 %v1683, %v1829
      %v1831 = vpop.f32.mrb[0].mxu0
      %v1832 = vadd.f32 %v1683, %v1831
      %v1833 = vpop.f32.mrb[0].mxu0
      %v1834 = vadd.f32 %v1687, %v1833
      %v1835 = vpop.f32.mrb[0].mxu0
      %v1836 = vadd.f32 %v1687, %v1835
      %1837 = vmatprep.mubr.bf16.mxu0 0
      %1838 = vmatmul.mubr.bf16.gmra.mrb[0].mxu0 %v1771
      %v1839 = vpop.f32.mrb[0].mxu0
      %v1840 = vadd.f32 %v1691, %v1839
      %v1841 = vpop.f32.mrb[0].mxu0
      %v1842 = vadd.f32 %v1691, %v1841
      %v1843 = vpop.f32.mrb[0].mxu0
      %v1844 = vadd.f32 %v1695, %v1843
      %v1845 = vpop.f32.mrb[0].mxu0
      %v1846 = vadd.f32 %v1695, %v1845
      %1847 = vmatprep.mubr.bf16.mxu0 0
      %1848 = vmatmul.mubr.bf16.gmra.mrb[0].mxu0 %v1772
      %v1849 = vpop.f32.mrb[0].mxu0
      %v1850 = vadd.f32 %v1699, %v1849
      %v1851 = vpop.f32.mrb[0].mxu0
      %v1852 = vadd.f32 %v1699, %v1851
      %v1853 = vpop.f32.mrb[0].mxu0
      %v1854 = vadd.f32 %v1703, %v1853
      %v1855 = vpop.f32.mrb[0].mxu0
      %v1856 = vadd.f32 %v1703, %v1855
      %1857 = vmatprep.mubr.bf16.mxu0 0
      %1858 = vmatmul.mubr.bf16.gmra.mrb[0].mxu0 %v1773
      %v1859 = vpop.f32.mrb[0].mxu0
      %v1860 = vadd.f32 %v1707, %v1859
      %v1861 = vpop.f32.mrb[0].mxu0
      %v1862 = vadd.f32 %v1707, %v1861
      %v1863 = vpop.f32.mrb[0].mxu0
      %v1864 = vadd.f32 %v1711, %v1863
      %v1865 = vpop.f32.mrb[0].mxu0
      %v1866 = vadd.f32 %v1711, %v1865
      %1867 = vmatprep.mubr.bf16.mxu0 0
      %1868 = vmatmul.mubr.bf16.gmra.mrb[0].mxu0 %v1774
      %v1869 = vpop.f32.mrb[0].mxu0
      %v1870 = vadd.f32 %v1715, %v1869
      %v1871 = vpop.f32.mrb[0].mxu0
      %v1872 = vadd.f32 %v1715, %v1871
      %v1873 = vpop.f32.mrb[0].mxu0
      %v1874 = vadd.f32 %v1719, %v1873
      %v1875 = vpop.f32.mrb[0].mxu0
      %v1876 = vadd.f32 %v1719, %v1875
      %1877 = vmatprep.mubr.bf16.mxu0 0
      %1878 = vmatmul.mubr.bf16.gmra.mrb[0].mxu0 %v1775
      %v1879 = vpop.f32.mrb[0].mxu0
      %v1880 = vadd.f32 %v1723, %v1879
      %v1881 = vpop.f32.mrb[0].mxu0
      %v1882 = vadd.f32 %v1723, %v1881
      %v1883 = vpop.f32.mrb[0].mxu0
      %v1884 = vadd.f32 %v1727, %v1883
      %v1885 = vpop.f32.mrb[0].mxu0
      %v1886 = vadd.f32 %v1727, %v1885
      %1887 = vmatprep.mubr.bf16.mxu0 0
      %1888 = vmatmul.mubr.bf16.gmra.mrb[0].mxu0 %v1776
      %v1889 = vpop.f32.mrb[0].mxu0
      %v1890 = vadd.f32 %v1731, %v1889
      %v1891 = vpop.f32.mrb[0].mxu0
      %v1892 = vadd.f32 %v1731, %v1891
      %v1893 = vpop.f32.mrb[0].mxu0
      %v1894 = vadd.f32 %v1735, %v1893
      %v1895 = vpop.f32.mrb[0].mxu0
      %v1896 = vadd.f32 %v1735, %v1895
      %1897 = vdwg.mxu0
      %v1898 = vmax.f32 %v1820, 0.0
      %v1899 = vmax.f32 %v1822, 0.0
      %v1900 = vmax.f32 %v1824, 0.0
      %v1901 = vmax.f32 %v1826, 0.0
      %v1902 = vmax.f32 %v1830, 0.0
      %v1903 = vmax.f32 %v1832, 0.0
      %v1904 = vmax.f32 %v1834, 0.0
      %v1905 = vmax.f32 %v1836, 0.0
      %v1906 = vmax.f32 %v1840, 0.0
      %v1907 = vmax.f32 %v1842, 0.0
      %v1908 = vmax.f32 %v1844, 0.0
      %v1909 = vmax.f32 %v1846, 0.0
      %v1910 = vmax.f32 %v1850, 0.0
      %v1911 = vmax.f32 %v1852, 0.0
      %v1912 = vmax.f32 %v1854, 0.0
      %v1913 = vmax.f32 %v1856, 0.0
      %v1914 = vmax.f32 %v1860, 0.0
      %v1915 = vmax.f32 %v1862, 0.0
      %v1916 = vmax.f32 %v1864, 0.0
      %v1917 = vmax.f32 %v1866, 0.0
      %v1918 = vmax.f32 %v1870, 0.0
      %v1919 = vmax.f32 %v1872, 0.0
      %v1920 = vmax.f32 %v1874, 0.0
      %v1921 = vmax.f32 %v1876, 0.0
      %v1922 = vmax.f32 %v1880, 0.0
      %v1923 = vmax.f32 %v1882, 0.0
      %v1924 = vmax.f32 %v1884, 0.0
      %v1925 = vmax.f32 %v1886, 0.0
      %v1926 = vmax.f32 %v1890, 0.0
      %v1927 = vmax.f32 %v1892, 0.0
      %v1928 = vmax.f32 %v1894, 0.0
      %v1929 = vmax.f32 %v1896, 0.0
      %v1930 = vpack.c.bf16 %v1900, %v1898
      %v1931 = vpack.c.bf16 %v1901, %v1899
      %v1932 = vpack.c.bf16 %v1904, %v1902
      %v1933 = vpack.c.bf16 %v1905, %v1903
      %v1934 = vpack.c.bf16 %v1908, %v1906
      %v1935 = vpack.c.bf16 %v1909, %v1907
      %v1936 = vpack.c.bf16 %v1912, %v1910
      %v1937 = vpack.c.bf16 %v1913, %v1911
      %v1938 = vpack.c.bf16 %v1916, %v1914
      %v1939 = vpack.c.bf16 %v1917, %v1915
      %v1940 = vpack.c.bf16 %v1920, %v1918
      %v1941 = vpack.c.bf16 %v1921, %v1919
      %v1942 = vpack.c.bf16 %v1924, %v1922
      %v1943 = vpack.c.bf16 %v1925, %v1923
      %v1944 = vpack.c.bf16 %v1928, %v1926
      %v1945 = vpack.c.bf16 %v1929, %v1927
      %s1946 = scalar_lea.vmem %s5, 64
      %v1947 = vld [vmem:[%s1946] sm:$0xf]
      %v1948 = vld [vmem:[%s1946 + $0x4] sm:$0xf]
      %v1949 = vld [vmem:[%s1946 + $0x8] sm:$0xf]
      %v1950 = vld [vmem:[%s1946 + $0xc] sm:$0xf]
      %v1951 = vld [vmem:[%s1946 + $0x10] sm:$0xf]
      %v1952 = vld [vmem:[%s1946 + $0x14] sm:$0xf]
      %v1953 = vld [vmem:[%s1946 + $0x18] sm:$0xf]
      %v1954 = vld [vmem:[%s1946 + $0x1c] sm:$0xf]
      %v1955 = vld [vmem:[%s1946 + $0x20] sm:$0xf]
      %v1956 = vld [vmem:[%s1946 + $0x24] sm:$0xf]
      %v1957 = vld [vmem:[%s1946 + $0x28] sm:$0xf]
      %v1958 = vld [vmem:[%s1946 + $0x2c] sm:$0xf]
      %v1959 = vld [vmem:[%s1946 + $0x30] sm:$0xf]
      %v1960 = vld [vmem:[%s1946 + $0x34] sm:$0xf]
      %v1961 = vld [vmem:[%s1946 + $0x38] sm:$0xf]
      %v1962 = vld [vmem:[%s1946 + $0x3c] sm:$0xf]
      %v1979 = vunpack.c.l.b16 %v1947
      %v1980 = vunpack.c.l.b16 %v1948
      %v1981 = vunpack.c.l.b16 %v1949
      %v1982 = vunpack.c.l.b16 %v1950
      %v1983 = vunpack.c.l.b16 %v1951
      %v1984 = vunpack.c.l.b16 %v1952
      %v1985 = vunpack.c.l.b16 %v1953
      %v1986 = vunpack.c.l.b16 %v1954
      %v1987 = vunpack.c.l.b16 %v1955
      %v1988 = vunpack.c.l.b16 %v1956
      %v1989 = vunpack.c.l.b16 %v1957
      %v1990 = vunpack.c.l.b16 %v1958
      %v1991 = vunpack.c.l.b16 %v1959
      %v1992 = vunpack.c.l.b16 %v1960
      %v1993 = vunpack.c.l.b16 %v1961
      %v1994 = vunpack.c.l.b16 %v1962
      %v1995 = vpack.c.b16 %v1980, %v1979
      %v1996 = vpack.c.b16 %v1982, %v1981
      %v1997 = vpack.c.b16 %v1984, %v1983
      %v1998 = vpack.c.b16 %v1986, %v1985
      %v1999 = vpack.c.b16 %v1988, %v1987
      %v2000 = vpack.c.b16 %v1990, %v1989
      %v2001 = vpack.c.b16 %v1992, %v1991
      %v2002 = vpack.c.b16 %v1994, %v1993
      %2011 = vmatprep.subr.bf16.mxu0 %v1931
      %2012 = vmatpush1.bf16.msra.mxu0 %v1930
      %2013 = vmatprep.subr.bf16.mxu0 %v1933
      %2014 = vmatpush1.bf16.msra.mxu0 %v1932
      %2015 = vmatprep.subr.bf16.mxu0 %v1935
      %2016 = vmatpush1.bf16.msra.mxu0 %v1934
      %2017 = vmatprep.subr.bf16.mxu0 %v1937
      %2018 = vmatpush1.bf16.msra.mxu0 %v1936
      %2019 = vmatprep.subr.bf16.mxu0 %v1939
      %2020 = vmatpush1.bf16.msra.mxu0 %v1938
      %2021 = vmatprep.subr.bf16.mxu0 %v1941
      %2022 = vmatpush1.bf16.msra.mxu0 %v1940
      %2023 = vmatprep.subr.bf16.mxu0 %v1943
      %2024 = vmatpush1.bf16.msra.mxu0 %v1942
      %2025 = vmatprep.subr.bf16.mxu0 %v1945
      %2026 = vmatpush1.bf16.msra.mxu0 %v1944
      %2027 = vmatprep.subr.bf16.mxu0 0
      %2028 = vmatpush1.bf16.msra.mxu0 0
      %2029 = vmatprep.subr.bf16.mxu0 0
      %2030 = vmatpush1.bf16.msra.mxu0 0
      %2031 = vmatprep.subr.bf16.mxu0 0
      %2032 = vmatpush1.bf16.msra.mxu0 0
      %2033 = vmatprep.subr.bf16.mxu0 0
      %2034 = vmatpush1.bf16.msra.mxu0 0
      %2035 = vmatprep.subr.bf16.mxu0 0
      %2036 = vmatpush1.bf16.msra.mxu0 0
      %2037 = vmatprep.subr.bf16.mxu0 0
      %2038 = vmatpush1.bf16.msra.mxu0 0
      %2039 = vmatprep.subr.bf16.mxu0 0
      %2040 = vmatpush1.bf16.msra.mxu0 0
      %2041 = vmatprep.subr.bf16.mxu0 0
      %2042 = vmatpush1.bf16.msra.mxu0 0
      %2043 = vmatprep.mubr.bf16.mxu0 0
      %2044 = vmatmul.mubr.bf16.gmra.mrb[0].mxu0 %v1995
      %v2045 = vpop.f32.mrb[0].mxu0
      %v2046 = vadd.f32 0.0, %v2045
      %v2047 = vpop.f32.mrb[0].mxu0
      %v2048 = vadd.f32 0.0, %v2047
      %v2049 = vpop.f32.mrb[0].mxu0
      %v2050 = vadd.f32 0.0, %v2049
      %v2051 = vpop.f32.mrb[0].mxu0
      %v2052 = vadd.f32 0.0, %v2051
      %2053 = vmatprep.mubr.bf16.mxu0 0
      %2054 = vmatmul.mubr.bf16.gmra.mrb[0].mxu0 %v1996
      %v2055 = vpop.f32.mrb[0].mxu0
      %v2056 = vadd.f32 0.0, %v2055
      %v2057 = vpop.f32.mrb[0].mxu0
      %v2058 = vadd.f32 0.0, %v2057
      %v2059 = vpop.f32.mrb[0].mxu0
      %v2060 = vadd.f32 0.0, %v2059
      %v2061 = vpop.f32.mrb[0].mxu0
      %v2062 = vadd.f32 0.0, %v2061
      %2063 = vmatprep.mubr.bf16.mxu0 0
      %2064 = vmatmul.mubr.bf16.gmra.mrb[0].mxu0 %v1997
      %v2065 = vpop.f32.mrb[0].mxu0
      %v2066 = vadd.f32 0.0, %v2065
      %v2067 = vpop.f32.mrb[0].mxu0
      %v2068 = vadd.f32 0.0, %v2067
      %v2069 = vpop.f32.mrb[0].mxu0
      %v2070 = vadd.f32 0.0, %v2069
      %v2071 = vpop.f32.mrb[0].mxu0
      %v2072 = vadd.f32 0.0, %v2071
      %2073 = vmatprep.mubr.bf16.mxu0 0
      %2074 = vmatmul.mubr.bf16.gmra.mrb[0].mxu0 %v1998
      %v2075 = vpop.f32.mrb[0].mxu0
      %v2076 = vadd.f32 0.0, %v2075
      %v2077 = vpop.f32.mrb[0].mxu0
      %v2078 = vadd.f32 0.0, %v2077
      %v2079 = vpop.f32.mrb[0].mxu0
      %v2080 = vadd.f32 0.0, %v2079
      %v2081 = vpop.f32.mrb[0].mxu0
      %v2082 = vadd.f32 0.0, %v2081
      %2083 = vmatprep.mubr.bf16.mxu0 0
      %2084 = vmatmul.mubr.bf16.gmra.mrb[0].mxu0 %v1999
      %v2085 = vpop.f32.mrb[0].mxu0
      %v2086 = vadd.f32 0.0, %v2085
      %v2087 = vpop.f32.mrb[0].mxu0
      %v2088 = vadd.f32 0.0, %v2087
      %v2089 = vpop.f32.mrb[0].mxu0
      %v2090 = vadd.f32 0.0, %v2089
      %v2091 = vpop.f32.mrb[0].mxu0
      %v2092 = vadd.f32 0.0, %v2091
      %2093 = vmatprep.mubr.bf16.mxu0 0
      %2094 = vmatmul.mubr.bf16.gmra.mrb[0].mxu0 %v2000
      %v2095 = vpop.f32.mrb[0].mxu0
      %v2096 = vadd.f32 0.0, %v2095
      %v2097 = vpop.f32.mrb[0].mxu0
      %v2098 = vadd.f32 0.0, %v2097
      %v2099 = vpop.f32.mrb[0].mxu0
      %v2100 = vadd.f32 0.0, %v2099
      %v2101 = vpop.f32.mrb[0].mxu0
      %v2102 = vadd.f32 0.0, %v2101
      %2103 = vmatprep.mubr.bf16.mxu0 0
      %2104 = vmatmul.mubr.bf16.gmra.mrb[0].mxu0 %v2001
      %v2105 = vpop.f32.mrb[0].mxu0
      %v2106 = vadd.f32 0.0, %v2105
      %v2107 = vpop.f32.mrb[0].mxu0
      %v2108 = vadd.f32 0.0, %v2107
      %v2109 = vpop.f32.mrb[0].mxu0
      %v2110 = vadd.f32 0.0, %v2109
      %v2111 = vpop.f32.mrb[0].mxu0
      %v2112 = vadd.f32 0.0, %v2111
      %2113 = vmatprep.mubr.bf16.mxu0 0
      %2114 = vmatmul.mubr.bf16.gmra.mrb[0].mxu0 %v2002
      %v2115 = vpop.f32.mrb[0].mxu0
      %v2116 = vadd.f32 0.0, %v2115
      %v2117 = vpop.f32.mrb[0].mxu0
      %v2118 = vadd.f32 0.0, %v2117
      %v2119 = vpop.f32.mrb[0].mxu0
      %v2120 = vadd.f32 0.0, %v2119
      %v2121 = vpop.f32.mrb[0].mxu0
      %v2122 = vadd.f32 0.0, %v2121
      %2123 = vdwg.mxu0
      %v2124 = vadd.f32 %v1576, %v2046
      %v2125 = vadd.f32 %v1577, %v2048
      %v2126 = vadd.f32 %v1578, %v2050
      %v2127 = vadd.f32 %v1579, %v2052
      %v2128 = vadd.f32 %v1580, %v2056
      %v2129 = vadd.f32 %v1581, %v2058
      %v2130 = vadd.f32 %v1582, %v2060
      %v2131 = vadd.f32 %v1583, %v2062
      %v2132 = vadd.f32 %v1584, %v2066
      %v2133 = vadd.f32 %v1585, %v2068
      %v2134 = vadd.f32 %v1586, %v2070
      %v2135 = vadd.f32 %v1587, %v2072
      %v2136 = vadd.f32 %v1588, %v2076
      %v2137 = vadd.f32 %v1589, %v2078
      %v2138 = vadd.f32 %v1590, %v2080
      %v2139 = vadd.f32 %v1591, %v2082
      %v2140 = vadd.f32 %v1592, %v2086
      %v2141 = vadd.f32 %v1593, %v2088
      %v2142 = vadd.f32 %v1594, %v2090
      %v2143 = vadd.f32 %v1595, %v2092
      %v2144 = vadd.f32 %v1596, %v2096
      %v2145 = vadd.f32 %v1597, %v2098
      %v2146 = vadd.f32 %v1598, %v2100
      %v2147 = vadd.f32 %v1599, %v2102
      %v2148 = vadd.f32 %v1600, %v2106
      %v2149 = vadd.f32 %v1601, %v2108
      %v2150 = vadd.f32 %v1602, %v2110
      %v2151 = vadd.f32 %v1603, %v2112
      %v2152 = vadd.f32 %v1604, %v2116
      %v2153 = vadd.f32 %v1605, %v2118
      %v2154 = vadd.f32 %v1606, %v2120
      %v2155 = vadd.f32 %v1607, %v2122
      %2156 = vset.pattern.permute.xlu0 2
      %2157 = vperm.xlu0 %2156, %v383
      %v2158 = vpop.permute.xlu0 %2157
      %2160 = vset.pattern.permute.xlu0 2
      %2161 = vperm.xlu0 %2160, %v384
      %v2162 = vpop.permute.xlu0 %2161
      %2164 = vset.pattern.permute.xlu0 2
      %2165 = vperm.xlu0 %2164, %v385
      %v2166 = vpop.permute.xlu0 %2165
      %2168 = vset.pattern.permute.xlu0 2
      %2169 = vperm.xlu0 %2168, %v386
      %v2170 = vpop.permute.xlu0 %2169
      %2172 = vset.pattern.permute.xlu0 2
      %2173 = vperm.xlu0 %2172, %v387
      %v2174 = vpop.permute.xlu0 %2173
      %2176 = vset.pattern.permute.xlu0 2
      %2177 = vperm.xlu0 %2176, %v388
      %v2178 = vpop.permute.xlu0 %2177
      %2180 = vset.pattern.permute.xlu0 2
      %2181 = vperm.xlu0 %2180, %v389
      %v2182 = vpop.permute.xlu0 %2181
      %2184 = vset.pattern.permute.xlu0 2
      %2185 = vperm.xlu0 %2184, %v390
      %v2186 = vpop.permute.xlu0 %2185
      %2188 = vset.pattern.permute.xlu0 2
      %2189 = vperm.xlu0 %2188, %v391
      %v2190 = vpop.permute.xlu0 %2189
      %2192 = vset.pattern.permute.xlu0 2
      %2193 = vperm.xlu0 %2192, %v392
      %v2194 = vpop.permute.xlu0 %2193
      %2196 = vset.pattern.permute.xlu0 2
      %2197 = vperm.xlu0 %2196, %v393
      %v2198 = vpop.permute.xlu0 %2197
      %2200 = vset.pattern.permute.xlu0 2
      %2201 = vperm.xlu0 %2200, %v394
      %v2202 = vpop.permute.xlu0 %2201
      %2204 = vset.pattern.permute.xlu0 2
      %2205 = vperm.xlu0 %2204, %v395
      %v2206 = vpop.permute.xlu0 %2205
      %2208 = vset.pattern.permute.xlu0 2
      %2209 = vperm.xlu0 %2208, %v396
      %v2210 = vpop.permute.xlu0 %2209
      %2212 = vset.pattern.permute.xlu0 2
      %2213 = vperm.xlu0 %2212, %v397
      %v2214 = vpop.permute.xlu0 %2213
      %2216 = vset.pattern.permute.xlu0 2
      %2217 = vperm.xlu0 %2216, %v398
      %v2218 = vpop.permute.xlu0 %2217
      %v2220 = vadd.f32 %v2124, %v2158
      %v2221 = vadd.f32 %v2125, %v2158
      %v2222 = vadd.f32 %v2126, %v2162
      %v2223 = vadd.f32 %v2127, %v2162
      %v2224 = vadd.f32 %v2128, %v2166
      %v2225 = vadd.f32 %v2129, %v2166
      %v2226 = vadd.f32 %v2130, %v2170
      %v2227 = vadd.f32 %v2131, %v2170
      %v2228 = vadd.f32 %v2132, %v2174
      %v2229 = vadd.f32 %v2133, %v2174
      %v2230 = vadd.f32 %v2134, %v2178
      %v2231 = vadd.f32 %v2135, %v2178
      %v2232 = vadd.f32 %v2136, %v2182
      %v2233 = vadd.f32 %v2137, %v2182
      %v2234 = vadd.f32 %v2138, %v2186
      %v2235 = vadd.f32 %v2139, %v2186
      %v2236 = vadd.f32 %v2140, %v2190
      %v2237 = vadd.f32 %v2141, %v2190
      %v2238 = vadd.f32 %v2142, %v2194
      %v2239 = vadd.f32 %v2143, %v2194
      %v2240 = vadd.f32 %v2144, %v2198
      %v2241 = vadd.f32 %v2145, %v2198
      %v2242 = vadd.f32 %v2146, %v2202
      %v2243 = vadd.f32 %v2147, %v2202
      %v2244 = vadd.f32 %v2148, %v2206
      %v2245 = vadd.f32 %v2149, %v2206
      %v2246 = vadd.f32 %v2150, %v2210
      %v2247 = vadd.f32 %v2151, %v2210
      %v2248 = vadd.f32 %v2152, %v2214
      %v2249 = vadd.f32 %v2153, %v2214
      %v2250 = vadd.f32 %v2154, %v2218
      %v2251 = vadd.f32 %v2155, %v2218
      %v2252 = vmax.f32 %v2220, 0.0
      %v2253 = vmax.f32 %v2221, 0.0
      %v2254 = vmax.f32 %v2222, 0.0
      %v2255 = vmax.f32 %v2223, 0.0
      %v2256 = vmax.f32 %v2224, 0.0
      %v2257 = vmax.f32 %v2225, 0.0
      %v2258 = vmax.f32 %v2226, 0.0
      %v2259 = vmax.f32 %v2227, 0.0
      %v2260 = vmax.f32 %v2228, 0.0
      %v2261 = vmax.f32 %v2229, 0.0
      %v2262 = vmax.f32 %v2230, 0.0
      %v2263 = vmax.f32 %v2231, 0.0
      %v2264 = vmax.f32 %v2232, 0.0
      %v2265 = vmax.f32 %v2233, 0.0
      %v2266 = vmax.f32 %v2234, 0.0
      %v2267 = vmax.f32 %v2235, 0.0
      %v2268 = vmax.f32 %v2236, 0.0
      %v2269 = vmax.f32 %v2237, 0.0
      %v2270 = vmax.f32 %v2238, 0.0
      %v2271 = vmax.f32 %v2239, 0.0
      %v2272 = vmax.f32 %v2240, 0.0
      %v2273 = vmax.f32 %v2241, 0.0
      %v2274 = vmax.f32 %v2242, 0.0
      %v2275 = vmax.f32 %v2243, 0.0
      %v2276 = vmax.f32 %v2244, 0.0
      %v2277 = vmax.f32 %v2245, 0.0
      %v2278 = vmax.f32 %v2246, 0.0
      %v2279 = vmax.f32 %v2247, 0.0
      %v2280 = vmax.f32 %v2248, 0.0
      %v2281 = vmax.f32 %v2249, 0.0
      %v2282 = vmax.f32 %v2250, 0.0
      %v2283 = vmax.f32 %v2251, 0.0
      %v2284 = vpack.c.bf16 %v2254, %v2252
      %v2285 = vpack.c.bf16 %v2255, %v2253
      %v2286 = vpack.c.bf16 %v2258, %v2256
      %v2287 = vpack.c.bf16 %v2259, %v2257
      %v2288 = vpack.c.bf16 %v2262, %v2260
      %v2289 = vpack.c.bf16 %v2263, %v2261
      %v2290 = vpack.c.bf16 %v2266, %v2264
      %v2291 = vpack.c.bf16 %v2267, %v2265
      %v2292 = vpack.c.bf16 %v2270, %v2268
      %v2293 = vpack.c.bf16 %v2271, %v2269
      %v2294 = vpack.c.bf16 %v2274, %v2272
      %v2295 = vpack.c.bf16 %v2275, %v2273
      %v2296 = vpack.c.bf16 %v2278, %v2276
      %v2297 = vpack.c.bf16 %v2279, %v2277
      %v2298 = vpack.c.bf16 %v2282, %v2280
      %v2299 = vpack.c.bf16 %v2283, %v2281
      %s2300 = scalar_lea.vmem %s3, 128
      %v2301 = vld [vmem:[%s2300] sm:$0xf]
      %v2302 = vld [vmem:[%s2300 + $0x4] sm:$0xf]
      %v2303 = vld [vmem:[%s2300 + $0x8] sm:$0xf]
      %v2304 = vld [vmem:[%s2300 + $0xc] sm:$0xf]
      %v2305 = vld [vmem:[%s2300 + $0x10] sm:$0xf]
      %v2306 = vld [vmem:[%s2300 + $0x14] sm:$0xf]
      %v2307 = vld [vmem:[%s2300 + $0x18] sm:$0xf]
      %v2308 = vld [vmem:[%s2300 + $0x1c] sm:$0xf]
      %v2309 = vld [vmem:[%s2300 + $0x20] sm:$0xf]
      %v2310 = vld [vmem:[%s2300 + $0x24] sm:$0xf]
      %v2311 = vld [vmem:[%s2300 + $0x28] sm:$0xf]
      %v2312 = vld [vmem:[%s2300 + $0x2c] sm:$0xf]
      %v2313 = vld [vmem:[%s2300 + $0x30] sm:$0xf]
      %v2314 = vld [vmem:[%s2300 + $0x34] sm:$0xf]
      %v2315 = vld [vmem:[%s2300 + $0x38] sm:$0xf]
      %v2316 = vld [vmem:[%s2300 + $0x3c] sm:$0xf]
      %2317 = vset.pattern.permute.xlu0 2
      %2318 = vperm.xlu0 %2317, %v998
      %v2319 = vpop.permute.xlu0 %2318
      %2321 = vset.pattern.permute.xlu0 2
      %2322 = vperm.xlu0 %2321, %v999
      %v2323 = vpop.permute.xlu0 %2322
      %2325 = vset.pattern.permute.xlu0 2
      %2326 = vperm.xlu0 %2325, %v1000
      %v2327 = vpop.permute.xlu0 %2326
      %2329 = vset.pattern.permute.xlu0 2
      %2330 = vperm.xlu0 %2329, %v1001
      %v2331 = vpop.permute.xlu0 %2330
      %2333 = vset.pattern.permute.xlu0 2
      %2334 = vperm.xlu0 %2333, %v1002
      %v2335 = vpop.permute.xlu0 %2334
      %2337 = vset.pattern.permute.xlu0 2
      %2338 = vperm.xlu0 %2337, %v1003
      %v2339 = vpop.permute.xlu0 %2338
      %2341 = vset.pattern.permute.xlu0 2
      %2342 = vperm.xlu0 %2341, %v1004
      %v2343 = vpop.permute.xlu0 %2342
      %2345 = vset.pattern.permute.xlu0 2
      %2346 = vperm.xlu0 %2345, %v1005
      %v2347 = vpop.permute.xlu0 %2346
      %2349 = vset.pattern.permute.xlu0 2
      %2350 = vperm.xlu0 %2349, %v1006
      %v2351 = vpop.permute.xlu0 %2350
      %2353 = vset.pattern.permute.xlu0 2
      %2354 = vperm.xlu0 %2353, %v1007
      %v2355 = vpop.permute.xlu0 %2354
      %2357 = vset.pattern.permute.xlu0 2
      %2358 = vperm.xlu0 %2357, %v1008
      %v2359 = vpop.permute.xlu0 %2358
      %2361 = vset.pattern.permute.xlu0 2
      %2362 = vperm.xlu0 %2361, %v1009
      %v2363 = vpop.permute.xlu0 %2362
      %2365 = vset.pattern.permute.xlu0 2
      %2366 = vperm.xlu0 %2365, %v1010
      %v2367 = vpop.permute.xlu0 %2366
      %2369 = vset.pattern.permute.xlu0 2
      %2370 = vperm.xlu0 %2369, %v1011
      %v2371 = vpop.permute.xlu0 %2370
      %2373 = vset.pattern.permute.xlu0 2
      %2374 = vperm.xlu0 %2373, %v1012
      %v2375 = vpop.permute.xlu0 %2374
      %2377 = vset.pattern.permute.xlu0 2
      %2378 = vperm.xlu0 %2377, %v1013
      %v2379 = vpop.permute.xlu0 %2378
      %v2397 = vunpack.c.l.b16 %v2301
      %v2398 = vunpack.c.l.b16 %v2302
      %v2399 = vunpack.c.l.b16 %v2303
      %v2400 = vunpack.c.l.b16 %v2304
      %v2401 = vunpack.c.l.b16 %v2305
      %v2402 = vunpack.c.l.b16 %v2306
      %v2403 = vunpack.c.l.b16 %v2307
      %v2404 = vunpack.c.l.b16 %v2308
      %v2405 = vunpack.c.l.b16 %v2309
      %v2406 = vunpack.c.l.b16 %v2310
      %v2407 = vunpack.c.l.b16 %v2311
      %v2408 = vunpack.c.l.b16 %v2312
      %v2409 = vunpack.c.l.b16 %v2313
      %v2410 = vunpack.c.l.b16 %v2314
      %v2411 = vunpack.c.l.b16 %v2315
      %v2412 = vunpack.c.l.b16 %v2316
      %v2413 = vpack.c.b16 %v2398, %v2397
      %v2414 = vpack.c.b16 %v2400, %v2399
      %v2415 = vpack.c.b16 %v2402, %v2401
      %v2416 = vpack.c.b16 %v2404, %v2403
      %v2417 = vpack.c.b16 %v2406, %v2405
      %v2418 = vpack.c.b16 %v2408, %v2407
      %v2419 = vpack.c.b16 %v2410, %v2409
      %v2420 = vpack.c.b16 %v2412, %v2411
      %2429 = vmatprep.subr.bf16.mxu0 %v2285
      %2430 = vmatpush1.bf16.msra.mxu0 %v2284
      %2431 = vmatprep.subr.bf16.mxu0 %v2287
      %2432 = vmatpush1.bf16.msra.mxu0 %v2286
      %2433 = vmatprep.subr.bf16.mxu0 %v2289
      %2434 = vmatpush1.bf16.msra.mxu0 %v2288
      %2435 = vmatprep.subr.bf16.mxu0 %v2291
      %2436 = vmatpush1.bf16.msra.mxu0 %v2290
      %2437 = vmatprep.subr.bf16.mxu0 %v2293
      %2438 = vmatpush1.bf16.msra.mxu0 %v2292
      %2439 = vmatprep.subr.bf16.mxu0 %v2295
      %2440 = vmatpush1.bf16.msra.mxu0 %v2294
      %2441 = vmatprep.subr.bf16.mxu0 %v2297
      %2442 = vmatpush1.bf16.msra.mxu0 %v2296
      %2443 = vmatprep.subr.bf16.mxu0 %v2299
      %2444 = vmatpush1.bf16.msra.mxu0 %v2298
      %2445 = vmatprep.subr.bf16.mxu0 0
      %2446 = vmatpush1.bf16.msra.mxu0 0
      %2447 = vmatprep.subr.bf16.mxu0 0
      %2448 = vmatpush1.bf16.msra.mxu0 0
      %2449 = vmatprep.subr.bf16.mxu0 0
      %2450 = vmatpush1.bf16.msra.mxu0 0
      %2451 = vmatprep.subr.bf16.mxu0 0
      %2452 = vmatpush1.bf16.msra.mxu0 0
      %2453 = vmatprep.subr.bf16.mxu0 0
      %2454 = vmatpush1.bf16.msra.mxu0 0
      %2455 = vmatprep.subr.bf16.mxu0 0
      %2456 = vmatpush1.bf16.msra.mxu0 0
      %2457 = vmatprep.subr.bf16.mxu0 0
      %2458 = vmatpush1.bf16.msra.mxu0 0
      %2459 = vmatprep.subr.bf16.mxu0 0
      %2460 = vmatpush1.bf16.msra.mxu0 0
      %2461 = vmatprep.mubr.bf16.mxu0 0
      %2462 = vmatmul.mubr.bf16.gmra.mrb[0].mxu0 %v2413
      %v2463 = vpop.f32.mrb[0].mxu0
      %v2464 = vadd.f32 %v2319, %v2463
      %v2465 = vpop.f32.mrb[0].mxu0
      %v2466 = vadd.f32 %v2319, %v2465
      %v2467 = vpop.f32.mrb[0].mxu0
      %v2468 = vadd.f32 %v2323, %v2467
      %v2469 = vpop.f32.mrb[0].mxu0
      %v2470 = vadd.f32 %v2323, %v2469
      %2471 = vmatprep.mubr.bf16.mxu0 0
      %2472 = vmatmul.mubr.bf16.gmra.mrb[0].mxu0 %v2414
      %v2473 = vpop.f32.mrb[0].mxu0
      %v2474 = vadd.f32 %v2327, %v2473
      %v2475 = vpop.f32.mrb[0].mxu0
      %v2476 = vadd.f32 %v2327, %v2475
      %v2477 = vpop.f32.mrb[0].mxu0
      %v2478 = vadd.f32 %v2331, %v2477
      %v2479 = vpop.f32.mrb[0].mxu0
      %v2480 = vadd.f32 %v2331, %v2479
      %2481 = vmatprep.mubr.bf16.mxu0 0
      %2482 = vmatmul.mubr.bf16.gmra.mrb[0].mxu0 %v2415
      %v2483 = vpop.f32.mrb[0].mxu0
      %v2484 = vadd.f32 %v2335, %v2483
      %v2485 = vpop.f32.mrb[0].mxu0
      %v2486 = vadd.f32 %v2335, %v2485
      %v2487 = vpop.f32.mrb[0].mxu0
      %v2488 = vadd.f32 %v2339, %v2487
      %v2489 = vpop.f32.mrb[0].mxu0
      %v2490 = vadd.f32 %v2339, %v2489
      %2491 = vmatprep.mubr.bf16.mxu0 0
      %2492 = vmatmul.mubr.bf16.gmra.mrb[0].mxu0 %v2416
      %v2493 = vpop.f32.mrb[0].mxu0
      %v2494 = vadd.f32 %v2343, %v2493
      %v2495 = vpop.f32.mrb[0].mxu0
      %v2496 = vadd.f32 %v2343, %v2495
      %v2497 = vpop.f32.mrb[0].mxu0
      %v2498 = vadd.f32 %v2347, %v2497
      %v2499 = vpop.f32.mrb[0].mxu0
      %v2500 = vadd.f32 %v2347, %v2499
      %2501 = vmatprep.mubr.bf16.mxu0 0
      %2502 = vmatmul.mubr.bf16.gmra.mrb[0].mxu0 %v2417
      %v2503 = vpop.f32.mrb[0].mxu0
      %v2504 = vadd.f32 %v2351, %v2503
      %v2505 = vpop.f32.mrb[0].mxu0
      %v2506 = vadd.f32 %v2351, %v2505
      %v2507 = vpop.f32.mrb[0].mxu0
      %v2508 = vadd.f32 %v2355, %v2507
      %v2509 = vpop.f32.mrb[0].mxu0
      %v2510 = vadd.f32 %v2355, %v2509
      %2511 = vmatprep.mubr.bf16.mxu0 0
      %2512 = vmatmul.mubr.bf16.gmra.mrb[0].mxu0 %v2418
      %v2513 = vpop.f32.mrb[0].mxu0
      %v2514 = vadd.f32 %v2359, %v2513
      %v2515 = vpop.f32.mrb[0].mxu0
      %v2516 = vadd.f32 %v2359, %v2515
      %v2517 = vpop.f32.mrb[0].mxu0
      %v2518 = vadd.f32 %v2363, %v2517
      %v2519 = vpop.f32.mrb[0].mxu0
      %v2520 = vadd.f32 %v2363, %v2519
      %2521 = vmatprep.mubr.bf16.mxu0 0
      %2522 = vmatmul.mubr.bf16.gmra.mrb[0].mxu0 %v2419
      %v2523 = vpop.f32.mrb[0].mxu0
      %v2524 = vadd.f32 %v2367, %v2523
      %v2525 = vpop.f32.mrb[0].mxu0
      %v2526 = vadd.f32 %v2367, %v2525
      %v2527 = vpop.f32.mrb[0].mxu0
      %v2528 = vadd.f32 %v2371, %v2527
      %v2529 = vpop.f32.mrb[0].mxu0
      %v2530 = vadd.f32 %v2371, %v2529
      %2531 = vmatprep.mubr.bf16.mxu0 0
      %2532 = vmatmul.mubr.bf16.gmra.mrb[0].mxu0 %v2420
      %v2533 = vpop.f32.mrb[0].mxu0
      %v2534 = vadd.f32 %v2375, %v2533
      %v2535 = vpop.f32.mrb[0].mxu0
      %v2536 = vadd.f32 %v2375, %v2535
      %v2537 = vpop.f32.mrb[0].mxu0
      %v2538 = vadd.f32 %v2379, %v2537
      %v2539 = vpop.f32.mrb[0].mxu0
      %v2540 = vadd.f32 %v2379, %v2539
      %2541 = vdwg.mxu0
      %v2542 = vmax.f32 %v2464, 0.0
      %v2543 = vmax.f32 %v2466, 0.0
      %v2544 = vmax.f32 %v2468, 0.0
      %v2545 = vmax.f32 %v2470, 0.0
      %v2546 = vmax.f32 %v2474, 0.0
      %v2547 = vmax.f32 %v2476, 0.0
      %v2548 = vmax.f32 %v2478, 0.0
      %v2549 = vmax.f32 %v2480, 0.0
      %v2550 = vmax.f32 %v2484, 0.0
      %v2551 = vmax.f32 %v2486, 0.0
      %v2552 = vmax.f32 %v2488, 0.0
      %v2553 = vmax.f32 %v2490, 0.0
      %v2554 = vmax.f32 %v2494, 0.0
      %v2555 = vmax.f32 %v2496, 0.0
      %v2556 = vmax.f32 %v2498, 0.0
      %v2557 = vmax.f32 %v2500, 0.0
      %v2558 = vmax.f32 %v2504, 0.0
      %v2559 = vmax.f32 %v2506, 0.0
      %v2560 = vmax.f32 %v2508, 0.0
      %v2561 = vmax.f32 %v2510, 0.0
      %v2562 = vmax.f32 %v2514, 0.0
      %v2563 = vmax.f32 %v2516, 0.0
      %v2564 = vmax.f32 %v2518, 0.0
      %v2565 = vmax.f32 %v2520, 0.0
      %v2566 = vmax.f32 %v2524, 0.0
      %v2567 = vmax.f32 %v2526, 0.0
      %v2568 = vmax.f32 %v2528, 0.0
      %v2569 = vmax.f32 %v2530, 0.0
      %v2570 = vmax.f32 %v2534, 0.0
      %v2571 = vmax.f32 %v2536, 0.0
      %v2572 = vmax.f32 %v2538, 0.0
      %v2573 = vmax.f32 %v2540, 0.0
      %v2574 = vpack.c.bf16 %v2544, %v2542
      %v2575 = vpack.c.bf16 %v2545, %v2543
      %v2576 = vpack.c.bf16 %v2548, %v2546
      %v2577 = vpack.c.bf16 %v2549, %v2547
      %v2578 = vpack.c.bf16 %v2552, %v2550
      %v2579 = vpack.c.bf16 %v2553, %v2551
      %v2580 = vpack.c.bf16 %v2556, %v2554
      %v2581 = vpack.c.bf16 %v2557, %v2555
      %v2582 = vpack.c.bf16 %v2560, %v2558
      %v2583 = vpack.c.bf16 %v2561, %v2559
      %v2584 = vpack.c.bf16 %v2564, %v2562
      %v2585 = vpack.c.bf16 %v2565, %v2563
      %v2586 = vpack.c.bf16 %v2568, %v2566
      %v2587 = vpack.c.bf16 %v2569, %v2567
      %v2588 = vpack.c.bf16 %v2572, %v2570
      %v2589 = vpack.c.bf16 %v2573, %v2571
      %s2590 = scalar_lea.vmem %s5, 128
      %v2591 = vld [vmem:[%s2590] sm:$0xf]
      %v2592 = vld [vmem:[%s2590 + $0x4] sm:$0xf]
      %v2593 = vld [vmem:[%s2590 + $0x8] sm:$0xf]
      %v2594 = vld [vmem:[%s2590 + $0xc] sm:$0xf]
      %v2595 = vld [vmem:[%s2590 + $0x10] sm:$0xf]
      %v2596 = vld [vmem:[%s2590 + $0x14] sm:$0xf]
      %v2597 = vld [vmem:[%s2590 + $0x18] sm:$0xf]
      %v2598 = vld [vmem:[%s2590 + $0x1c] sm:$0xf]
      %v2599 = vld [vmem:[%s2590 + $0x20] sm:$0xf]
      %v2600 = vld [vmem:[%s2590 + $0x24] sm:$0xf]
      %v2601 = vld [vmem:[%s2590 + $0x28] sm:$0xf]
      %v2602 = vld [vmem:[%s2590 + $0x2c] sm:$0xf]
      %v2603 = vld [vmem:[%s2590 + $0x30] sm:$0xf]
      %v2604 = vld [vmem:[%s2590 + $0x34] sm:$0xf]
      %v2605 = vld [vmem:[%s2590 + $0x38] sm:$0xf]
      %v2606 = vld [vmem:[%s2590 + $0x3c] sm:$0xf]
      %v2623 = vunpack.c.l.b16 %v2591
      %v2624 = vunpack.c.l.b16 %v2592
      %v2625 = vunpack.c.l.b16 %v2593
      %v2626 = vunpack.c.l.b16 %v2594
      %v2627 = vunpack.c.l.b16 %v2595
      %v2628 = vunpack.c.l.b16 %v2596
      %v2629 = vunpack.c.l.b16 %v2597
      %v2630 = vunpack.c.l.b16 %v2598
      %v2631 = vunpack.c.l.b16 %v2599
      %v2632 = vunpack.c.l.b16 %v2600
      %v2633 = vunpack.c.l.b16 %v2601
      %v2634 = vunpack.c.l.b16 %v2602
      %v2635 = vunpack.c.l.b16 %v2603
      %v2636 = vunpack.c.l.b16 %v2604
      %v2637 = vunpack.c.l.b16 %v2605
      %v2638 = vunpack.c.l.b16 %v2606
      %v2639 = vpack.c.b16 %v2624, %v2623
      %v2640 = vpack.c.b16 %v2626, %v2625
      %v2641 = vpack.c.b16 %v2628, %v2627
      %v2642 = vpack.c.b16 %v2630, %v2629
      %v2643 = vpack.c.b16 %v2632, %v2631
      %v2644 = vpack.c.b16 %v2634, %v2633
      %v2645 = vpack.c.b16 %v2636, %v2635
      %v2646 = vpack.c.b16 %v2638, %v2637
      %2655 = vmatprep.subr.bf16.mxu0 %v2575
      %2656 = vmatpush1.bf16.msra.mxu0 %v2574
      %2657 = vmatprep.subr.bf16.mxu0 %v2577
      %2658 = vmatpush1.bf16.msra.mxu0 %v2576
      %2659 = vmatprep.subr.bf16.mxu0 %v2579
      %2660 = vmatpush1.bf16.msra.mxu0 %v2578
      %2661 = vmatprep.subr.bf16.mxu0 %v2581
      %2662 = vmatpush1.bf16.msra.mxu0 %v2580
      %2663 = vmatprep.subr.bf16.mxu0 %v2583
      %2664 = vmatpush1.bf16.msra.mxu0 %v2582
      %2665 = vmatprep.subr.bf16.mxu0 %v2585
      %2666 = vmatpush1.bf16.msra.mxu0 %v2584
      %2667 = vmatprep.subr.bf16.mxu0 %v2587
      %2668 = vmatpush1.bf16.msra.mxu0 %v2586
      %2669 = vmatprep.subr.bf16.mxu0 %v2589
      %2670 = vmatpush1.bf16.msra.mxu0 %v2588
      %2671 = vmatprep.subr.bf16.mxu0 0
      %2672 = vmatpush1.bf16.msra.mxu0 0
      %2673 = vmatprep.subr.bf16.mxu0 0
      %2674 = vmatpush1.bf16.msra.mxu0 0
      %2675 = vmatprep.subr.bf16.mxu0 0
      %2676 = vmatpush1.bf16.msra.mxu0 0
      %2677 = vmatprep.subr.bf16.mxu0 0
      %2678 = vmatpush1.bf16.msra.mxu0 0
      %2679 = vmatprep.subr.bf16.mxu0 0
      %2680 = vmatpush1.bf16.msra.mxu0 0
      %2681 = vmatprep.subr.bf16.mxu0 0
      %2682 = vmatpush1.bf16.msra.mxu0 0
      %2683 = vmatprep.subr.bf16.mxu0 0
      %2684 = vmatpush1.bf16.msra.mxu0 0
      %2685 = vmatprep.subr.bf16.mxu0 0
      %2686 = vmatpush1.bf16.msra.mxu0 0
      %2687 = vmatprep.mubr.bf16.mxu0 0
      %2688 = vmatmul.mubr.bf16.gmra.mrb[0].mxu0 %v2639
      %v2689 = vpop.f32.mrb[0].mxu0
      %v2690 = vadd.f32 0.0, %v2689
      %v2691 = vpop.f32.mrb[0].mxu0
      %v2692 = vadd.f32 0.0, %v2691
      %v2693 = vpop.f32.mrb[0].mxu0
      %v2694 = vadd.f32 0.0, %v2693
      %v2695 = vpop.f32.mrb[0].mxu0
      %v2696 = vadd.f32 0.0, %v2695
      %2697 = vmatprep.mubr.bf16.mxu0 0
      %2698 = vmatmul.mubr.bf16.gmra.mrb[0].mxu0 %v2640
      %v2699 = vpop.f32.mrb[0].mxu0
      %v2700 = vadd.f32 0.0, %v2699
      %v2701 = vpop.f32.mrb[0].mxu0
      %v2702 = vadd.f32 0.0, %v2701
      %v2703 = vpop.f32.mrb[0].mxu0
      %v2704 = vadd.f32 0.0, %v2703
      %v2705 = vpop.f32.mrb[0].mxu0
      %v2706 = vadd.f32 0.0, %v2705
      %2707 = vmatprep.mubr.bf16.mxu0 0
      %2708 = vmatmul.mubr.bf16.gmra.mrb[0].mxu0 %v2641
      %v2709 = vpop.f32.mrb[0].mxu0
      %v2710 = vadd.f32 0.0, %v2709
      %v2711 = vpop.f32.mrb[0].mxu0
      %v2712 = vadd.f32 0.0, %v2711
      %v2713 = vpop.f32.mrb[0].mxu0
      %v2714 = vadd.f32 0.0, %v2713
      %v2715 = vpop.f32.mrb[0].mxu0
      %v2716 = vadd.f32 0.0, %v2715
      %2717 = vmatprep.mubr.bf16.mxu0 0
      %2718 = vmatmul.mubr.bf16.gmra.mrb[0].mxu0 %v2642
      %v2719 = vpop.f32.mrb[0].mxu0
      %v2720 = vadd.f32 0.0, %v2719
      %v2721 = vpop.f32.mrb[0].mxu0
      %v2722 = vadd.f32 0.0, %v2721
      %v2723 = vpop.f32.mrb[0].mxu0
      %v2724 = vadd.f32 0.0, %v2723
      %v2725 = vpop.f32.mrb[0].mxu0
      %v2726 = vadd.f32 0.0, %v2725
      %2727 = vmatprep.mubr.bf16.mxu0 0
      %2728 = vmatmul.mubr.bf16.gmra.mrb[0].mxu0 %v2643
      %v2729 = vpop.f32.mrb[0].mxu0
      %v2730 = vadd.f32 0.0, %v2729
      %v2731 = vpop.f32.mrb[0].mxu0
      %v2732 = vadd.f32 0.0, %v2731
      %v2733 = vpop.f32.mrb[0].mxu0
      %v2734 = vadd.f32 0.0, %v2733
      %v2735 = vpop.f32.mrb[0].mxu0
      %v2736 = vadd.f32 0.0, %v2735
      %2737 = vmatprep.mubr.bf16.mxu0 0
      %2738 = vmatmul.mubr.bf16.gmra.mrb[0].mxu0 %v2644
      %v2739 = vpop.f32.mrb[0].mxu0
      %v2740 = vadd.f32 0.0, %v2739
      %v2741 = vpop.f32.mrb[0].mxu0
      %v2742 = vadd.f32 0.0, %v2741
      %v2743 = vpop.f32.mrb[0].mxu0
      %v2744 = vadd.f32 0.0, %v2743
      %v2745 = vpop.f32.mrb[0].mxu0
      %v2746 = vadd.f32 0.0, %v2745
      %2747 = vmatprep.mubr.bf16.mxu0 0
      %2748 = vmatmul.mubr.bf16.gmra.mrb[0].mxu0 %v2645
      %v2749 = vpop.f32.mrb[0].mxu0
      %v2750 = vadd.f32 0.0, %v2749
      %v2751 = vpop.f32.mrb[0].mxu0
      %v2752 = vadd.f32 0.0, %v2751
      %v2753 = vpop.f32.mrb[0].mxu0
      %v2754 = vadd.f32 0.0, %v2753
      %v2755 = vpop.f32.mrb[0].mxu0
      %v2756 = vadd.f32 0.0, %v2755
      %2757 = vmatprep.mubr.bf16.mxu0 0
      %2758 = vmatmul.mubr.bf16.gmra.mrb[0].mxu0 %v2646
      %v2759 = vpop.f32.mrb[0].mxu0
      %v2760 = vadd.f32 0.0, %v2759
      %v2761 = vpop.f32.mrb[0].mxu0
      %v2762 = vadd.f32 0.0, %v2761
      %v2763 = vpop.f32.mrb[0].mxu0
      %v2764 = vadd.f32 0.0, %v2763
      %v2765 = vpop.f32.mrb[0].mxu0
      %v2766 = vadd.f32 0.0, %v2765
      %2767 = vdwg.mxu0
      %v2768 = vadd.f32 %v2220, %v2690
      %v2769 = vadd.f32 %v2221, %v2692
      %v2770 = vadd.f32 %v2222, %v2694
      %v2771 = vadd.f32 %v2223, %v2696
      %v2772 = vadd.f32 %v2224, %v2700
      %v2773 = vadd.f32 %v2225, %v2702
      %v2774 = vadd.f32 %v2226, %v2704
      %v2775 = vadd.f32 %v2227, %v2706
      %v2776 = vadd.f32 %v2228, %v2710
      %v2777 = vadd.f32 %v2229, %v2712
      %v2778 = vadd.f32 %v2230, %v2714
      %v2779 = vadd.f32 %v2231, %v2716
      %v2780 = vadd.f32 %v2232, %v2720
      %v2781 = vadd.f32 %v2233, %v2722
      %v2782 = vadd.f32 %v2234, %v2724
      %v2783 = vadd.f32 %v2235, %v2726
      %v2784 = vadd.f32 %v2236, %v2730
      %v2785 = vadd.f32 %v2237, %v2732
      %v2786 = vadd.f32 %v2238, %v2734
      %v2787 = vadd.f32 %v2239, %v2736
      %v2788 = vadd.f32 %v2240, %v2740
      %v2789 = vadd.f32 %v2241, %v2742
      %v2790 = vadd.f32 %v2242, %v2744
      %v2791 = vadd.f32 %v2243, %v2746
      %v2792 = vadd.f32 %v2244, %v2750
      %v2793 = vadd.f32 %v2245, %v2752
      %v2794 = vadd.f32 %v2246, %v2754
      %v2795 = vadd.f32 %v2247, %v2756
      %v2796 = vadd.f32 %v2248, %v2760
      %v2797 = vadd.f32 %v2249, %v2762
      %v2798 = vadd.f32 %v2250, %v2764
      %v2799 = vadd.f32 %v2251, %v2766
      %2800 = vset.pattern.permute.xlu0 3
      %2801 = vperm.xlu0 %2800, %v383
      %v2802 = vpop.permute.xlu0 %2801
      %2804 = vset.pattern.permute.xlu0 3
      %2805 = vperm.xlu0 %2804, %v384
      %v2806 = vpop.permute.xlu0 %2805
      %2808 = vset.pattern.permute.xlu0 3
      %2809 = vperm.xlu0 %2808, %v385
      %v2810 = vpop.permute.xlu0 %2809
      %2812 = vset.pattern.permute.xlu0 3
      %2813 = vperm.xlu0 %2812, %v386
      %v2814 = vpop.permute.xlu0 %2813
      %2816 = vset.pattern.permute.xlu0 3
      %2817 = vperm.xlu0 %2816, %v387
      %v2818 = vpop.permute.xlu0 %2817
      %2820 = vset.pattern.permute.xlu0 3
      %2821 = vperm.xlu0 %2820, %v388
      %v2822 = vpop.permute.xlu0 %2821
      %2824 = vset.pattern.permute.xlu0 3
      %2825 = vperm.xlu0 %2824, %v389
      %v2826 = vpop.permute.xlu0 %2825
      %2828 = vset.pattern.permute.xlu0 3
      %2829 = vperm.xlu0 %2828, %v390
      %v2830 = vpop.permute.xlu0 %2829
      %2832 = vset.pattern.permute.xlu0 3
      %2833 = vperm.xlu0 %2832, %v391
      %v2834 = vpop.permute.xlu0 %2833
      %2836 = vset.pattern.permute.xlu0 3
      %2837 = vperm.xlu0 %2836, %v392
      %v2838 = vpop.permute.xlu0 %2837
      %2840 = vset.pattern.permute.xlu0 3
      %2841 = vperm.xlu0 %2840, %v393
      %v2842 = vpop.permute.xlu0 %2841
      %2844 = vset.pattern.permute.xlu0 3
      %2845 = vperm.xlu0 %2844, %v394
      %v2846 = vpop.permute.xlu0 %2845
      %2848 = vset.pattern.permute.xlu0 3
      %2849 = vperm.xlu0 %2848, %v395
      %v2850 = vpop.permute.xlu0 %2849
      %2852 = vset.pattern.permute.xlu0 3
      %2853 = vperm.xlu0 %2852, %v396
      %v2854 = vpop.permute.xlu0 %2853
      %2856 = vset.pattern.permute.xlu0 3
      %2857 = vperm.xlu0 %2856, %v397
      %v2858 = vpop.permute.xlu0 %2857
      %2860 = vset.pattern.permute.xlu0 3
      %2861 = vperm.xlu0 %2860, %v398
      %v2862 = vpop.permute.xlu0 %2861
      %v2864 = vadd.f32 %v2768, %v2802
      %v2865 = vadd.f32 %v2769, %v2802
      %v2866 = vadd.f32 %v2770, %v2806
      %v2867 = vadd.f32 %v2771, %v2806
      %v2868 = vadd.f32 %v2772, %v2810
      %v2869 = vadd.f32 %v2773, %v2810
      %v2870 = vadd.f32 %v2774, %v2814
      %v2871 = vadd.f32 %v2775, %v2814
      %v2872 = vadd.f32 %v2776, %v2818
      %v2873 = vadd.f32 %v2777, %v2818
      %v2874 = vadd.f32 %v2778, %v2822
      %v2875 = vadd.f32 %v2779, %v2822
      %v2876 = vadd.f32 %v2780, %v2826
      %v2877 = vadd.f32 %v2781, %v2826
      %v2878 = vadd.f32 %v2782, %v2830
      %v2879 = vadd.f32 %v2783, %v2830
      %v2880 = vadd.f32 %v2784, %v2834
      %v2881 = vadd.f32 %v2785, %v2834
      %v2882 = vadd.f32 %v2786, %v2838
      %v2883 = vadd.f32 %v2787, %v2838
      %v2884 = vadd.f32 %v2788, %v2842
      %v2885 = vadd.f32 %v2789, %v2842
      %v2886 = vadd.f32 %v2790, %v2846
      %v2887 = vadd.f32 %v2791, %v2846
      %v2888 = vadd.f32 %v2792, %v2850
      %v2889 = vadd.f32 %v2793, %v2850
      %v2890 = vadd.f32 %v2794, %v2854
      %v2891 = vadd.f32 %v2795, %v2854
      %v2892 = vadd.f32 %v2796, %v2858
      %v2893 = vadd.f32 %v2797, %v2858
      %v2894 = vadd.f32 %v2798, %v2862
      %v2895 = vadd.f32 %v2799, %v2862
      %v2896 = vmax.f32 %v2864, 0.0
      %v2897 = vmax.f32 %v2865, 0.0
      %v2898 = vmax.f32 %v2866, 0.0
      %v2899 = vmax.f32 %v2867, 0.0
      %v2900 = vmax.f32 %v2868, 0.0
      %v2901 = vmax.f32 %v2869, 0.0
      %v2902 = vmax.f32 %v2870, 0.0
      %v2903 = vmax.f32 %v2871, 0.0
      %v2904 = vmax.f32 %v2872, 0.0
      %v2905 = vmax.f32 %v2873, 0.0
      %v2906 = vmax.f32 %v2874, 0.0
      %v2907 = vmax.f32 %v2875, 0.0
      %v2908 = vmax.f32 %v2876, 0.0
      %v2909 = vmax.f32 %v2877, 0.0
      %v2910 = vmax.f32 %v2878, 0.0
      %v2911 = vmax.f32 %v2879, 0.0
      %v2912 = vmax.f32 %v2880, 0.0
      %v2913 = vmax.f32 %v2881, 0.0
      %v2914 = vmax.f32 %v2882, 0.0
      %v2915 = vmax.f32 %v2883, 0.0
      %v2916 = vmax.f32 %v2884, 0.0
      %v2917 = vmax.f32 %v2885, 0.0
      %v2918 = vmax.f32 %v2886, 0.0
      %v2919 = vmax.f32 %v2887, 0.0
      %v2920 = vmax.f32 %v2888, 0.0
      %v2921 = vmax.f32 %v2889, 0.0
      %v2922 = vmax.f32 %v2890, 0.0
      %v2923 = vmax.f32 %v2891, 0.0
      %v2924 = vmax.f32 %v2892, 0.0
      %v2925 = vmax.f32 %v2893, 0.0
      %v2926 = vmax.f32 %v2894, 0.0
      %v2927 = vmax.f32 %v2895, 0.0
      %v2928 = vpack.c.bf16 %v2898, %v2896
      %v2929 = vpack.c.bf16 %v2899, %v2897
      %v2930 = vpack.c.bf16 %v2902, %v2900
      %v2931 = vpack.c.bf16 %v2903, %v2901
      %v2932 = vpack.c.bf16 %v2906, %v2904
      %v2933 = vpack.c.bf16 %v2907, %v2905
      %v2934 = vpack.c.bf16 %v2910, %v2908
      %v2935 = vpack.c.bf16 %v2911, %v2909
      %v2936 = vpack.c.bf16 %v2914, %v2912
      %v2937 = vpack.c.bf16 %v2915, %v2913
      %v2938 = vpack.c.bf16 %v2918, %v2916
      %v2939 = vpack.c.bf16 %v2919, %v2917
      %v2940 = vpack.c.bf16 %v2922, %v2920
      %v2941 = vpack.c.bf16 %v2923, %v2921
      %v2942 = vpack.c.bf16 %v2926, %v2924
      %v2943 = vpack.c.bf16 %v2927, %v2925
      %s2944 = scalar_lea.vmem %s3, 192
      %v2945 = vld [vmem:[%s2944] sm:$0xf]
      %v2946 = vld [vmem:[%s2944 + $0x4] sm:$0xf]
      %v2947 = vld [vmem:[%s2944 + $0x8] sm:$0xf]
      %v2948 = vld [vmem:[%s2944 + $0xc] sm:$0xf]
      %v2949 = vld [vmem:[%s2944 + $0x10] sm:$0xf]
      %v2950 = vld [vmem:[%s2944 + $0x14] sm:$0xf]
      %v2951 = vld [vmem:[%s2944 + $0x18] sm:$0xf]
      %v2952 = vld [vmem:[%s2944 + $0x1c] sm:$0xf]
      %v2953 = vld [vmem:[%s2944 + $0x20] sm:$0xf]
      %v2954 = vld [vmem:[%s2944 + $0x24] sm:$0xf]
      %v2955 = vld [vmem:[%s2944 + $0x28] sm:$0xf]
      %v2956 = vld [vmem:[%s2944 + $0x2c] sm:$0xf]
      %v2957 = vld [vmem:[%s2944 + $0x30] sm:$0xf]
      %v2958 = vld [vmem:[%s2944 + $0x34] sm:$0xf]
      %v2959 = vld [vmem:[%s2944 + $0x38] sm:$0xf]
      %v2960 = vld [vmem:[%s2944 + $0x3c] sm:$0xf]
      %2961 = vset.pattern.permute.xlu0 3
      %2962 = vperm.xlu0 %2961, %v998
      %v2963 = vpop.permute.xlu0 %2962
      %2965 = vset.pattern.permute.xlu0 3
      %2966 = vperm.xlu0 %2965, %v999
      %v2967 = vpop.permute.xlu0 %2966
      %2969 = vset.pattern.permute.xlu0 3
      %2970 = vperm.xlu0 %2969, %v1000
      %v2971 = vpop.permute.xlu0 %2970
      %2973 = vset.pattern.permute.xlu0 3
      %2974 = vperm.xlu0 %2973, %v1001
      %v2975 = vpop.permute.xlu0 %2974
      %2977 = vset.pattern.permute.xlu0 3
      %2978 = vperm.xlu0 %2977, %v1002
      %v2979 = vpop.permute.xlu0 %2978
      %2981 = vset.pattern.permute.xlu0 3
      %2982 = vperm.xlu0 %2981, %v1003
      %v2983 = vpop.permute.xlu0 %2982
      %2985 = vset.pattern.permute.xlu0 3
      %2986 = vperm.xlu0 %2985, %v1004
      %v2987 = vpop.permute.xlu0 %2986
      %2989 = vset.pattern.permute.xlu0 3
      %2990 = vperm.xlu0 %2989, %v1005
      %v2991 = vpop.permute.xlu0 %2990
      %2993 = vset.pattern.permute.xlu0 3
      %2994 = vperm.xlu0 %2993, %v1006
      %v2995 = vpop.permute.xlu0 %2994
      %2997 = vset.pattern.permute.xlu0 3
      %2998 = vperm.xlu0 %2997, %v1007
      %v2999 = vpop.permute.xlu0 %2998
      %3001 = vset.pattern.permute.xlu0 3
      %3002 = vperm.xlu0 %3001, %v1008
      %v3003 = vpop.permute.xlu0 %3002
      %3005 = vset.pattern.permute.xlu0 3
      %3006 = vperm.xlu0 %3005, %v1009
      %v3007 = vpop.permute.xlu0 %3006
      %3009 = vset.pattern.permute.xlu0 3
      %3010 = vperm.xlu0 %3009, %v1010
      %v3011 = vpop.permute.xlu0 %3010
      %3013 = vset.pattern.permute.xlu0 3
      %3014 = vperm.xlu0 %3013, %v1011
      %v3015 = vpop.permute.xlu0 %3014
      %3017 = vset.pattern.permute.xlu0 3
      %3018 = vperm.xlu0 %3017, %v1012
      %v3019 = vpop.permute.xlu0 %3018
      %3021 = vset.pattern.permute.xlu0 3
      %3022 = vperm.xlu0 %3021, %v1013
      %v3023 = vpop.permute.xlu0 %3022
      %v3041 = vunpack.c.l.b16 %v2945
      %v3042 = vunpack.c.l.b16 %v2946
      %v3043 = vunpack.c.l.b16 %v2947
      %v3044 = vunpack.c.l.b16 %v2948
      %v3045 = vunpack.c.l.b16 %v2949
      %v3046 = vunpack.c.l.b16 %v2950
      %v3047 = vunpack.c.l.b16 %v2951
      %v3048 = vunpack.c.l.b16 %v2952
      %v3049 = vunpack.c.l.b16 %v2953
      %v3050 = vunpack.c.l.b16 %v2954
      %v3051 = vunpack.c.l.b16 %v2955
      %v3052 = vunpack.c.l.b16 %v2956
      %v3053 = vunpack.c.l.b16 %v2957
      %v3054 = vunpack.c.l.b16 %v2958
      %v3055 = vunpack.c.l.b16 %v2959
      %v3056 = vunpack.c.l.b16 %v2960
      %v3057 = vpack.c.b16 %v3042, %v3041
      %v3058 = vpack.c.b16 %v3044, %v3043
      %v3059 = vpack.c.b16 %v3046, %v3045
      %v3060 = vpack.c.b16 %v3048, %v3047
      %v3061 = vpack.c.b16 %v3050, %v3049
      %v3062 = vpack.c.b16 %v3052, %v3051
      %v3063 = vpack.c.b16 %v3054, %v3053
      %v3064 = vpack.c.b16 %v3056, %v3055
      %3073 = vmatprep.subr.bf16.mxu0 %v2929
      %3074 = vmatpush1.bf16.msra.mxu0 %v2928
      %3075 = vmatprep.subr.bf16.mxu0 %v2931
      %3076 = vmatpush1.bf16.msra.mxu0 %v2930
      %3077 = vmatprep.subr.bf16.mxu0 %v2933
      %3078 = vmatpush1.bf16.msra.mxu0 %v2932
      %3079 = vmatprep.subr.bf16.mxu0 %v2935
      %3080 = vmatpush1.bf16.msra.mxu0 %v2934
      %3081 = vmatprep.subr.bf16.mxu0 %v2937
      %3082 = vmatpush1.bf16.msra.mxu0 %v2936
      %3083 = vmatprep.subr.bf16.mxu0 %v2939
      %3084 = vmatpush1.bf16.msra.mxu0 %v2938
      %3085 = vmatprep.subr.bf16.mxu0 %v2941
      %3086 = vmatpush1.bf16.msra.mxu0 %v2940
      %3087 = vmatprep.subr.bf16.mxu0 %v2943
      %3088 = vmatpush1.bf16.msra.mxu0 %v2942
      %3089 = vmatprep.subr.bf16.mxu0 0
      %3090 = vmatpush1.bf16.msra.mxu0 0
      %3091 = vmatprep.subr.bf16.mxu0 0
      %3092 = vmatpush1.bf16.msra.mxu0 0
      %3093 = vmatprep.subr.bf16.mxu0 0
      %3094 = vmatpush1.bf16.msra.mxu0 0
      %3095 = vmatprep.subr.bf16.mxu0 0
      %3096 = vmatpush1.bf16.msra.mxu0 0
      %3097 = vmatprep.subr.bf16.mxu0 0
      %3098 = vmatpush1.bf16.msra.mxu0 0
      %3099 = vmatprep.subr.bf16.mxu0 0
      %3100 = vmatpush1.bf16.msra.mxu0 0
      %3101 = vmatprep.subr.bf16.mxu0 0
      %3102 = vmatpush1.bf16.msra.mxu0 0
      %3103 = vmatprep.subr.bf16.mxu0 0
      %3104 = vmatpush1.bf16.msra.mxu0 0
      %3105 = vmatprep.mubr.bf16.mxu0 0
      %3106 = vmatmul.mubr.bf16.gmra.mrb[0].mxu0 %v3057
      %v3107 = vpop.f32.mrb[0].mxu0
      %v3108 = vadd.f32 %v2963, %v3107
      %v3109 = vpop.f32.mrb[0].mxu0
      %v3110 = vadd.f32 %v2963, %v3109
      %v3111 = vpop.f32.mrb[0].mxu0
      %v3112 = vadd.f32 %v2967, %v3111
      %v3113 = vpop.f32.mrb[0].mxu0
      %v3114 = vadd.f32 %v2967, %v3113
      %3115 = vmatprep.mubr.bf16.mxu0 0
      %3116 = vmatmul.mubr.bf16.gmra.mrb[0].mxu0 %v3058
      %v3117 = vpop.f32.mrb[0].mxu0
      %v3118 = vadd.f32 %v2971, %v3117
      %v3119 = vpop.f32.mrb[0].mxu0
      %v3120 = vadd.f32 %v2971, %v3119
      %v3121 = vpop.f32.mrb[0].mxu0
      %v3122 = vadd.f32 %v2975, %v3121
      %v3123 = vpop.f32.mrb[0].mxu0
      %v3124 = vadd.f32 %v2975, %v3123
      %3125 = vmatprep.mubr.bf16.mxu0 0
      %3126 = vmatmul.mubr.bf16.gmra.mrb[0].mxu0 %v3059
      %v3127 = vpop.f32.mrb[0].mxu0
      %v3128 = vadd.f32 %v2979, %v3127
      %v3129 = vpop.f32.mrb[0].mxu0
      %v3130 = vadd.f32 %v2979, %v3129
      %v3131 = vpop.f32.mrb[0].mxu0
      %v3132 = vadd.f32 %v2983, %v3131
      %v3133 = vpop.f32.mrb[0].mxu0
      %v3134 = vadd.f32 %v2983, %v3133
      %3135 = vmatprep.mubr.bf16.mxu0 0
      %3136 = vmatmul.mubr.bf16.gmra.mrb[0].mxu0 %v3060
      %v3137 = vpop.f32.mrb[0].mxu0
      %v3138 = vadd.f32 %v2987, %v3137
      %v3139 = vpop.f32.mrb[0].mxu0
      %v3140 = vadd.f32 %v2987, %v3139
      %v3141 = vpop.f32.mrb[0].mxu0
      %v3142 = vadd.f32 %v2991, %v3141
      %v3143 = vpop.f32.mrb[0].mxu0
      %v3144 = vadd.f32 %v2991, %v3143
      %3145 = vmatprep.mubr.bf16.mxu0 0
      %3146 = vmatmul.mubr.bf16.gmra.mrb[0].mxu0 %v3061
      %v3147 = vpop.f32.mrb[0].mxu0
      %v3148 = vadd.f32 %v2995, %v3147
      %v3149 = vpop.f32.mrb[0].mxu0
      %v3150 = vadd.f32 %v2995, %v3149
      %v3151 = vpop.f32.mrb[0].mxu0
      %v3152 = vadd.f32 %v2999, %v3151
      %v3153 = vpop.f32.mrb[0].mxu0
      %v3154 = vadd.f32 %v2999, %v3153
      %3155 = vmatprep.mubr.bf16.mxu0 0
      %3156 = vmatmul.mubr.bf16.gmra.mrb[0].mxu0 %v3062
      %v3157 = vpop.f32.mrb[0].mxu0
      %v3158 = vadd.f32 %v3003, %v3157
      %v3159 = vpop.f32.mrb[0].mxu0
      %v3160 = vadd.f32 %v3003, %v3159
      %v3161 = vpop.f32.mrb[0].mxu0
      %v3162 = vadd.f32 %v3007, %v3161
      %v3163 = vpop.f32.mrb[0].mxu0
      %v3164 = vadd.f32 %v3007, %v3163
      %3165 = vmatprep.mubr.bf16.mxu0 0
      %3166 = vmatmul.mubr.bf16.gmra.mrb[0].mxu0 %v3063
      %v3167 = vpop.f32.mrb[0].mxu0
      %v3168 = vadd.f32 %v3011, %v3167
      %v3169 = vpop.f32.mrb[0].mxu0
      %v3170 = vadd.f32 %v3011, %v3169
      %v3171 = vpop.f32.mrb[0].mxu0
      %v3172 = vadd.f32 %v3015, %v3171
      %v3173 = vpop.f32.mrb[0].mxu0
      %v3174 = vadd.f32 %v3015, %v3173
      %3175 = vmatprep.mubr.bf16.mxu0 0
      %3176 = vmatmul.mubr.bf16.gmra.mrb[0].mxu0 %v3064
      %v3177 = vpop.f32.mrb[0].mxu0
      %v3178 = vadd.f32 %v3019, %v3177
      %v3179 = vpop.f32.mrb[0].mxu0
      %v3180 = vadd.f32 %v3019, %v3179
      %v3181 = vpop.f32.mrb[0].mxu0
      %v3182 = vadd.f32 %v3023, %v3181
      %v3183 = vpop.f32.mrb[0].mxu0
      %v3184 = vadd.f32 %v3023, %v3183
      %3185 = vdwg.mxu0
      %v3186 = vmax.f32 %v3108, 0.0
      %v3187 = vmax.f32 %v3110, 0.0
      %v3188 = vmax.f32 %v3112, 0.0
      %v3189 = vmax.f32 %v3114, 0.0
      %v3190 = vmax.f32 %v3118, 0.0
      %v3191 = vmax.f32 %v3120, 0.0
      %v3192 = vmax.f32 %v3122, 0.0
      %v3193 = vmax.f32 %v3124, 0.0
      %v3194 = vmax.f32 %v3128, 0.0
      %v3195 = vmax.f32 %v3130, 0.0
      %v3196 = vmax.f32 %v3132, 0.0
      %v3197 = vmax.f32 %v3134, 0.0
      %v3198 = vmax.f32 %v3138, 0.0
      %v3199 = vmax.f32 %v3140, 0.0
      %v3200 = vmax.f32 %v3142, 0.0
      %v3201 = vmax.f32 %v3144, 0.0
      %v3202 = vmax.f32 %v3148, 0.0
      %v3203 = vmax.f32 %v3150, 0.0
      %v3204 = vmax.f32 %v3152, 0.0
      %v3205 = vmax.f32 %v3154, 0.0
      %v3206 = vmax.f32 %v3158, 0.0
      %v3207 = vmax.f32 %v3160, 0.0
      %v3208 = vmax.f32 %v3162, 0.0
      %v3209 = vmax.f32 %v3164, 0.0
      %v3210 = vmax.f32 %v3168, 0.0
      %v3211 = vmax.f32 %v3170, 0.0
      %v3212 = vmax.f32 %v3172, 0.0
      %v3213 = vmax.f32 %v3174, 0.0
      %v3214 = vmax.f32 %v3178, 0.0
      %v3215 = vmax.f32 %v3180, 0.0
      %v3216 = vmax.f32 %v3182, 0.0
      %v3217 = vmax.f32 %v3184, 0.0
      %v3218 = vpack.c.bf16 %v3188, %v3186
      %v3219 = vpack.c.bf16 %v3189, %v3187
      %v3220 = vpack.c.bf16 %v3192, %v3190
      %v3221 = vpack.c.bf16 %v3193, %v3191
      %v3222 = vpack.c.bf16 %v3196, %v3194
      %v3223 = vpack.c.bf16 %v3197, %v3195
      %v3224 = vpack.c.bf16 %v3200, %v3198
      %v3225 = vpack.c.bf16 %v3201, %v3199
      %v3226 = vpack.c.bf16 %v3204, %v3202
      %v3227 = vpack.c.bf16 %v3205, %v3203
      %v3228 = vpack.c.bf16 %v3208, %v3206
      %v3229 = vpack.c.bf16 %v3209, %v3207
      %v3230 = vpack.c.bf16 %v3212, %v3210
      %v3231 = vpack.c.bf16 %v3213, %v3211
      %v3232 = vpack.c.bf16 %v3216, %v3214
      %v3233 = vpack.c.bf16 %v3217, %v3215
      %s3234 = scalar_lea.vmem %s5, 192
      %v3235 = vld [vmem:[%s3234] sm:$0xf]
      %v3236 = vld [vmem:[%s3234 + $0x4] sm:$0xf]
      %v3237 = vld [vmem:[%s3234 + $0x8] sm:$0xf]
      %v3238 = vld [vmem:[%s3234 + $0xc] sm:$0xf]
      %v3239 = vld [vmem:[%s3234 + $0x10] sm:$0xf]
      %v3240 = vld [vmem:[%s3234 + $0x14] sm:$0xf]
      %v3241 = vld [vmem:[%s3234 + $0x18] sm:$0xf]
      %v3242 = vld [vmem:[%s3234 + $0x1c] sm:$0xf]
      %v3243 = vld [vmem:[%s3234 + $0x20] sm:$0xf]
      %v3244 = vld [vmem:[%s3234 + $0x24] sm:$0xf]
      %v3245 = vld [vmem:[%s3234 + $0x28] sm:$0xf]
      %v3246 = vld [vmem:[%s3234 + $0x2c] sm:$0xf]
      %v3247 = vld [vmem:[%s3234 + $0x30] sm:$0xf]
      %v3248 = vld [vmem:[%s3234 + $0x34] sm:$0xf]
      %v3249 = vld [vmem:[%s3234 + $0x38] sm:$0xf]
      %v3250 = vld [vmem:[%s3234 + $0x3c] sm:$0xf]
      %v3267 = vunpack.c.l.b16 %v3235
      %v3268 = vunpack.c.l.b16 %v3236
      %v3269 = vunpack.c.l.b16 %v3237
      %v3270 = vunpack.c.l.b16 %v3238
      %v3271 = vunpack.c.l.b16 %v3239
      %v3272 = vunpack.c.l.b16 %v3240
      %v3273 = vunpack.c.l.b16 %v3241
      %v3274 = vunpack.c.l.b16 %v3242
      %v3275 = vunpack.c.l.b16 %v3243
      %v3276 = vunpack.c.l.b16 %v3244
      %v3277 = vunpack.c.l.b16 %v3245
      %v3278 = vunpack.c.l.b16 %v3246
      %v3279 = vunpack.c.l.b16 %v3247
      %v3280 = vunpack.c.l.b16 %v3248
      %v3281 = vunpack.c.l.b16 %v3249
      %v3282 = vunpack.c.l.b16 %v3250
      %v3283 = vpack.c.b16 %v3268, %v3267
      %v3284 = vpack.c.b16 %v3270, %v3269
      %v3285 = vpack.c.b16 %v3272, %v3271
      %v3286 = vpack.c.b16 %v3274, %v3273
      %v3287 = vpack.c.b16 %v3276, %v3275
      %v3288 = vpack.c.b16 %v3278, %v3277
      %v3289 = vpack.c.b16 %v3280, %v3279
      %v3290 = vpack.c.b16 %v3282, %v3281
      %3299 = vmatprep.subr.bf16.mxu0 %v3219
      %3300 = vmatpush1.bf16.msra.mxu0 %v3218
      %3301 = vmatprep.subr.bf16.mxu0 %v3221
      %3302 = vmatpush1.bf16.msra.mxu0 %v3220
      %3303 = vmatprep.subr.bf16.mxu0 %v3223
      %3304 = vmatpush1.bf16.msra.mxu0 %v3222
      %3305 = vmatprep.subr.bf16.mxu0 %v3225
      %3306 = vmatpush1.bf16.msra.mxu0 %v3224
      %3307 = vmatprep.subr.bf16.mxu0 %v3227
      %3308 = vmatpush1.bf16.msra.mxu0 %v3226
      %3309 = vmatprep.subr.bf16.mxu0 %v3229
      %3310 = vmatpush1.bf16.msra.mxu0 %v3228
      %3311 = vmatprep.subr.bf16.mxu0 %v3231
      %3312 = vmatpush1.bf16.msra.mxu0 %v3230
      %3313 = vmatprep.subr.bf16.mxu0 %v3233
      %3314 = vmatpush1.bf16.msra.mxu0 %v3232
      %3315 = vmatprep.subr.bf16.mxu0 0
      %3316 = vmatpush1.bf16.msra.mxu0 0
      %3317 = vmatprep.subr.bf16.mxu0 0
      %3318 = vmatpush1.bf16.msra.mxu0 0
      %3319 = vmatprep.subr.bf16.mxu0 0
      %3320 = vmatpush1.bf16.msra.mxu0 0
      %3321 = vmatprep.subr.bf16.mxu0 0
      %3322 = vmatpush1.bf16.msra.mxu0 0
      %3323 = vmatprep.subr.bf16.mxu0 0
      %3324 = vmatpush1.bf16.msra.mxu0 0
      %3325 = vmatprep.subr.bf16.mxu0 0
      %3326 = vmatpush1.bf16.msra.mxu0 0
      %3327 = vmatprep.subr.bf16.mxu0 0
      %3328 = vmatpush1.bf16.msra.mxu0 0
      %3329 = vmatprep.subr.bf16.mxu0 0
      %3330 = vmatpush1.bf16.msra.mxu0 0
      %3331 = vmatprep.mubr.bf16.mxu0 0
      %3332 = vmatmul.mubr.bf16.gmra.mrb[0].mxu0 %v3283
      %v3333 = vpop.f32.mrb[0].mxu0
      %v3334 = vadd.f32 0.0, %v3333
      %v3335 = vpop.f32.mrb[0].mxu0
      %v3336 = vadd.f32 0.0, %v3335
      %v3337 = vpop.f32.mrb[0].mxu0
      %v3338 = vadd.f32 0.0, %v3337
      %v3339 = vpop.f32.mrb[0].mxu0
      %v3340 = vadd.f32 0.0, %v3339
      %3341 = vmatprep.mubr.bf16.mxu0 0
      %3342 = vmatmul.mubr.bf16.gmra.mrb[0].mxu0 %v3284
      %v3343 = vpop.f32.mrb[0].mxu0
      %v3344 = vadd.f32 0.0, %v3343
      %v3345 = vpop.f32.mrb[0].mxu0
      %v3346 = vadd.f32 0.0, %v3345
      %v3347 = vpop.f32.mrb[0].mxu0
      %v3348 = vadd.f32 0.0, %v3347
      %v3349 = vpop.f32.mrb[0].mxu0
      %v3350 = vadd.f32 0.0, %v3349
      %3351 = vmatprep.mubr.bf16.mxu0 0
      %3352 = vmatmul.mubr.bf16.gmra.mrb[0].mxu0 %v3285
      %v3353 = vpop.f32.mrb[0].mxu0
      %v3354 = vadd.f32 0.0, %v3353
      %v3355 = vpop.f32.mrb[0].mxu0
      %v3356 = vadd.f32 0.0, %v3355
      %v3357 = vpop.f32.mrb[0].mxu0
      %v3358 = vadd.f32 0.0, %v3357
      %v3359 = vpop.f32.mrb[0].mxu0
      %v3360 = vadd.f32 0.0, %v3359
      %3361 = vmatprep.mubr.bf16.mxu0 0
      %3362 = vmatmul.mubr.bf16.gmra.mrb[0].mxu0 %v3286
      %v3363 = vpop.f32.mrb[0].mxu0
      %v3364 = vadd.f32 0.0, %v3363
      %v3365 = vpop.f32.mrb[0].mxu0
      %v3366 = vadd.f32 0.0, %v3365
      %v3367 = vpop.f32.mrb[0].mxu0
      %v3368 = vadd.f32 0.0, %v3367
      %v3369 = vpop.f32.mrb[0].mxu0
      %v3370 = vadd.f32 0.0, %v3369
      %3371 = vmatprep.mubr.bf16.mxu0 0
      %3372 = vmatmul.mubr.bf16.gmra.mrb[0].mxu0 %v3287
      %v3373 = vpop.f32.mrb[0].mxu0
      %v3374 = vadd.f32 0.0, %v3373
      %v3375 = vpop.f32.mrb[0].mxu0
      %v3376 = vadd.f32 0.0, %v3375
      %v3377 = vpop.f32.mrb[0].mxu0
      %v3378 = vadd.f32 0.0, %v3377
      %v3379 = vpop.f32.mrb[0].mxu0
      %v3380 = vadd.f32 0.0, %v3379
      %3381 = vmatprep.mubr.bf16.mxu0 0
      %3382 = vmatmul.mubr.bf16.gmra.mrb[0].mxu0 %v3288
      %v3383 = vpop.f32.mrb[0].mxu0
      %v3384 = vadd.f32 0.0, %v3383
      %v3385 = vpop.f32.mrb[0].mxu0
      %v3386 = vadd.f32 0.0, %v3385
      %v3387 = vpop.f32.mrb[0].mxu0
      %v3388 = vadd.f32 0.0, %v3387
      %v3389 = vpop.f32.mrb[0].mxu0
      %v3390 = vadd.f32 0.0, %v3389
      %3391 = vmatprep.mubr.bf16.mxu0 0
      %3392 = vmatmul.mubr.bf16.gmra.mrb[0].mxu0 %v3289
      %v3393 = vpop.f32.mrb[0].mxu0
      %v3394 = vadd.f32 0.0, %v3393
      %v3395 = vpop.f32.mrb[0].mxu0
      %v3396 = vadd.f32 0.0, %v3395
      %v3397 = vpop.f32.mrb[0].mxu0
      %v3398 = vadd.f32 0.0, %v3397
      %v3399 = vpop.f32.mrb[0].mxu0
      %v3400 = vadd.f32 0.0, %v3399
      %3401 = vmatprep.mubr.bf16.mxu0 0
      %3402 = vmatmul.mubr.bf16.gmra.mrb[0].mxu0 %v3290
      %v3403 = vpop.f32.mrb[0].mxu0
      %v3404 = vadd.f32 0.0, %v3403
      %v3405 = vpop.f32.mrb[0].mxu0
      %v3406 = vadd.f32 0.0, %v3405
      %v3407 = vpop.f32.mrb[0].mxu0
      %v3408 = vadd.f32 0.0, %v3407
      %v3409 = vpop.f32.mrb[0].mxu0
      %v3410 = vadd.f32 0.0, %v3409
      %3411 = vdwg.mxu0
      %v3412 = vadd.f32 %v2864, %v3334
      %v3413 = vadd.f32 %v2865, %v3336
      %v3414 = vadd.f32 %v2866, %v3338
      %v3415 = vadd.f32 %v2867, %v3340
      %v3416 = vadd.f32 %v2868, %v3344
      %v3417 = vadd.f32 %v2869, %v3346
      %v3418 = vadd.f32 %v2870, %v3348
      %v3419 = vadd.f32 %v2871, %v3350
      %v3420 = vadd.f32 %v2872, %v3354
      %v3421 = vadd.f32 %v2873, %v3356
      %v3422 = vadd.f32 %v2874, %v3358
      %v3423 = vadd.f32 %v2875, %v3360
      %v3424 = vadd.f32 %v2876, %v3364
      %v3425 = vadd.f32 %v2877, %v3366
      %v3426 = vadd.f32 %v2878, %v3368
      %v3427 = vadd.f32 %v2879, %v3370
      %v3428 = vadd.f32 %v2880, %v3374
      %v3429 = vadd.f32 %v2881, %v3376
      %v3430 = vadd.f32 %v2882, %v3378
      %v3431 = vadd.f32 %v2883, %v3380
      %v3432 = vadd.f32 %v2884, %v3384
      %v3433 = vadd.f32 %v2885, %v3386
      %v3434 = vadd.f32 %v2886, %v3388
      %v3435 = vadd.f32 %v2887, %v3390
      %v3436 = vadd.f32 %v2888, %v3394
      %v3437 = vadd.f32 %v2889, %v3396
      %v3438 = vadd.f32 %v2890, %v3398
      %v3439 = vadd.f32 %v2891, %v3400
      %v3440 = vadd.f32 %v2892, %v3404
      %v3441 = vadd.f32 %v2893, %v3406
      %v3442 = vadd.f32 %v2894, %v3408
      %v3443 = vadd.f32 %v2895, %v3410
      %3444 = vset.pattern.permute.xlu0 4
      %3445 = vperm.xlu0 %3444, %v383
      %v3446 = vpop.permute.xlu0 %3445
      %3448 = vset.pattern.permute.xlu0 4
      %3449 = vperm.xlu0 %3448, %v384
      %v3450 = vpop.permute.xlu0 %3449
      %3452 = vset.pattern.permute.xlu0 4
      %3453 = vperm.xlu0 %3452, %v385
      %v3454 = vpop.permute.xlu0 %3453
      %3456 = vset.pattern.permute.xlu0 4
      %3457 = vperm.xlu0 %3456, %v386
      %v3458 = vpop.permute.xlu0 %3457
      %3460 = vset.pattern.permute.xlu0 4
      %3461 = vperm.xlu0 %3460, %v387
      %v3462 = vpop.permute.xlu0 %3461
      %3464 = vset.pattern.permute.xlu0 4
      %3465 = vperm.xlu0 %3464, %v388
      %v3466 = vpop.permute.xlu0 %3465
      %3468 = vset.pattern.permute.xlu0 4
      %3469 = vperm.xlu0 %3468, %v389
      %v3470 = vpop.permute.xlu0 %3469
      %3472 = vset.pattern.permute.xlu0 4
      %3473 = vperm.xlu0 %3472, %v390
      %v3474 = vpop.permute.xlu0 %3473
      %3476 = vset.pattern.permute.xlu0 4
      %3477 = vperm.xlu0 %3476, %v391
      %v3478 = vpop.permute.xlu0 %3477
      %3480 = vset.pattern.permute.xlu0 4
      %3481 = vperm.xlu0 %3480, %v392
      %v3482 = vpop.permute.xlu0 %3481
      %3484 = vset.pattern.permute.xlu0 4
      %3485 = vperm.xlu0 %3484, %v393
      %v3486 = vpop.permute.xlu0 %3485
      %3488 = vset.pattern.permute.xlu0 4
      %3489 = vperm.xlu0 %3488, %v394
      %v3490 = vpop.permute.xlu0 %3489
      %3492 = vset.pattern.permute.xlu0 4
      %3493 = vperm.xlu0 %3492, %v395
      %v3494 = vpop.permute.xlu0 %3493
      %3496 = vset.pattern.permute.xlu0 4
      %3497 = vperm.xlu0 %3496, %v396
      %v3498 = vpop.permute.xlu0 %3497
      %3500 = vset.pattern.permute.xlu0 4
      %3501 = vperm.xlu0 %3500, %v397
      %v3502 = vpop.permute.xlu0 %3501
      %3504 = vset.pattern.permute.xlu0 4
      %3505 = vperm.xlu0 %3504, %v398
      %v3506 = vpop.permute.xlu0 %3505
      %v3508 = vadd.f32 %v3412, %v3446
      %v3509 = vadd.f32 %v3413, %v3446
      %v3510 = vadd.f32 %v3414, %v3450
      %v3511 = vadd.f32 %v3415, %v3450
      %v3512 = vadd.f32 %v3416, %v3454
      %v3513 = vadd.f32 %v3417, %v3454
      %v3514 = vadd.f32 %v3418, %v3458
      %v3515 = vadd.f32 %v3419, %v3458
      %v3516 = vadd.f32 %v3420, %v3462
      %v3517 = vadd.f32 %v3421, %v3462
      %v3518 = vadd.f32 %v3422, %v3466
      %v3519 = vadd.f32 %v3423, %v3466
      %v3520 = vadd.f32 %v3424, %v3470
      %v3521 = vadd.f32 %v3425, %v3470
      %v3522 = vadd.f32 %v3426, %v3474
      %v3523 = vadd.f32 %v3427, %v3474
      %v3524 = vadd.f32 %v3428, %v3478
      %v3525 = vadd.f32 %v3429, %v3478
      %v3526 = vadd.f32 %v3430, %v3482
      %v3527 = vadd.f32 %v3431, %v3482
      %v3528 = vadd.f32 %v3432, %v3486
      %v3529 = vadd.f32 %v3433, %v3486
      %v3530 = vadd.f32 %v3434, %v3490
      %v3531 = vadd.f32 %v3435, %v3490
      %v3532 = vadd.f32 %v3436, %v3494
      %v3533 = vadd.f32 %v3437, %v3494
      %v3534 = vadd.f32 %v3438, %v3498
      %v3535 = vadd.f32 %v3439, %v3498
      %v3536 = vadd.f32 %v3440, %v3502
      %v3537 = vadd.f32 %v3441, %v3502
      %v3538 = vadd.f32 %v3442, %v3506
      %v3539 = vadd.f32 %v3443, %v3506
      %v3540 = vmax.f32 %v3508, 0.0
      %v3541 = vmax.f32 %v3509, 0.0
      %v3542 = vmax.f32 %v3510, 0.0
      %v3543 = vmax.f32 %v3511, 0.0
      %v3544 = vmax.f32 %v3512, 0.0
      %v3545 = vmax.f32 %v3513, 0.0
      %v3546 = vmax.f32 %v3514, 0.0
      %v3547 = vmax.f32 %v3515, 0.0
      %v3548 = vmax.f32 %v3516, 0.0
      %v3549 = vmax.f32 %v3517, 0.0
      %v3550 = vmax.f32 %v3518, 0.0
      %v3551 = vmax.f32 %v3519, 0.0
      %v3552 = vmax.f32 %v3520, 0.0
      %v3553 = vmax.f32 %v3521, 0.0
      %v3554 = vmax.f32 %v3522, 0.0
      %v3555 = vmax.f32 %v3523, 0.0
      %v3556 = vmax.f32 %v3524, 0.0
      %v3557 = vmax.f32 %v3525, 0.0
      %v3558 = vmax.f32 %v3526, 0.0
      %v3559 = vmax.f32 %v3527, 0.0
      %v3560 = vmax.f32 %v3528, 0.0
      %v3561 = vmax.f32 %v3529, 0.0
      %v3562 = vmax.f32 %v3530, 0.0
      %v3563 = vmax.f32 %v3531, 0.0
      %v3564 = vmax.f32 %v3532, 0.0
      %v3565 = vmax.f32 %v3533, 0.0
      %v3566 = vmax.f32 %v3534, 0.0
      %v3567 = vmax.f32 %v3535, 0.0
      %v3568 = vmax.f32 %v3536, 0.0
      %v3569 = vmax.f32 %v3537, 0.0
      %v3570 = vmax.f32 %v3538, 0.0
      %v3571 = vmax.f32 %v3539, 0.0
      %v3572 = vpack.c.bf16 %v3542, %v3540
      %v3573 = vpack.c.bf16 %v3543, %v3541
      %v3574 = vpack.c.bf16 %v3546, %v3544
      %v3575 = vpack.c.bf16 %v3547, %v3545
      %v3576 = vpack.c.bf16 %v3550, %v3548
      %v3577 = vpack.c.bf16 %v3551, %v3549
      %v3578 = vpack.c.bf16 %v3554, %v3552
      %v3579 = vpack.c.bf16 %v3555, %v3553
      %v3580 = vpack.c.bf16 %v3558, %v3556
      %v3581 = vpack.c.bf16 %v3559, %v3557
      %v3582 = vpack.c.bf16 %v3562, %v3560
      %v3583 = vpack.c.bf16 %v3563, %v3561
      %v3584 = vpack.c.bf16 %v3566, %v3564
      %v3585 = vpack.c.bf16 %v3567, %v3565
      %v3586 = vpack.c.bf16 %v3570, %v3568
      %v3587 = vpack.c.bf16 %v3571, %v3569
      %s3588 = scalar_lea.vmem %s3, 256
      %v3589 = vld [vmem:[%s3588] sm:$0xf]
      %v3590 = vld [vmem:[%s3588 + $0x4] sm:$0xf]
      %v3591 = vld [vmem:[%s3588 + $0x8] sm:$0xf]
      %v3592 = vld [vmem:[%s3588 + $0xc] sm:$0xf]
      %v3593 = vld [vmem:[%s3588 + $0x10] sm:$0xf]
      %v3594 = vld [vmem:[%s3588 + $0x14] sm:$0xf]
      %v3595 = vld [vmem:[%s3588 + $0x18] sm:$0xf]
      %v3596 = vld [vmem:[%s3588 + $0x1c] sm:$0xf]
      %v3597 = vld [vmem:[%s3588 + $0x20] sm:$0xf]
      %v3598 = vld [vmem:[%s3588 + $0x24] sm:$0xf]
      %v3599 = vld [vmem:[%s3588 + $0x28] sm:$0xf]
      %v3600 = vld [vmem:[%s3588 + $0x2c] sm:$0xf]
      %v3601 = vld [vmem:[%s3588 + $0x30] sm:$0xf]
      %v3602 = vld [vmem:[%s3588 + $0x34] sm:$0xf]
      %v3603 = vld [vmem:[%s3588 + $0x38] sm:$0xf]
      %v3604 = vld [vmem:[%s3588 + $0x3c] sm:$0xf]
      %3605 = vset.pattern.permute.xlu0 4
      %3606 = vperm.xlu0 %3605, %v998
      %v3607 = vpop.permute.xlu0 %3606
      %3609 = vset.pattern.permute.xlu0 4
      %3610 = vperm.xlu0 %3609, %v999
      %v3611 = vpop.permute.xlu0 %3610
      %3613 = vset.pattern.permute.xlu0 4
      %3614 = vperm.xlu0 %3613, %v1000
      %v3615 = vpop.permute.xlu0 %3614
      %3617 = vset.pattern.permute.xlu0 4
      %3618 = vperm.xlu0 %3617, %v1001
      %v3619 = vpop.permute.xlu0 %3618
      %3621 = vset.pattern.permute.xlu0 4
      %3622 = vperm.xlu0 %3621, %v1002
      %v3623 = vpop.permute.xlu0 %3622
      %3625 = vset.pattern.permute.xlu0 4
      %3626 = vperm.xlu0 %3625, %v1003
      %v3627 = vpop.permute.xlu0 %3626
      %3629 = vset.pattern.permute.xlu0 4
      %3630 = vperm.xlu0 %3629, %v1004
      %v3631 = vpop.permute.xlu0 %3630
      %3633 = vset.pattern.permute.xlu0 4
      %3634 = vperm.xlu0 %3633, %v1005
      %v3635 = vpop.permute.xlu0 %3634
      %3637 = vset.pattern.permute.xlu0 4
      %3638 = vperm.xlu0 %3637, %v1006
      %v3639 = vpop.permute.xlu0 %3638
      %3641 = vset.pattern.permute.xlu0 4
      %3642 = vperm.xlu0 %3641, %v1007
      %v3643 = vpop.permute.xlu0 %3642
      %3645 = vset.pattern.permute.xlu0 4
      %3646 = vperm.xlu0 %3645, %v1008
      %v3647 = vpop.permute.xlu0 %3646
      %3649 = vset.pattern.permute.xlu0 4
      %3650 = vperm.xlu0 %3649, %v1009
      %v3651 = vpop.permute.xlu0 %3650
      %3653 = vset.pattern.permute.xlu0 4
      %3654 = vperm.xlu0 %3653, %v1010
      %v3655 = vpop.permute.xlu0 %3654
      %3657 = vset.pattern.permute.xlu0 4
      %3658 = vperm.xlu0 %3657, %v1011
      %v3659 = vpop.permute.xlu0 %3658
      %3661 = vset.pattern.permute.xlu0 4
      %3662 = vperm.xlu0 %3661, %v1012
      %v3663 = vpop.permute.xlu0 %3662
      %3665 = vset.pattern.permute.xlu0 4
      %3666 = vperm.xlu0 %3665, %v1013
      %v3667 = vpop.permute.xlu0 %3666
      %v3685 = vunpack.c.l.b16 %v3589
      %v3686 = vunpack.c.l.b16 %v3590
      %v3687 = vunpack.c.l.b16 %v3591
      %v3688 = vunpack.c.l.b16 %v3592
      %v3689 = vunpack.c.l.b16 %v3593
      %v3690 = vunpack.c.l.b16 %v3594
      %v3691 = vunpack.c.l.b16 %v3595
      %v3692 = vunpack.c.l.b16 %v3596
      %v3693 = vunpack.c.l.b16 %v3597
      %v3694 = vunpack.c.l.b16 %v3598
      %v3695 = vunpack.c.l.b16 %v3599
      %v3696 = vunpack.c.l.b16 %v3600
      %v3697 = vunpack.c.l.b16 %v3601
      %v3698 = vunpack.c.l.b16 %v3602
      %v3699 = vunpack.c.l.b16 %v3603
      %v3700 = vunpack.c.l.b16 %v3604
      %v3701 = vpack.c.b16 %v3686, %v3685
      %v3702 = vpack.c.b16 %v3688, %v3687
      %v3703 = vpack.c.b16 %v3690, %v3689
      %v3704 = vpack.c.b16 %v3692, %v3691
      %v3705 = vpack.c.b16 %v3694, %v3693
      %v3706 = vpack.c.b16 %v3696, %v3695
      %v3707 = vpack.c.b16 %v3698, %v3697
      %v3708 = vpack.c.b16 %v3700, %v3699
      %3717 = vmatprep.subr.bf16.mxu0 %v3573
      %3718 = vmatpush1.bf16.msra.mxu0 %v3572
      %3719 = vmatprep.subr.bf16.mxu0 %v3575
      %3720 = vmatpush1.bf16.msra.mxu0 %v3574
      %3721 = vmatprep.subr.bf16.mxu0 %v3577
      %3722 = vmatpush1.bf16.msra.mxu0 %v3576
      %3723 = vmatprep.subr.bf16.mxu0 %v3579
      %3724 = vmatpush1.bf16.msra.mxu0 %v3578
      %3725 = vmatprep.subr.bf16.mxu0 %v3581
      %3726 = vmatpush1.bf16.msra.mxu0 %v3580
      %3727 = vmatprep.subr.bf16.mxu0 %v3583
      %3728 = vmatpush1.bf16.msra.mxu0 %v3582
      %3729 = vmatprep.subr.bf16.mxu0 %v3585
      %3730 = vmatpush1.bf16.msra.mxu0 %v3584
      %3731 = vmatprep.subr.bf16.mxu0 %v3587
      %3732 = vmatpush1.bf16.msra.mxu0 %v3586
      %3733 = vmatprep.subr.bf16.mxu0 0
      %3734 = vmatpush1.bf16.msra.mxu0 0
      %3735 = vmatprep.subr.bf16.mxu0 0
      %3736 = vmatpush1.bf16.msra.mxu0 0
      %3737 = vmatprep.subr.bf16.mxu0 0
      %3738 = vmatpush1.bf16.msra.mxu0 0
      %3739 = vmatprep.subr.bf16.mxu0 0
      %3740 = vmatpush1.bf16.msra.mxu0 0
      %3741 = vmatprep.subr.bf16.mxu0 0
      %3742 = vmatpush1.bf16.msra.mxu0 0
      %3743 = vmatprep.subr.bf16.mxu0 0
      %3744 = vmatpush1.bf16.msra.mxu0 0
      %3745 = vmatprep.subr.bf16.mxu0 0
      %3746 = vmatpush1.bf16.msra.mxu0 0
      %3747 = vmatprep.subr.bf16.mxu0 0
      %3748 = vmatpush1.bf16.msra.mxu0 0
      %3749 = vmatprep.mubr.bf16.mxu0 0
      %3750 = vmatmul.mubr.bf16.gmra.mrb[0].mxu0 %v3701
      %v3751 = vpop.f32.mrb[0].mxu0
      %v3752 = vadd.f32 %v3607, %v3751
      %v3753 = vpop.f32.mrb[0].mxu0
      %v3754 = vadd.f32 %v3607, %v3753
      %v3755 = vpop.f32.mrb[0].mxu0
      %v3756 = vadd.f32 %v3611, %v3755
      %v3757 = vpop.f32.mrb[0].mxu0
      %v3758 = vadd.f32 %v3611, %v3757
      %3759 = vmatprep.mubr.bf16.mxu0 0
      %3760 = vmatmul.mubr.bf16.gmra.mrb[0].mxu0 %v3702
      %v3761 = vpop.f32.mrb[0].mxu0
      %v3762 = vadd.f32 %v3615, %v3761
      %v3763 = vpop.f32.mrb[0].mxu0
      %v3764 = vadd.f32 %v3615, %v3763
      %v3765 = vpop.f32.mrb[0].mxu0
      %v3766 = vadd.f32 %v3619, %v3765
      %v3767 = vpop.f32.mrb[0].mxu0
      %v3768 = vadd.f32 %v3619, %v3767
      %3769 = vmatprep.mubr.bf16.mxu0 0
      %3770 = vmatmul.mubr.bf16.gmra.mrb[0].mxu0 %v3703
      %v3771 = vpop.f32.mrb[0].mxu0
      %v3772 = vadd.f32 %v3623, %v3771
      %v3773 = vpop.f32.mrb[0].mxu0
      %v3774 = vadd.f32 %v3623, %v3773
      %v3775 = vpop.f32.mrb[0].mxu0
      %v3776 = vadd.f32 %v3627, %v3775
      %v3777 = vpop.f32.mrb[0].mxu0
      %v3778 = vadd.f32 %v3627, %v3777
      %3779 = vmatprep.mubr.bf16.mxu0 0
      %3780 = vmatmul.mubr.bf16.gmra.mrb[0].mxu0 %v3704
      %v3781 = vpop.f32.mrb[0].mxu0
      %v3782 = vadd.f32 %v3631, %v3781
      %v3783 = vpop.f32.mrb[0].mxu0
      %v3784 = vadd.f32 %v3631, %v3783
      %v3785 = vpop.f32.mrb[0].mxu0
      %v3786 = vadd.f32 %v3635, %v3785
      %v3787 = vpop.f32.mrb[0].mxu0
      %v3788 = vadd.f32 %v3635, %v3787
      %3789 = vmatprep.mubr.bf16.mxu0 0
      %3790 = vmatmul.mubr.bf16.gmra.mrb[0].mxu0 %v3705
      %v3791 = vpop.f32.mrb[0].mxu0
      %v3792 = vadd.f32 %v3639, %v3791
      %v3793 = vpop.f32.mrb[0].mxu0
      %v3794 = vadd.f32 %v3639, %v3793
      %v3795 = vpop.f32.mrb[0].mxu0
      %v3796 = vadd.f32 %v3643, %v3795
      %v3797 = vpop.f32.mrb[0].mxu0
      %v3798 = vadd.f32 %v3643, %v3797
      %3799 = vmatprep.mubr.bf16.mxu0 0
      %3800 = vmatmul.mubr.bf16.gmra.mrb[0].mxu0 %v3706
      %v3801 = vpop.f32.mrb[0].mxu0
      %v3802 = vadd.f32 %v3647, %v3801
      %v3803 = vpop.f32.mrb[0].mxu0
      %v3804 = vadd.f32 %v3647, %v3803
      %v3805 = vpop.f32.mrb[0].mxu0
      %v3806 = vadd.f32 %v3651, %v3805
      %v3807 = vpop.f32.mrb[0].mxu0
      %v3808 = vadd.f32 %v3651, %v3807
      %3809 = vmatprep.mubr.bf16.mxu0 0
      %3810 = vmatmul.mubr.bf16.gmra.mrb[0].mxu0 %v3707
      %v3811 = vpop.f32.mrb[0].mxu0
      %v3812 = vadd.f32 %v3655, %v3811
      %v3813 = vpop.f32.mrb[0].mxu0
      %v3814 = vadd.f32 %v3655, %v3813
      %v3815 = vpop.f32.mrb[0].mxu0
      %v3816 = vadd.f32 %v3659, %v3815
      %v3817 = vpop.f32.mrb[0].mxu0
      %v3818 = vadd.f32 %v3659, %v3817
      %3819 = vmatprep.mubr.bf16.mxu0 0
      %3820 = vmatmul.mubr.bf16.gmra.mrb[0].mxu0 %v3708
      %v3821 = vpop.f32.mrb[0].mxu0
      %v3822 = vadd.f32 %v3663, %v3821
      %v3823 = vpop.f32.mrb[0].mxu0
      %v3824 = vadd.f32 %v3663, %v3823
      %v3825 = vpop.f32.mrb[0].mxu0
      %v3826 = vadd.f32 %v3667, %v3825
      %v3827 = vpop.f32.mrb[0].mxu0
      %v3828 = vadd.f32 %v3667, %v3827
      %3829 = vdwg.mxu0
      %v3830 = vmax.f32 %v3752, 0.0
      %v3831 = vmax.f32 %v3754, 0.0
      %v3832 = vmax.f32 %v3756, 0.0
      %v3833 = vmax.f32 %v3758, 0.0
      %v3834 = vmax.f32 %v3762, 0.0
      %v3835 = vmax.f32 %v3764, 0.0
      %v3836 = vmax.f32 %v3766, 0.0
      %v3837 = vmax.f32 %v3768, 0.0
      %v3838 = vmax.f32 %v3772, 0.0
      %v3839 = vmax.f32 %v3774, 0.0
      %v3840 = vmax.f32 %v3776, 0.0
      %v3841 = vmax.f32 %v3778, 0.0
      %v3842 = vmax.f32 %v3782, 0.0
      %v3843 = vmax.f32 %v3784, 0.0
      %v3844 = vmax.f32 %v3786, 0.0
      %v3845 = vmax.f32 %v3788, 0.0
      %v3846 = vmax.f32 %v3792, 0.0
      %v3847 = vmax.f32 %v3794, 0.0
      %v3848 = vmax.f32 %v3796, 0.0
      %v3849 = vmax.f32 %v3798, 0.0
      %v3850 = vmax.f32 %v3802, 0.0
      %v3851 = vmax.f32 %v3804, 0.0
      %v3852 = vmax.f32 %v3806, 0.0
      %v3853 = vmax.f32 %v3808, 0.0
      %v3854 = vmax.f32 %v3812, 0.0
      %v3855 = vmax.f32 %v3814, 0.0
      %v3856 = vmax.f32 %v3816, 0.0
      %v3857 = vmax.f32 %v3818, 0.0
      %v3858 = vmax.f32 %v3822, 0.0
      %v3859 = vmax.f32 %v3824, 0.0
      %v3860 = vmax.f32 %v3826, 0.0
      %v3861 = vmax.f32 %v3828, 0.0
      %v3862 = vpack.c.bf16 %v3832, %v3830
      %v3863 = vpack.c.bf16 %v3833, %v3831
      %v3864 = vpack.c.bf16 %v3836, %v3834
      %v3865 = vpack.c.bf16 %v3837, %v3835
      %v3866 = vpack.c.bf16 %v3840, %v3838
      %v3867 = vpack.c.bf16 %v3841, %v3839
      %v3868 = vpack.c.bf16 %v3844, %v3842
      %v3869 = vpack.c.bf16 %v3845, %v3843
      %v3870 = vpack.c.bf16 %v3848, %v3846
      %v3871 = vpack.c.bf16 %v3849, %v3847
      %v3872 = vpack.c.bf16 %v3852, %v3850
      %v3873 = vpack.c.bf16 %v3853, %v3851
      %v3874 = vpack.c.bf16 %v3856, %v3854
      %v3875 = vpack.c.bf16 %v3857, %v3855
      %v3876 = vpack.c.bf16 %v3860, %v3858
      %v3877 = vpack.c.bf16 %v3861, %v3859
      %s3878 = scalar_lea.vmem %s5, 256
      %v3879 = vld [vmem:[%s3878] sm:$0xf]
      %v3880 = vld [vmem:[%s3878 + $0x4] sm:$0xf]
      %v3881 = vld [vmem:[%s3878 + $0x8] sm:$0xf]
      %v3882 = vld [vmem:[%s3878 + $0xc] sm:$0xf]
      %v3883 = vld [vmem:[%s3878 + $0x10] sm:$0xf]
      %v3884 = vld [vmem:[%s3878 + $0x14] sm:$0xf]
      %v3885 = vld [vmem:[%s3878 + $0x18] sm:$0xf]
      %v3886 = vld [vmem:[%s3878 + $0x1c] sm:$0xf]
      %v3887 = vld [vmem:[%s3878 + $0x20] sm:$0xf]
      %v3888 = vld [vmem:[%s3878 + $0x24] sm:$0xf]
      %v3889 = vld [vmem:[%s3878 + $0x28] sm:$0xf]
      %v3890 = vld [vmem:[%s3878 + $0x2c] sm:$0xf]
      %v3891 = vld [vmem:[%s3878 + $0x30] sm:$0xf]
      %v3892 = vld [vmem:[%s3878 + $0x34] sm:$0xf]
      %v3893 = vld [vmem:[%s3878 + $0x38] sm:$0xf]
      %v3894 = vld [vmem:[%s3878 + $0x3c] sm:$0xf]
      %v3911 = vunpack.c.l.b16 %v3879
      %v3912 = vunpack.c.l.b16 %v3880
      %v3913 = vunpack.c.l.b16 %v3881
      %v3914 = vunpack.c.l.b16 %v3882
      %v3915 = vunpack.c.l.b16 %v3883
      %v3916 = vunpack.c.l.b16 %v3884
      %v3917 = vunpack.c.l.b16 %v3885
      %v3918 = vunpack.c.l.b16 %v3886
      %v3919 = vunpack.c.l.b16 %v3887
      %v3920 = vunpack.c.l.b16 %v3888
      %v3921 = vunpack.c.l.b16 %v3889
      %v3922 = vunpack.c.l.b16 %v3890
      %v3923 = vunpack.c.l.b16 %v3891
      %v3924 = vunpack.c.l.b16 %v3892
      %v3925 = vunpack.c.l.b16 %v3893
      %v3926 = vunpack.c.l.b16 %v3894
      %v3927 = vpack.c.b16 %v3912, %v3911
      %v3928 = vpack.c.b16 %v3914, %v3913
      %v3929 = vpack.c.b16 %v3916, %v3915
      %v3930 = vpack.c.b16 %v3918, %v3917
      %v3931 = vpack.c.b16 %v3920, %v3919
      %v3932 = vpack.c.b16 %v3922, %v3921
      %v3933 = vpack.c.b16 %v3924, %v3923
      %v3934 = vpack.c.b16 %v3926, %v3925
      %3943 = vmatprep.subr.bf16.mxu0 %v3863
      %3944 = vmatpush1.bf16.msra.mxu0 %v3862
      %3945 = vmatprep.subr.bf16.mxu0 %v3865
      %3946 = vmatpush1.bf16.msra.mxu0 %v3864
      %3947 = vmatprep.subr.bf16.mxu0 %v3867
      %3948 = vmatpush1.bf16.msra.mxu0 %v3866
      %3949 = vmatprep.subr.bf16.mxu0 %v3869
      %3950 = vmatpush1.bf16.msra.mxu0 %v3868
      %3951 = vmatprep.subr.bf16.mxu0 %v3871
      %3952 = vmatpush1.bf16.msra.mxu0 %v3870
      %3953 = vmatprep.subr.bf16.mxu0 %v3873
      %3954 = vmatpush1.bf16.msra.mxu0 %v3872
      %3955 = vmatprep.subr.bf16.mxu0 %v3875
      %3956 = vmatpush1.bf16.msra.mxu0 %v3874
      %3957 = vmatprep.subr.bf16.mxu0 %v3877
      %3958 = vmatpush1.bf16.msra.mxu0 %v3876
      %3959 = vmatprep.subr.bf16.mxu0 0
      %3960 = vmatpush1.bf16.msra.mxu0 0
      %3961 = vmatprep.subr.bf16.mxu0 0
      %3962 = vmatpush1.bf16.msra.mxu0 0
      %3963 = vmatprep.subr.bf16.mxu0 0
      %3964 = vmatpush1.bf16.msra.mxu0 0
      %3965 = vmatprep.subr.bf16.mxu0 0
      %3966 = vmatpush1.bf16.msra.mxu0 0
      %3967 = vmatprep.subr.bf16.mxu0 0
      %3968 = vmatpush1.bf16.msra.mxu0 0
      %3969 = vmatprep.subr.bf16.mxu0 0
      %3970 = vmatpush1.bf16.msra.mxu0 0
      %3971 = vmatprep.subr.bf16.mxu0 0
      %3972 = vmatpush1.bf16.msra.mxu0 0
      %3973 = vmatprep.subr.bf16.mxu0 0
      %3974 = vmatpush1.bf16.msra.mxu0 0
      %3975 = vmatprep.mubr.bf16.mxu0 0
      %3976 = vmatmul.mubr.bf16.gmra.mrb[0].mxu0 %v3927
      %v3977 = vpop.f32.mrb[0].mxu0
      %v3978 = vadd.f32 0.0, %v3977
      %v3979 = vpop.f32.mrb[0].mxu0
      %v3980 = vadd.f32 0.0, %v3979
      %v3981 = vpop.f32.mrb[0].mxu0
      %v3982 = vadd.f32 0.0, %v3981
      %v3983 = vpop.f32.mrb[0].mxu0
      %v3984 = vadd.f32 0.0, %v3983
      %3985 = vmatprep.mubr.bf16.mxu0 0
      %3986 = vmatmul.mubr.bf16.gmra.mrb[0].mxu0 %v3928
      %v3987 = vpop.f32.mrb[0].mxu0
      %v3988 = vadd.f32 0.0, %v3987
      %v3989 = vpop.f32.mrb[0].mxu0
      %v3990 = vadd.f32 0.0, %v3989
      %v3991 = vpop.f32.mrb[0].mxu0
      %v3992 = vadd.f32 0.0, %v3991
      %v3993 = vpop.f32.mrb[0].mxu0
      %v3994 = vadd.f32 0.0, %v3993
      %3995 = vmatprep.mubr.bf16.mxu0 0
      %3996 = vmatmul.mubr.bf16.gmra.mrb[0].mxu0 %v3929
      %v3997 = vpop.f32.mrb[0].mxu0
      %v3998 = vadd.f32 0.0, %v3997
      %v3999 = vpop.f32.mrb[0].mxu0
      %v4000 = vadd.f32 0.0, %v3999
      %v4001 = vpop.f32.mrb[0].mxu0
      %v4002 = vadd.f32 0.0, %v4001
      %v4003 = vpop.f32.mrb[0].mxu0
      %v4004 = vadd.f32 0.0, %v4003
      %4005 = vmatprep.mubr.bf16.mxu0 0
      %4006 = vmatmul.mubr.bf16.gmra.mrb[0].mxu0 %v3930
      %v4007 = vpop.f32.mrb[0].mxu0
      %v4008 = vadd.f32 0.0, %v4007
      %v4009 = vpop.f32.mrb[0].mxu0
      %v4010 = vadd.f32 0.0, %v4009
      %v4011 = vpop.f32.mrb[0].mxu0
      %v4012 = vadd.f32 0.0, %v4011
      %v4013 = vpop.f32.mrb[0].mxu0
      %v4014 = vadd.f32 0.0, %v4013
      %4015 = vmatprep.mubr.bf16.mxu0 0
      %4016 = vmatmul.mubr.bf16.gmra.mrb[0].mxu0 %v3931
      %v4017 = vpop.f32.mrb[0].mxu0
      %v4018 = vadd.f32 0.0, %v4017
      %v4019 = vpop.f32.mrb[0].mxu0
      %v4020 = vadd.f32 0.0, %v4019
      %v4021 = vpop.f32.mrb[0].mxu0
      %v4022 = vadd.f32 0.0, %v4021
      %v4023 = vpop.f32.mrb[0].mxu0
      %v4024 = vadd.f32 0.0, %v4023
      %4025 = vmatprep.mubr.bf16.mxu0 0
      %4026 = vmatmul.mubr.bf16.gmra.mrb[0].mxu0 %v3932
      %v4027 = vpop.f32.mrb[0].mxu0
      %v4028 = vadd.f32 0.0, %v4027
      %v4029 = vpop.f32.mrb[0].mxu0
      %v4030 = vadd.f32 0.0, %v4029
      %v4031 = vpop.f32.mrb[0].mxu0
      %v4032 = vadd.f32 0.0, %v4031
      %v4033 = vpop.f32.mrb[0].mxu0
      %v4034 = vadd.f32 0.0, %v4033
      %4035 = vmatprep.mubr.bf16.mxu0 0
      %4036 = vmatmul.mubr.bf16.gmra.mrb[0].mxu0 %v3933
      %v4037 = vpop.f32.mrb[0].mxu0
      %v4038 = vadd.f32 0.0, %v4037
      %v4039 = vpop.f32.mrb[0].mxu0
      %v4040 = vadd.f32 0.0, %v4039
      %v4041 = vpop.f32.mrb[0].mxu0
      %v4042 = vadd.f32 0.0, %v4041
      %v4043 = vpop.f32.mrb[0].mxu0
      %v4044 = vadd.f32 0.0, %v4043
      %4045 = vmatprep.mubr.bf16.mxu0 0
      %4046 = vmatmul.mubr.bf16.gmra.mrb[0].mxu0 %v3934
      %v4047 = vpop.f32.mrb[0].mxu0
      %v4048 = vadd.f32 0.0, %v4047
      %v4049 = vpop.f32.mrb[0].mxu0
      %v4050 = vadd.f32 0.0, %v4049
      %v4051 = vpop.f32.mrb[0].mxu0
      %v4052 = vadd.f32 0.0, %v4051
      %v4053 = vpop.f32.mrb[0].mxu0
      %v4054 = vadd.f32 0.0, %v4053
      %4055 = vdwg.mxu0
      %v4056 = vadd.f32 %v3508, %v3978
      %v4057 = vadd.f32 %v3509, %v3980
      %v4058 = vadd.f32 %v3510, %v3982
      %v4059 = vadd.f32 %v3511, %v3984
      %v4060 = vadd.f32 %v3512, %v3988
      %v4061 = vadd.f32 %v3513, %v3990
      %v4062 = vadd.f32 %v3514, %v3992
      %v4063 = vadd.f32 %v3515, %v3994
      %v4064 = vadd.f32 %v3516, %v3998
      %v4065 = vadd.f32 %v3517, %v4000
      %v4066 = vadd.f32 %v3518, %v4002
      %v4067 = vadd.f32 %v3519, %v4004
      %v4068 = vadd.f32 %v3520, %v4008
      %v4069 = vadd.f32 %v3521, %v4010
      %v4070 = vadd.f32 %v3522, %v4012
      %v4071 = vadd.f32 %v3523, %v4014
      %v4072 = vadd.f32 %v3524, %v4018
      %v4073 = vadd.f32 %v3525, %v4020
      %v4074 = vadd.f32 %v3526, %v4022
      %v4075 = vadd.f32 %v3527, %v4024
      %v4076 = vadd.f32 %v3528, %v4028
      %v4077 = vadd.f32 %v3529, %v4030
      %v4078 = vadd.f32 %v3530, %v4032
      %v4079 = vadd.f32 %v3531, %v4034
      %v4080 = vadd.f32 %v3532, %v4038
      %v4081 = vadd.f32 %v3533, %v4040
      %v4082 = vadd.f32 %v3534, %v4042
      %v4083 = vadd.f32 %v3535, %v4044
      %v4084 = vadd.f32 %v3536, %v4048
      %v4085 = vadd.f32 %v3537, %v4050
      %v4086 = vadd.f32 %v3538, %v4052
      %v4087 = vadd.f32 %v3539, %v4054
      %4088 = vset.pattern.permute.xlu0 5
      %4089 = vperm.xlu0 %4088, %v383
      %v4090 = vpop.permute.xlu0 %4089
      %4092 = vset.pattern.permute.xlu0 5
      %4093 = vperm.xlu0 %4092, %v384
      %v4094 = vpop.permute.xlu0 %4093
      %4096 = vset.pattern.permute.xlu0 5
      %4097 = vperm.xlu0 %4096, %v385
      %v4098 = vpop.permute.xlu0 %4097
      %4100 = vset.pattern.permute.xlu0 5
      %4101 = vperm.xlu0 %4100, %v386
      %v4102 = vpop.permute.xlu0 %4101
      %4104 = vset.pattern.permute.xlu0 5
      %4105 = vperm.xlu0 %4104, %v387
      %v4106 = vpop.permute.xlu0 %4105
      %4108 = vset.pattern.permute.xlu0 5
      %4109 = vperm.xlu0 %4108, %v388
      %v4110 = vpop.permute.xlu0 %4109
      %4112 = vset.pattern.permute.xlu0 5
      %4113 = vperm.xlu0 %4112, %v389
      %v4114 = vpop.permute.xlu0 %4113
      %4116 = vset.pattern.permute.xlu0 5
      %4117 = vperm.xlu0 %4116, %v390
      %v4118 = vpop.permute.xlu0 %4117
      %4120 = vset.pattern.permute.xlu0 5
      %4121 = vperm.xlu0 %4120, %v391
      %v4122 = vpop.permute.xlu0 %4121
      %4124 = vset.pattern.permute.xlu0 5
      %4125 = vperm.xlu0 %4124, %v392
      %v4126 = vpop.permute.xlu0 %4125
      %4128 = vset.pattern.permute.xlu0 5
      %4129 = vperm.xlu0 %4128, %v393
      %v4130 = vpop.permute.xlu0 %4129
      %4132 = vset.pattern.permute.xlu0 5
      %4133 = vperm.xlu0 %4132, %v394
      %v4134 = vpop.permute.xlu0 %4133
      %4136 = vset.pattern.permute.xlu0 5
      %4137 = vperm.xlu0 %4136, %v395
      %v4138 = vpop.permute.xlu0 %4137
      %4140 = vset.pattern.permute.xlu0 5
      %4141 = vperm.xlu0 %4140, %v396
      %v4142 = vpop.permute.xlu0 %4141
      %4144 = vset.pattern.permute.xlu0 5
      %4145 = vperm.xlu0 %4144, %v397
      %v4146 = vpop.permute.xlu0 %4145
      %4148 = vset.pattern.permute.xlu0 5
      %4149 = vperm.xlu0 %4148, %v398
      %v4150 = vpop.permute.xlu0 %4149
      %v4152 = vadd.f32 %v4056, %v4090
      %v4153 = vadd.f32 %v4057, %v4090
      %v4154 = vadd.f32 %v4058, %v4094
      %v4155 = vadd.f32 %v4059, %v4094
      %v4156 = vadd.f32 %v4060, %v4098
      %v4157 = vadd.f32 %v4061, %v4098
      %v4158 = vadd.f32 %v4062, %v4102
      %v4159 = vadd.f32 %v4063, %v4102
      %v4160 = vadd.f32 %v4064, %v4106
      %v4161 = vadd.f32 %v4065, %v4106
      %v4162 = vadd.f32 %v4066, %v4110
      %v4163 = vadd.f32 %v4067, %v4110
      %v4164 = vadd.f32 %v4068, %v4114
      %v4165 = vadd.f32 %v4069, %v4114
      %v4166 = vadd.f32 %v4070, %v4118
      %v4167 = vadd.f32 %v4071, %v4118
      %v4168 = vadd.f32 %v4072, %v4122
      %v4169 = vadd.f32 %v4073, %v4122
      %v4170 = vadd.f32 %v4074, %v4126
      %v4171 = vadd.f32 %v4075, %v4126
      %v4172 = vadd.f32 %v4076, %v4130
      %v4173 = vadd.f32 %v4077, %v4130
      %v4174 = vadd.f32 %v4078, %v4134
      %v4175 = vadd.f32 %v4079, %v4134
      %v4176 = vadd.f32 %v4080, %v4138
      %v4177 = vadd.f32 %v4081, %v4138
      %v4178 = vadd.f32 %v4082, %v4142
      %v4179 = vadd.f32 %v4083, %v4142
      %v4180 = vadd.f32 %v4084, %v4146
      %v4181 = vadd.f32 %v4085, %v4146
      %v4182 = vadd.f32 %v4086, %v4150
      %v4183 = vadd.f32 %v4087, %v4150
      %v4184 = vmax.f32 %v4152, 0.0
      %v4185 = vmax.f32 %v4153, 0.0
      %v4186 = vmax.f32 %v4154, 0.0
      %v4187 = vmax.f32 %v4155, 0.0
      %v4188 = vmax.f32 %v4156, 0.0
      %v4189 = vmax.f32 %v4157, 0.0
      %v4190 = vmax.f32 %v4158, 0.0
      %v4191 = vmax.f32 %v4159, 0.0
      %v4192 = vmax.f32 %v4160, 0.0
      %v4193 = vmax.f32 %v4161, 0.0
      %v4194 = vmax.f32 %v4162, 0.0
      %v4195 = vmax.f32 %v4163, 0.0
      %v4196 = vmax.f32 %v4164, 0.0
      %v4197 = vmax.f32 %v4165, 0.0
      %v4198 = vmax.f32 %v4166, 0.0
      %v4199 = vmax.f32 %v4167, 0.0
      %v4200 = vmax.f32 %v4168, 0.0
      %v4201 = vmax.f32 %v4169, 0.0
      %v4202 = vmax.f32 %v4170, 0.0
      %v4203 = vmax.f32 %v4171, 0.0
      %v4204 = vmax.f32 %v4172, 0.0
      %v4205 = vmax.f32 %v4173, 0.0
      %v4206 = vmax.f32 %v4174, 0.0
      %v4207 = vmax.f32 %v4175, 0.0
      %v4208 = vmax.f32 %v4176, 0.0
      %v4209 = vmax.f32 %v4177, 0.0
      %v4210 = vmax.f32 %v4178, 0.0
      %v4211 = vmax.f32 %v4179, 0.0
      %v4212 = vmax.f32 %v4180, 0.0
      %v4213 = vmax.f32 %v4181, 0.0
      %v4214 = vmax.f32 %v4182, 0.0
      %v4215 = vmax.f32 %v4183, 0.0
      %v4216 = vpack.c.bf16 %v4186, %v4184
      %v4217 = vpack.c.bf16 %v4187, %v4185
      %v4218 = vpack.c.bf16 %v4190, %v4188
      %v4219 = vpack.c.bf16 %v4191, %v4189
      %v4220 = vpack.c.bf16 %v4194, %v4192
      %v4221 = vpack.c.bf16 %v4195, %v4193
      %v4222 = vpack.c.bf16 %v4198, %v4196
      %v4223 = vpack.c.bf16 %v4199, %v4197
      %v4224 = vpack.c.bf16 %v4202, %v4200
      %v4225 = vpack.c.bf16 %v4203, %v4201
      %v4226 = vpack.c.bf16 %v4206, %v4204
      %v4227 = vpack.c.bf16 %v4207, %v4205
      %v4228 = vpack.c.bf16 %v4210, %v4208
      %v4229 = vpack.c.bf16 %v4211, %v4209
      %v4230 = vpack.c.bf16 %v4214, %v4212
      %v4231 = vpack.c.bf16 %v4215, %v4213
      %v4232 = vld [vmem:[%s6] sm:$0x3]
      %v4233 = vld [vmem:[%s7] sm:$0xf]
      %4235 = vset.pattern.permute.xlu0 0
      %4236 = vperm.xlu0 %4235, %v4233
      %v4237 = vpop.permute.xlu0 %4236
      %4239 = vmatprep.subr.bf16.mxu0 %v4217
      %4240 = vmatpush1.bf16.msra.mxu0 %v4216
      %4241 = vmatprep.subr.bf16.mxu0 %v4219
      %4242 = vmatpush1.bf16.msra.mxu0 %v4218
      %4243 = vmatprep.subr.bf16.mxu0 %v4221
      %4244 = vmatpush1.bf16.msra.mxu0 %v4220
      %4245 = vmatprep.subr.bf16.mxu0 %v4223
      %4246 = vmatpush1.bf16.msra.mxu0 %v4222
      %4247 = vmatprep.subr.bf16.mxu0 %v4225
      %4248 = vmatpush1.bf16.msra.mxu0 %v4224
      %4249 = vmatprep.subr.bf16.mxu0 %v4227
      %4250 = vmatpush1.bf16.msra.mxu0 %v4226
      %4251 = vmatprep.subr.bf16.mxu0 %v4229
      %4252 = vmatpush1.bf16.msra.mxu0 %v4228
      %4253 = vmatprep.subr.bf16.mxu0 %v4231
      %4254 = vmatpush1.bf16.msra.mxu0 %v4230
      %4255 = vmatprep.subr.bf16.mxu0 0
      %4256 = vmatpush1.bf16.msra.mxu0 0
      %4257 = vmatprep.subr.bf16.mxu0 0
      %4258 = vmatpush1.bf16.msra.mxu0 0
      %4259 = vmatprep.subr.bf16.mxu0 0
      %4260 = vmatpush1.bf16.msra.mxu0 0
      %4261 = vmatprep.subr.bf16.mxu0 0
      %4262 = vmatpush1.bf16.msra.mxu0 0
      %4263 = vmatprep.subr.bf16.mxu0 0
      %4264 = vmatpush1.bf16.msra.mxu0 0
      %4265 = vmatprep.subr.bf16.mxu0 0
      %4266 = vmatpush1.bf16.msra.mxu0 0
      %4267 = vmatprep.subr.bf16.mxu0 0
      %4268 = vmatpush1.bf16.msra.mxu0 0
      %4269 = vmatprep.subr.bf16.mxu0 0
      %4270 = vmatpush1.bf16.msra.mxu0 0
      %4271 = vmatprep.mubr.bf16.mxu0 0
      %4272 = vmatmul.mubr.bf16.gmra.mrb[0].mxu0 %v4232
      %v4273 = vpop.f32.mrb[0].mxu0
      %v4274 = vadd.f32 %v4237, %v4273
      %v4275 = vpop.f32.mrb[0].mxu0
      %v4276 = vadd.f32 %v4237, %v4275
      %v4277 = vpop.f32.mrb[0].mxu0
      %v4278 = vpop.f32.mrb[0].mxu0
      %4279 = vdwg.mxu0
      %v4280 = vlaneseq
      %v4281 = vshrl.u32 %v4280, 7
      %vm4282 = vcmp.eq.s32.totalorder %v4281, 0
      %v4283 = vxor.u32 %v4274, 2147483648
      %v4284 = vxor.u32 %v4276, 2147483648
      %v4285 = vmul.f32 %v4283, 1.442695
      %v4286 = vpow.pop %v4285
      %v4287 = vmul.f32 %v4284, 1.442695
      %v4288 = vpow.pop %v4287
      %v4289 = vadd.f32 %v4286, 1.0
      %v4290 = vadd.f32 %v4288, 1.0
      %v4291 = vrcp.pop %v4289
      %v4292 = vmul.f32 1.0, %v4291
      %v4293 = vrcp.pop %v4290
      %v4294 = vmul.f32 1.0, %v4293
      %v4295 = vsel %vm4282, %v4274, %v4292
      %v4296 = vsel %vm4282, %v4276, %v4294
      %v4299 = vcombine.low %v4295, %v4296
      %4301 = vst [vmem:[%s363] sm:$0xff] %v4299
      %s4302 = smul.u32 2, %s24
      %p4303 = scmp.lt.s32.totalorder %s23, 1
      %s4304 = scalar_select %p4303, %s23, 1
      %p4305 = scmp.lt.s32.totalorder %s4302, 1
      %s4306 = scalar_select %p4305, %s4302, 1
      %s4307 = smul.addr %s4304, 2
      %s4308 = sadd.s32 %s4306, %s4307
      %s4309 = smul.addr %s4308, 4
      %s4310 = scalar_lea.vmem %s8, %s4309
      // Predicated region
      $region53: #{occupancy_forward.1} parent=51 // pred_check
        %p4311 = pneg %p231
      $region54: #{occupancy_forward.1} parent=51 // pred_check_branch
        %4313 = sbr.rel (%p4311) target = $region56
      $region55: #{occupancy_forward.1} parent=51 // pred_region
        %s4314 = smul.u32 2, %s24
      $region56: #{occupancy_forward.1} parent=51 // pred_fallthru
        _
    $region52: #{occupancy_forward.1} parent=5 // pred_fallthru
      _
    %p4315 = scmp.le.s32.totalorder 2, %s14
    // Predicated region
    $region57: #{occupancy_forward.1} parent=5 // pred_check
      %p4316 = pneg %p4315
    $region58: #{occupancy_forward.1} parent=5 // pred_check_branch
      %4318 = sbr.rel (%p4316) target = $region60
    $region59: #{occupancy_forward.1} parent=5 // pred_region
      %s4319 = ssub.s32 %s14, 2
      // Predicated region
      $region61: #{occupancy_forward.1} parent=59 // pred_check
        %p4320 = pneg %p237
      $region62: #{occupancy_forward.1} parent=59 // pred_check_branch
        %4322 = sbr.rel (%p4320) target = $region64
      $region63: #{occupancy_forward.1} parent=59 // pred_region
        %s4323 = smul.u32 2, %s26
        %p4324 = scmp.lt.s32.totalorder %s25, 1
        %s4325 = scalar_select %p4324, %s25, 1
        %p4326 = scmp.lt.s32.totalorder %s4323, 1
        %s4327 = scalar_select %p4326, %s4323, 1
        %s4328 = smul.addr %s4325, 2
        %s4329 = sadd.s32 %s4327, %s4328
        %s4330 = smul.addr %s4329, 4
        %s4331 = scalar_lea.vmem %s8, %s4330
      $region64: #{occupancy_forward.1} parent=59 // pred_fallthru
        _
    $region60: #{occupancy_forward.1} parent=5 // pred_fallthru
      _
  $region6: #{occupancy_forward.1} parent=0 // loop_footer
    %s18 = sadd.s32 1, %s14
  $region7: #{occupancy_forward.1} parent=0 // loop_footer_branch
    %13 = sbr.rel target = $region3
  $region8: #{occupancy_forward.1} parent=0 // loop_exit
    _

</llo_original>
